<compile_context>
chip_gen: v7x
topology: tpu7x:2x2x1
jax: 0.10.0
libtpu: 0.0.40
codegen_flags: <defaults>
</compile_context>

<pallas_src>
import functools
import math

import jax
import jax.numpy as jnp
from jax.experimental import pallas as pl
from jax.experimental.pallas import tpu as pltpu


# ----------------------------------------------------------------------------
# Fused Pallas kernel: M-tiled grid, weights grid-invariant (VMEM resident),
# GAP accumulated in VMEM scratch, fc1/fc2 epilogue on the last grid step.
# ----------------------------------------------------------------------------
def _fused_forward_kernel(
    patches_ref, pool_ref,
    stem_w_ref, head_w_ref, fc1_w_ref, fc1_scale_ref, fc2_w_ref, biases_ref,
    out_ref,
    feats_acc_ref,
    *, c_stem, c_head, hidden, n_pad, c_stem_pad,
):
    m = pl.program_id(0)
    last = pl.num_programs(0) - 1

    @pl.when(m == 0)
    def _():
        feats_acc_ref[...] = jnp.zeros_like(feats_acc_ref)

    # Lane-aligned offsets into the concatenated bias vector.
    o_head = c_stem_pad
    o_fc1 = o_head + c_head
    o_fc2 = o_fc1 + hidden

    stem_b = biases_ref[:, 0:c_stem]                    # (1, 40)   f32
    head_b = biases_ref[:, o_head:o_head + c_head]      # (1, 1536) f32

    # --- stem conv (im2col matmul) + folded BN + SiLU (bf16 in, f32 acc) ------
    x = jnp.dot(patches_ref[...], stem_w_ref[...],
                preferred_element_type=jnp.float32)     # (TM, 40) f32
    x = x + stem_b
    x = x * jax.nn.sigmoid(x)                           # SiLU in f32

    # TODO(synk): EfficientNet-b3's pretrained MBConv block stack is not reproduced.

    # --- head 1x1 conv (per-pixel matmul) + folded BN + SiLU ------------------
    h = jnp.dot(x.astype(jnp.bfloat16), head_w_ref[...],
                preferred_element_type=jnp.float32)     # (TM, 1536) f32
    h = h + head_b
    h = (h * jax.nn.sigmoid(h)).astype(jnp.bfloat16)    # bf16 for the GAP matmul

    # --- partial global average pool for this M-tile (bf16 x bf16 -> f32) -----
    # pool holds 0/1 membership only; the 1/HW scale is folded into fc1_scale.
    feats_acc_ref[...] += jnp.dot(pool_ref[...], h,
                                  preferred_element_type=jnp.float32)

    # --- classifier epilogue, only once all M-tiles are accumulated -----------
    @pl.when(m == last)
    def _():
        fc1_b = biases_ref[:, o_fc1:o_fc1 + hidden]     # (1, 1024) f32
        fc2_b = biases_ref[:, o_fc2:o_fc2 + n_pad]      # (1, 128)  f32

        feats = feats_acc_ref[...].astype(jnp.bfloat16)             # (B, 1536)

        # fc1: int8 weights, dequantized per-column on the f32 accumulator
        # (fc1_scale already carries the 1/HW GAP normalization, in f32).
        w1 = fc1_w_ref[...].astype(jnp.float32).astype(jnp.bfloat16)
        z = jnp.dot(feats, w1, preferred_element_type=jnp.float32)  # (B, 1024)
        z = z * fc1_scale_ref[...] + fc1_b
        z = z * jax.nn.sigmoid(z)                                    # SiLU
        # Dropout(0.3) is identity at inference (eval mode); no mask applied.

        logits = jnp.dot(z.astype(jnp.bfloat16), fc2_w_ref[...],
                         preferred_element_type=jnp.float32)         # (B, 128)
        out_ref[...] = (logits + fc2_b).astype(out_ref.dtype)


# ----------------------------------------------------------------------------
# Plain-JAX glue: im2col patch extraction (data layout only, no compute)
# ----------------------------------------------------------------------------
def _im2col(x_nhwc, k, stride, pad):
    """x: (B, H, W, C) -> patches (B*Ho*Wo, k*k*C), ordered (ki, kj, cin)."""
    x = jnp.pad(x_nhwc, ((0, 0), (pad, pad), (pad, pad), (0, 0)))
    B, H, W, C = x.shape
    Ho = (H - k) // stride + 1
    Wo = (W - k) // stride + 1
    cols = []
    for i in range(k):
        for j in range(k):
            cols.append(x[:, i:i + stride * Ho:stride, j:j + stride * Wo:stride, :])
    patches = jnp.concatenate(cols, axis=-1)          # (B, Ho, Wo, k*k*C)
    return patches.reshape(B * Ho * Wo, k * k * C), (B, Ho, Wo)


# ----------------------------------------------------------------------------
# Parameters (deterministic synthetic init; BN folded; bf16 weights,
# int8 + per-column scale for fc1, f32 biases)
# ----------------------------------------------------------------------------
def init_params(key, c_in=3, c_stem=40, c_head=1536, hidden=1024,
                num_classes=2, n_pad=128):
    ks = jax.random.split(key, 4)

    def init_f32(kk, shape, fan_in):
        return jax.random.normal(kk, shape, jnp.float32) / jnp.sqrt(float(fan_in))

    k_raw = 3 * 3 * c_in                          # 27
    k_pad = ((k_raw + 31) // 32) * 32             # 32 (sublane-aligned im2col K)
    stem_w = jnp.zeros((k_pad, c_stem), jnp.bfloat16)
    stem_w = stem_w.at[:k_raw, :].set(
        init_f32(ks[0], (k_raw, c_stem), k_raw).astype(jnp.bfloat16))

    # fc1 weight quantized to int8 with per-output-column f32 scale.
    w1 = init_f32(ks[2], (c_head, hidden), c_head)
    w1_maxabs = jnp.maximum(jnp.max(jnp.abs(w1), axis=0, keepdims=True), 1e-8)
    fc1_scale = w1_maxabs / 127.0                                   # (1, hidden) f32
    fc1_w_q = jnp.clip(jnp.round(w1 / fc1_scale), -127, 127).astype(jnp.int8)

    # fc2 weight padded N: num_classes -> n_pad (zero cols, sliced off after the kernel)
    fc2_w = jnp.zeros((hidden, n_pad), jnp.bfloat16)
    fc2_w = fc2_w.at[:, :num_classes].set(
        init_f32(ks[3], (hidden, num_classes), hidden).astype(jnp.bfloat16))

    return {
        # stem conv 3x3 (weights reshaped (kh,kw,cin,cout) -> (k*k*cin, cout)); BN folded
        "stem_w": stem_w,
        "stem_b": jnp.zeros((c_stem,), jnp.float32),
        # 1x1 head conv; BN folded
        "headconv_w": init_f32(ks[1], (c_stem, c_head), c_stem).astype(jnp.bfloat16),
        "headconv_b": jnp.zeros((c_head,), jnp.float32),
        # classifier head (replaced _fc): Linear(1536,1024) int8 + scale, Linear(1024,nc)
        "fc1_w": fc1_w_q,
        "fc1_scale": fc1_scale,
        "fc1_b": jnp.zeros((hidden,), jnp.float32),
        "fc2_w": fc2_w,
        "fc2_b": jnp.zeros((n_pad,), jnp.float32),
    }


def _nbytes(shape, dtype):
    n = 1
    for s in shape:
        n *= int(s)
    return n * jnp.dtype(dtype).itemsize


# ----------------------------------------------------------------------------
# Forward pass
# ----------------------------------------------------------------------------
@functools.partial(jax.jit, static_argnames=("num_classes",))
def image_guard_forward(x_nchw, params, *, num_classes=2):
    # NCHW -> NHWC
    x = jnp.transpose(x_nchw, (0, 2, 3, 1))

    # im2col for stem Conv2d(3, 40, 3, stride=2, pad=1); pad K 27 -> 32, cast bf16
    patches, (B, Ho, Wo) = _im2col(x, k=3, stride=2, pad=1)
    k_pad = params["stem_w"].shape[0]

    HW = Ho * Wo
    M = B * HW
    TM = 128                                     # rows per grid step
    M_pad = -(-M // TM) * TM
    n_tiles = M_pad // TM

    patches = jnp.pad(patches, ((0, M_pad - M), (0, k_pad - patches.shape[1])))
    patches = patches.astype(jnp.bfloat16)       # halves the activation HBM stream

    # 0/1 membership matrix for GAP-as-matmul; padded rows get all-zero columns.
    pool = jnp.repeat(jnp.eye(B, dtype=jnp.float32), HW, axis=1)       # (B, M)
    pool = jnp.pad(pool, ((0, 0), (0, M_pad - M))).astype(jnp.bfloat16)

    c_stem = params["stem_w"].shape[1]
    c_head = params["headconv_w"].shape[1]
    hidden = params["fc1_w"].shape[1]
    n_pad = params["fc2_w"].shape[1]
    c_stem_pad = 128                             # lane-aligned bias segment width

    # Fold the exact (f32) 1/HW GAP normalization into the fc1 dequant scale.
    fc1_scale_eff = params["fc1_scale"] / float(HW)                    # (1, hidden)

    # Concatenated, lane-aligned biases: [stem(->128) | head 1536 | fc1 1024 | fc2 128]
    biases = jnp.concatenate([
        jnp.pad(params["stem_b"], (0, c_stem_pad - c_stem)),
        params["headconv_b"],
        params["fc1_b"],
        params["fc2_b"],
    ]).reshape(1, -1)
    total_b = biases.shape[1]

    # --- cost estimate (kept in sync with bf16 patches / int8 fc1_w) ----------
    flops = 2 * (M_pad * k_pad * c_stem + M_pad * c_stem * c_head
                 + B * M_pad * c_head + B * c_head * hidden + B * hidden * n_pad)
    transcendentals = M_pad * (c_stem + c_head) + B * hidden
    bytes_accessed = (
        patches.size * 2 + pool.size * 2 + B * n_pad * 4 + total_b * 4
        + _nbytes(params["stem_w"].shape, jnp.bfloat16)
        + _nbytes(params["headconv_w"].shape, jnp.bfloat16)
        + _nbytes(params["fc1_w"].shape, jnp.int8)
        + _nbytes(params["fc1_scale"].shape, jnp.float32)
        + _nbytes(params["fc2_w"].shape, jnp.bfloat16))

    # --- VMEM budget from actual block sizes (double-buffered inputs) ---------
    in_block_bytes = (
        _nbytes((TM, k_pad), jnp.bfloat16) + _nbytes((B, TM), jnp.bfloat16)
        + _nbytes((k_pad, c_stem), jnp.bfloat16) + _nbytes((c_stem, c_head), jnp.bfloat16)
        + _nbytes((c_head, hidden), jnp.int8) + _nbytes((1, hidden), jnp.float32)
        + _nbytes((hidden, n_pad), jnp.bfloat16) + _nbytes((1, total_b), jnp.float32))
    scratch_bytes = _nbytes((B, c_head), jnp.float32)
    out_bytes = _nbytes((B, n_pad), jnp.float32)
    # headroom for the (TM, c_head) f32+bf16 intermediates and register spill
    intermediate_bytes = TM * c_head * 6 + TM * c_stem * 8
    vmem_limit = 2 * in_block_bytes + 2 * out_bytes + scratch_bytes \
        + intermediate_bytes + (4 << 20)

    const = lambda shape: pl.BlockSpec(shape, lambda i, _s=shape: (0,) * len(_s))

    kernel = functools.partial(
        _fused_forward_kernel,
        c_stem=c_stem, c_head=c_head, hidden=hidden, n_pad=n_pad,
        c_stem_pad=c_stem_pad,
    )

    logits_padded = pl.pallas_call(
        kernel,
        out_shape=jax.ShapeDtypeStruct((B, n_pad), jnp.float32),
        grid=(n_tiles,),
        in_specs=[
            pl.BlockSpec((TM, k_pad), lambda i: (i, 0)),   # im2col patches (bf16, M-tiled)
            pl.BlockSpec((B, TM), lambda i: (0, i)),       # GAP membership  (bf16, M-tiled)
            const((k_pad, c_stem)),                        # stem_w   (bf16, resident)
            const((c_stem, c_head)),                       # head_w   (bf16, resident)
            const((c_head, hidden)),                       # fc1_w    (int8, dominant stream)
            const((1, hidden)),                            # fc1_scale (f32, 1/HW folded)
            const((hidden, n_pad)),                        # fc2_w    (bf16, N padded to 128)
            const((1, total_b)),                           # concatenated biases (f32)
        ],
        out_specs=const((B, n_pad)),
        scratch_shapes=[pltpu.VMEM((B, c_head), jnp.float32)],   # GAP accumulator
        compiler_params=pltpu.CompilerParams(
            dimension_semantics=("arbitrary",),
            vmem_limit_bytes=int(vmem_limit),
        ),
        cost_estimate=pl.CostEstimate(
            flops=int(flops),
            transcendentals=int(transcendentals),
            bytes_accessed=int(bytes_accessed),
        ),
    )(
        patches, pool,
        params["stem_w"], params["headconv_w"],
        params["fc1_w"], fc1_scale_eff, params["fc2_w"], biases,
    )
    # drop the zero-padded fc2 output columns
    return logits_padded[:, :num_classes]


# ----------------------------------------------------------------------------
if __name__ == "__main__":
    key = jax.random.PRNGKey(0)
    k_x, k_p = jax.random.split(key)

    B, C_in, H, W = 2, 3, 16, 16
    num_classes = 2

    x = jax.random.normal(k_x, (B, C_in, H, W), jnp.float32)   # NCHW, PyTorch convention
    params = init_params(k_p, c_in=C_in, num_classes=num_classes)

    logits = image_guard_forward(x, params, num_classes=num_classes)
    logits = jax.block_until_ready(logits)

    assert logits.shape == (B, num_classes), logits.shape
    assert jnp.all(jnp.isfinite(logits))
    print("KERNEL_OK")
</pallas_src>

<mosaic_0001>
module attributes {stable_mosaic.version = 11 : i64} {
  func.func @_fused_forward_kernel(%arg0: i32, %arg1: memref<128x32xbf16, #tpu.memory_space<vmem>>, %arg2: memref<2x128xbf16, #tpu.memory_space<vmem>>, %arg3: memref<32x40xbf16, #tpu.memory_space<vmem>>, %arg4: memref<40x1536xbf16, #tpu.memory_space<vmem>>, %arg5: memref<1536x1024xi8, #tpu.memory_space<vmem>>, %arg6: memref<1x1024xf32, #tpu.memory_space<vmem>>, %arg7: memref<1024x128xbf16, #tpu.memory_space<vmem>>, %arg8: memref<1x2816xf32, #tpu.memory_space<vmem>>, %arg9: memref<2x128xf32, #tpu.memory_space<vmem>>, %arg10: memref<2x1536xf32, #tpu.memory_space<vmem>>) attributes {dimension_semantics = [#tpu.dimension_semantics<arbitrary>], iteration_bounds = array<i64: 1>, scalar_prefetch = 0 : i64, scratch_operands = 1 : i64, tpu.core_type = #tpu.core_type<tc>, window_params = [{transform_indices = @transform_0, window_bounds = array<i64: 128, 32>}, {transform_indices = @transform_1, window_bounds = array<i64: 2, 128>}, {pipeline_mode = #tpu.pipeline_mode<synchronous>, transform_indices = @transform_2, window_bounds = array<i64: 32, 40>}, {pipeline_mode = #tpu.pipeline_mode<synchronous>, transform_indices = @transform_3, window_bounds = array<i64: 40, 1536>}, {pipeline_mode = #tpu.pipeline_mode<synchronous>, transform_indices = @transform_4, window_bounds = array<i64: 1536, 1024>}, {pipeline_mode = #tpu.pipeline_mode<synchronous>, transform_indices = @transform_5, window_bounds = array<i64: 1, 1024>}, {pipeline_mode = #tpu.pipeline_mode<synchronous>, transform_indices = @transform_6, window_bounds = array<i64: 1024, 128>}, {pipeline_mode = #tpu.pipeline_mode<synchronous>, transform_indices = @transform_7, window_bounds = array<i64: 1, 2816>}, {pipeline_mode = #tpu.pipeline_mode<synchronous>, transform_indices = @transform_8, window_bounds = array<i64: 2, 128>}]} {
    %c0_i32 = arith.constant 0 : i32
    %0 = arith.cmpi eq, %arg0, %c0_i32 : i32
    %1 = arith.extui %0 : i1 to i32
    %c0_i32_0 = arith.constant 0 : i32
    %2 = arith.cmpi ne, %1, %c0_i32_0 : i32
    scf.if %2 {
      %cst_21 = arith.constant 0.000000e+00 : f32
      %36 = vector.broadcast %cst_21 : f32 to vector<2x1536xf32>
      %c0_22 = arith.constant 0 : index
      %c0_23 = arith.constant 0 : index
      %37 = vector.load %arg10[%c0_22, %c0_23] : memref<2x1536xf32, #tpu.memory_space<vmem>>, vector<2x1536xf32>
      tpu.vector_store %arg10[%c0_22, %c0_23], %36 {strides = array<i32>} : memref<2x1536xf32, #tpu.memory_space<vmem>>, vector<2x1536xf32>,
    } else {
    }
    %c0 = arith.constant 0 : index
    %c0_1 = arith.constant 0 : index
    %3 = vector.load %arg8[%c0, %c0_1] : memref<1x2816xf32, #tpu.memory_space<vmem>>, vector<1x40xf32>
    %c0_2 = arith.constant 0 : index
    %c128 = arith.constant 128 : index
    %4 = vector.load %arg8[%c0_2, %c128] : memref<1x2816xf32, #tpu.memory_space<vmem>>, vector<1x1536xf32>
    %c0_3 = arith.constant 0 : index
    %c0_4 = arith.constant 0 : index
    %5 = vector.load %arg1[%c0_3, %c0_4] : memref<128x32xbf16, #tpu.memory_space<vmem>>, vector<128x32xbf16>
    %c0_5 = arith.constant 0 : index
    %c0_6 = arith.constant 0 : index
    %6 = vector.load %arg3[%c0_5, %c0_6] : memref<32x40xbf16, #tpu.memory_space<vmem>>, vector<32x40xbf16>
    %cst = arith.constant dense<0.000000e+00> : vector<128x40xf32>
    %7 = tpu.matmul %5, %6, %cst {dimension_numbers = #tpu.dot_dimension_numbers<[1], [0], [0], [1], [0, 0, 1, 1], [], []>} : vector<128x32xbf16>, vector<32x40xbf16>, vector<128x40xf32> -> vector<128x40xf32>
    %8 = vector.broadcast %3 : vector<1x40xf32> to vector<128x40xf32>
    %9 = arith.addf %7, %8 : vector<128x40xf32>
    %10 = arith.negf %9 : vector<128x40xf32>
    %11 = math.exp %10 : vector<128x40xf32>
    %cst_7 = arith.constant 1.000000e+00 : f32
    %12 = vector.broadcast %cst_7 : f32 to vector<128x40xf32>
    %13 = arith.addf %12, %11 : vector<128x40xf32>
    %14 = arith.divf %12, %13 : vector<128x40xf32>
    %15 = arith.mulf %9, %14 : vector<128x40xf32>
    %16 = arith.truncf %15 : vector<128x40xf32> to vector<128x40xbf16>
    %c0_8 = arith.constant 0 : index
    %c0_9 = arith.constant 0 : index
    %17 = vector.load %arg4[%c0_8, %c0_9] : memref<40x1536xbf16, #tpu.memory_space<vmem>>, vector<40x1536xbf16>
    %cst_10 = arith.constant dense<0.000000e+00> : vector<128x1536xf32>
    %18 = tpu.matmul %16, %17, %cst_10 {dimension_numbers = #tpu.dot_dimension_numbers<[1], [0], [0], [1], [0, 0, 1, 1], [], []>} : vector<128x40xbf16>, vector<40x1536xbf16>, vector<128x1536xf32> -> vector<128x1536xf32>
    %19 = vector.broadcast %4 : vector<1x1536xf32> to vector<128x1536xf32>
    %20 = arith.addf %18, %19 : vector<128x1536xf32>
    %21 = arith.negf %20 : vector<128x1536xf32>
    %22 = math.exp %21 : vector<128x1536xf32>
    %cst_11 = arith.constant 1.000000e+00 : f32
    %23 = vector.broadcast %cst_11 : f32 to vector<128x1536xf32>
    %24 = arith.addf %23, %22 : vector<128x1536xf32>
    %25 = arith.divf %23, %24 : vector<128x1536xf32>
    %26 = arith.mulf %20, %25 : vector<128x1536xf32>
    %27 = arith.truncf %26 : vector<128x1536xf32> to vector<128x1536xbf16>
    %c0_12 = arith.constant 0 : index
    %c0_13 = arith.constant 0 : index
    %28 = vector.load %arg10[%c0_12, %c0_13] : memref<2x1536xf32, #tpu.memory_space<vmem>>, vector<2x1536xf32>
    %c0_14 = arith.constant 0 : index
    %c0_15 = arith.constant 0 : index
    %29 = vector.load %arg2[%c0_14, %c0_15] : memref<2x128xbf16, #tpu.memory_space<vmem>>, vector<2x128xbf16>
    %cst_16 = arith.constant dense<0.000000e+00> : vector<2x1536xf32>
    %30 = tpu.matmul %29, %27, %cst_16 {dimension_numbers = #tpu.dot_dimension_numbers<[1], [0], [0], [1], [0, 0, 1, 1], [], []>} : vector<2x128xbf16>, vector<128x1536xbf16>, vector<2x1536xf32> -> vector<2x1536xf32>
    %31 = arith.addf %28, %30 : vector<2x1536xf32>
    %c0_17 = arith.constant 0 : index
    %c0_18 = arith.constant 0 : index
    %32 = vector.load %arg10[%c0_17, %c0_18] : memref<2x1536xf32, #tpu.memory_space<vmem>>, vector<2x1536xf32>
    tpu.vector_store %arg10[%c0_17, %c0_18], %31 {strides = array<i32>} : memref<2x1536xf32, #tpu.memory_space<vmem>>, vector<2x1536xf32>,
    %c0_i32_19 = arith.constant 0 : i32
    %33 = arith.cmpi eq, %arg0, %c0_i32_19 : i32
    %34 = arith.extui %33 : i1 to i32
    %c0_i32_20 = arith.constant 0 : i32
    %35 = arith.cmpi ne, %34, %c0_i32_20 : i32
    scf.if %35 {
      %c0_21 = arith.constant 0 : index
      %c1664 = arith.constant 1664 : index
      %36 = vector.load %arg8[%c0_21, %c1664] : memref<1x2816xf32, #tpu.memory_space<vmem>>, vector<1x1024xf32>
      %c0_22 = arith.constant 0 : index
      %c2688 = arith.constant 2688 : index
      %37 = vector.load %arg8[%c0_22, %c2688] : memref<1x2816xf32, #tpu.memory_space<vmem>>, vector<1x128xf32>
      %c0_23 = arith.constant 0 : index
      %c0_24 = arith.constant 0 : index
      %38 = vector.load %arg10[%c0_23, %c0_24] : memref<2x1536xf32, #tpu.memory_space<vmem>>, vector<2x1536xf32>
      %39 = arith.truncf %38 : vector<2x1536xf32> to vector<2x1536xbf16>
      %c0_25 = arith.constant 0 : index
      %c0_26 = arith.constant 0 : index
      %40 = vector.load %arg5[%c0_25, %c0_26] : memref<1536x1024xi8, #tpu.memory_space<vmem>>, vector<1536x1024xi8>
      %41 = arith.sitofp %40 : vector<1536x1024xi8> to vector<1536x1024xf32>
      %42 = arith.truncf %41 : vector<1536x1024xf32> to vector<1536x1024xbf16>
      %cst_27 = arith.constant dense<0.000000e+00> : vector<2x1024xf32>
      %43 = tpu.matmul %39, %42, %cst_27 {dimension_numbers = #tpu.dot_dimension_numbers<[1], [0], [0], [1], [0, 0, 1, 1], [], []>} : vector<2x1536xbf16>, vector<1536x1024xbf16>, vector<2x1024xf32> -> vector<2x1024xf32>
      %c0_28 = arith.constant 0 : index
      %c0_29 = arith.constant 0 : index
      %44 = vector.load %arg6[%c0_28, %c0_29] : memref<1x1024xf32, #tpu.memory_space<vmem>>, vector<1x1024xf32>
      %45 = vector.broadcast %44 : vector<1x1024xf32> to vector<2x1024xf32>
      %46 = arith.mulf %43, %45 : vector<2x1024xf32>
      %47 = vector.broadcast %36 : vector<1x1024xf32> to vector<2x1024xf32>
      %48 = arith.addf %46, %47 : vector<2x1024xf32>
      %49 = arith.negf %48 : vector<2x1024xf32>
      %50 = math.exp %49 : vector<2x1024xf32>
      %cst_30 = arith.constant 1.000000e+00 : f32
      %51 = vector.broadcast %cst_30 : f32 to vector<2x1024xf32>
      %52 = arith.addf %51, %50 : vector<2x1024xf32>
      %53 = arith.divf %51, %52 : vector<2x1024xf32>
      %54 = arith.mulf %48, %53 : vector<2x1024xf32>
      %55 = arith.truncf %54 : vector<2x1024xf32> to vector<2x1024xbf16>
      %c0_31 = arith.constant 0 : index
      %c0_32 = arith.constant 0 : index
      %56 = vector.load %arg7[%c0_31, %c0_32] : memref<1024x128xbf16, #tpu.memory_space<vmem>>, vector<1024x128xbf16>
      %cst_33 = arith.constant dense<0.000000e+00> : vector<2x128xf32>
      %57 = tpu.matmul %55, %56, %cst_33 {dimension_numbers = #tpu.dot_dimension_numbers<[1], [0], [0], [1], [0, 0, 1, 1], [], []>} : vector<2x1024xbf16>, vector<1024x128xbf16>, vector<2x128xf32> -> vector<2x128xf32>
      %58 = vector.broadcast %37 : vector<1x128xf32> to vector<2x128xf32>
      %59 = arith.addf %57, %58 : vector<2x128xf32>
      %c0_34 = arith.constant 0 : index
      %c0_35 = arith.constant 0 : index
      %60 = vector.load %arg9[%c0_34, %c0_35] : memref<2x128xf32, #tpu.memory_space<vmem>>, vector<2x128xf32>
      tpu.vector_store %arg9[%c0_34, %c0_35], %59 {strides = array<i32>} : memref<2x128xf32, #tpu.memory_space<vmem>>, vector<2x128xf32>,
    } else {
    }
    return
  }
  func.func @transform_0(%arg0: i32) -> (i32, i32) {
    %c0_i32 = arith.constant 0 : i32
    %c0_i32_0 = arith.constant 0 : i32
    return %arg0, %c0_i32 : i32, i32
  }
  func.func @transform_1(%arg0: i32) -> (i32, i32) {
    %c0_i32 = arith.constant 0 : i32
    %c0_i32_0 = arith.constant 0 : i32
    return %c0_i32, %arg0 : i32, i32
  }
  func.func @transform_2(%arg0: i32) -> (i32, i32) {
    %c0_i32 = arith.constant 0 : i32
    %c0_i32_0 = arith.constant 0 : i32
    %c0_i32_1 = arith.constant 0 : i32
    return %c0_i32, %c0_i32_0 : i32, i32
  }
  func.func @transform_3(%arg0: i32) -> (i32, i32) {
    %c0_i32 = arith.constant 0 : i32
    %c0_i32_0 = arith.constant 0 : i32
    %c0_i32_1 = arith.constant 0 : i32
    return %c0_i32, %c0_i32_0 : i32, i32
  }
  func.func @transform_4(%arg0: i32) -> (i32, i32) {
    %c0_i32 = arith.constant 0 : i32
    %c0_i32_0 = arith.constant 0 : i32
    %c0_i32_1 = arith.constant 0 : i32
    return %c0_i32, %c0_i32_0 : i32, i32
  }
  func.func @transform_5(%arg0: i32) -> (i32, i32) {
    %c0_i32 = arith.constant 0 : i32
    %c0_i32_0 = arith.constant 0 : i32
    %c0_i32_1 = arith.constant 0 : i32
    return %c0_i32, %c0_i32_0 : i32, i32
  }
  func.func @transform_6(%arg0: i32) -> (i32, i32) {
    %c0_i32 = arith.constant 0 : i32
    %c0_i32_0 = arith.constant 0 : i32
    %c0_i32_1 = arith.constant 0 : i32
    return %c0_i32, %c0_i32_0 : i32, i32
  }
  func.func @transform_7(%arg0: i32) -> (i32, i32) {
    %c0_i32 = arith.constant 0 : i32
    %c0_i32_0 = arith.constant 0 : i32
    %c0_i32_1 = arith.constant 0 : i32
    return %c0_i32, %c0_i32_0 : i32, i32
  }
  func.func @transform_8(%arg0: i32) -> (i32, i32) {
    %c0_i32 = arith.constant 0 : i32
    %c0_i32_0 = arith.constant 0 : i32
    %c0_i32_1 = arith.constant 0 : i32
    return %c0_i32, %c0_i32_0 : i32, i32
  }
}

</mosaic_0001>

<llo_original>
// kernel: image_guard_forward.1
$region0: #{image_guard_forward.1}
  #allocation0 [shape = 'u32[]', space=smem, size = 0x4, offset = 0x4, fixed_abs, tag = 'smem constant byte address 0x4 - core index']
  #allocation1 [shape = 'u32[144,128]{1,0:T(1,128)}', space=vmem, size = 0x12000, scoped, tag = 'internal scratch']
  #allocation2 [shape = 'f32[2,1536]{1,0:T(2,128)}', space=vmem, size = 0x3000, scoped, tag = 'scratch operand']
  %s0 = inlined_call_operand.vmem [shape: bf16[128,32], index: 0, kind: input, shape index: {}]
  %s1 = inlined_call_operand.vmem [shape: bf16[2,128], index: 1, kind: input, shape index: {}]
  %s2 = inlined_call_operand.vmem [shape: bf16[32,40], index: 2, kind: input, shape index: {}]
  %s3 = inlined_call_operand.hbm [shape: bf16[40,1536], index: 3, kind: input, shape index: {}]
  %s4 = inlined_call_operand.vmem [shape: s8[1536,1024], index: 4, kind: input, shape index: {}]
  %s5 = inlined_call_operand.vmem [shape: f32[1,1024], index: 5, kind: input, shape index: {}]
  %s6 = inlined_call_operand.hbm [shape: bf16[1024,128], index: 6, kind: input, shape index: {}]
  %s7 = inlined_call_operand.vmem [shape: f32[1,2816], index: 7, kind: input, shape index: {}]
  %s8 = inlined_call_operand.hbm [shape: f32[2,128], index: 8, kind: output, shape index: {}]
  %s9 = sld [smem:[#allocation0]]
  $region58: #{image_guard_forward.1} parent=0
    _
  %s11 = ssub.s32 1, %s9
  %s12 = scalar_select 0, %s11, %s9
  $region1: #{image_guard_forward.1} parent=0
    #allocation3 [shape = 'u8[122880]{0}', space=vmem, size = 0x1e000, scoped, tag = 'input window, operand 3, single buffered']
    #allocation4 [shape = 's32[1]{0}', space=sflag, size = 0x4, scoped, tag = 'scoped memory for image_guard_forward.1']
    #allocation5 [shape = 's32[1]{0}', space=sflag, size = 0x4, scoped, tag = 'scoped memory for image_guard_forward.1']
    #allocation6 [shape = 'u8[262144]{0}', space=vmem, size = 0x40000, scoped, tag = 'input window, operand 6, single buffered']
    #allocation7 [shape = 's32[1]{0}', space=sflag, size = 0x4, scoped, tag = 'scoped memory for image_guard_forward.1']
    #allocation8 [shape = 'u8[1024]{0}', space=vmem, size = 0x400, scoped, tag = 'output window, operand 0, single buffered']
    %13 = vsyncpa [#allocation4], 0
    %14 = vsyncpa [#allocation7], 0
    %15 = vsyncpa [#allocation5], 0
    // Predicated region
    $region2: #{image_guard_forward.1} parent=1 // pred_check
      _
    $region3: #{image_guard_forward.1} parent=1 // pred_check_branch
      %17 = sbr.rel (0) target = $region5
    $region4: #{image_guard_forward.1} parent=1 // pred_region
      _
    $region5: #{image_guard_forward.1} parent=1 // pred_fallthru
      _
    // Predicated region
    $region6: #{image_guard_forward.1} parent=1 // pred_check
      _
    $region7: #{image_guard_forward.1} parent=1 // pred_check_branch
      %19 = sbr.rel (0) target = $region9
    $region8: #{image_guard_forward.1} parent=1 // pred_region
      _
    $region9: #{image_guard_forward.1} parent=1 // pred_fallthru
      _
    // Predicated region
    $region10: #{image_guard_forward.1} parent=1 // pred_check
      _
    $region11: #{image_guard_forward.1} parent=1 // pred_check_branch
      %21 = sbr.rel (0) target = $region13
    $region12: #{image_guard_forward.1} parent=1 // pred_region
      _
    $region13: #{image_guard_forward.1} parent=1 // pred_fallthru
      _
    // Predicated region
    $region14: #{image_guard_forward.1} parent=1 // pred_check
      _
    $region15: #{image_guard_forward.1} parent=1 // pred_check_branch
      %23 = sbr.rel (0) target = $region17
    $region16: #{image_guard_forward.1} parent=1 // pred_region
      %s25 = ssub.s32 3840, 3840
      %26 = vsyncadd [#allocation4], %s25
      %s27 = sshll.u32 [#allocation3], 4
      %s28 = int_to_ptr.vmem [resolvable:$true] %s27
      %33 = dma.hbm_to_vmem [thread:$0]  %s3, 3840, %s28, [#allocation4], 768, 768, 48
    $region17: #{image_guard_forward.1} parent=1 // pred_fallthru
      _
    // Predicated region
    $region18: #{image_guard_forward.1} parent=1 // pred_check
      _
    $region19: #{image_guard_forward.1} parent=1 // pred_check_branch
      %35 = sbr.rel (0) target = $region21
    $region20: #{image_guard_forward.1} parent=1 // pred_region
      _
    $region21: #{image_guard_forward.1} parent=1 // pred_fallthru
      _
    // Predicated region
    $region22: #{image_guard_forward.1} parent=1 // pred_check
      _
    $region23: #{image_guard_forward.1} parent=1 // pred_check_branch
      %37 = sbr.rel (0) target = $region25
    $region24: #{image_guard_forward.1} parent=1 // pred_region
      _
    $region25: #{image_guard_forward.1} parent=1 // pred_fallthru
      _
    // Predicated region
    $region26: #{image_guard_forward.1} parent=1 // pred_check
      _
    $region27: #{image_guard_forward.1} parent=1 // pred_check_branch
      %39 = sbr.rel (0) target = $region29
    $region28: #{image_guard_forward.1} parent=1 // pred_region
      %s41 = ssub.s32 8192, 8192
      %42 = vsyncadd [#allocation7], %s41
      %s43 = sshll.u32 [#allocation6], 4
      %s44 = int_to_ptr.vmem [resolvable:$true] %s43
      %49 = dma.hbm_to_vmem [thread:$0]  %s6, 8192, %s44, [#allocation7], 64, 64, 4
    $region29: #{image_guard_forward.1} parent=1 // pred_fallthru
      _
    // Predicated region
    $region30: #{image_guard_forward.1} parent=1 // pred_check
      _
    $region31: #{image_guard_forward.1} parent=1 // pred_check_branch
      %51 = sbr.rel (0) target = $region33
    $region32: #{image_guard_forward.1} parent=1 // pred_region
      _
    $region33: #{image_guard_forward.1} parent=1 // pred_fallthru
      _
    // Predicated region
    $region34: #{image_guard_forward.1} parent=1 // pred_check
      _
    $region35: #{image_guard_forward.1} parent=1 // pred_check_branch
      %53 = sbr.rel (0) target = $region37
    $region36: #{image_guard_forward.1} parent=1 // pred_region
      %54 = dma.done [#allocation4], 3840
    $region37: #{image_guard_forward.1} parent=1 // pred_fallthru
      _
    // Predicated region
    $region38: #{image_guard_forward.1} parent=1 // pred_check
      _
    $region39: #{image_guard_forward.1} parent=1 // pred_check_branch
      %56 = sbr.rel (0) target = $region41
    $region40: #{image_guard_forward.1} parent=1 // pred_region
      %57 = dma.done [#allocation7], 8192
    $region41: #{image_guard_forward.1} parent=1 // pred_fallthru
      _
    %p59 = scmp.eq.s32.totalorder 0, 0
    // Predicated region
    $region42: #{image_guard_forward.1} parent=1 // pred_check
      %p60 = pneg %p59
    $region43: #{image_guard_forward.1} parent=1 // pred_check_branch
      %62 = sbr.rel (%p60) target = $region45
    $region44: #{image_guard_forward.1} parent=1 // pred_region
      %63 = vst [vmem:[#allocation2] sm:$0xff] 0.0
      %64 = vst [vmem:[#allocation2 + $0x8] sm:$0xff] 0.0
      %65 = vst [vmem:[#allocation2 + $0x10] sm:$0xff] 0.0
    $region45: #{image_guard_forward.1} parent=1 // pred_fallthru
      _
    %v66 = vld [vmem:[%s7] sm:$0x1]
    %v67 = vld [vmem:[%s7 + $0x1] sm:$0xff]
    %v68 = vld [vmem:[%s7 + $0x9] sm:$0xf]
    %v69 = vld [vmem:[%s0] sm:$0xf]
    %v70 = vld [vmem:[%s0 + $0x4] sm:$0xf]
    %v71 = vld [vmem:[%s0 + $0x8] sm:$0xf]
    %v72 = vld [vmem:[%s0 + $0xc] sm:$0xf]
    %v73 = vld [vmem:[%s0 + $0x10] sm:$0xf]
    %v74 = vld [vmem:[%s0 + $0x14] sm:$0xf]
    %v75 = vld [vmem:[%s0 + $0x18] sm:$0xf]
    %v76 = vld [vmem:[%s0 + $0x1c] sm:$0xf]
    %v77 = vld [vmem:[%s0 + $0x20] sm:$0xf]
    %v78 = vld [vmem:[%s0 + $0x24] sm:$0xf]
    %v79 = vld [vmem:[%s0 + $0x28] sm:$0xf]
    %v80 = vld [vmem:[%s0 + $0x2c] sm:$0xf]
    %v81 = vld [vmem:[%s0 + $0x30] sm:$0xf]
    %v82 = vld [vmem:[%s0 + $0x34] sm:$0xf]
    %v83 = vld [vmem:[%s0 + $0x38] sm:$0xf]
    %v84 = vld [vmem:[%s0 + $0x3c] sm:$0xf]
    %v85 = vld [vmem:[%s2] sm:$0xf]
    %v86 = vld [vmem:[%s2 + $0x4] sm:$0xf]
    %v87 = vld [vmem:[%s2 + $0x8] sm:$0xf]
    %v88 = vld [vmem:[%s2 + $0xc] sm:$0xf]
    %v90 = vlaneseq
    %v91 = vshrl.u32 %v90, 7
    %v92 = vsub.s32 0, %v91
    %v93 = vrot.slane %v66, %v92
    %v111 = vunpack.c.l.b16 %v69
    %v112 = vunpack.c.l.b16 %v70
    %v113 = vunpack.c.l.b16 %v71
    %v114 = vunpack.c.l.b16 %v72
    %v115 = vunpack.c.l.b16 %v73
    %v116 = vunpack.c.l.b16 %v74
    %v117 = vunpack.c.l.b16 %v75
    %v118 = vunpack.c.l.b16 %v76
    %v119 = vunpack.c.l.b16 %v77
    %v120 = vunpack.c.l.b16 %v78
    %v121 = vunpack.c.l.b16 %v79
    %v122 = vunpack.c.l.b16 %v80
    %v123 = vunpack.c.l.b16 %v81
    %v124 = vunpack.c.l.b16 %v82
    %v125 = vunpack.c.l.b16 %v83
    %v126 = vunpack.c.l.b16 %v84
    %v127 = vpack.c.b16 %v112, %v111
    %v128 = vpack.c.b16 %v114, %v113
    %v129 = vpack.c.b16 %v116, %v115
    %v130 = vpack.c.b16 %v118, %v117
    %v131 = vpack.c.b16 %v120, %v119
    %v132 = vpack.c.b16 %v122, %v121
    %v133 = vpack.c.b16 %v124, %v123
    %v134 = vpack.c.b16 %v126, %v125
    %v139 = vunpack.c.l.b16 %v85
    %v140 = vunpack.c.l.b16 %v86
    %v141 = vunpack.c.l.b16 %v87
    %v142 = vunpack.c.l.b16 %v88
    %v143 = vpack.c.b16 %v140, %v139
    %v144 = vpack.c.b16 %v142, %v141
    %vm147 = vcmask 261120
    %v149 = vsel %vm147, %v127, 0
    %v152 = vsel %vm147, %v128, 0
    %v155 = vsel %vm147, %v129, 0
    %v158 = vsel %vm147, %v130, 0
    %v161 = vsel %vm147, %v131, 0
    %v164 = vsel %vm147, %v132, 0
    %v167 = vsel %vm147, %v133, 0
    %v170 = vsel %vm147, %v134, 0
    %172 = vmatprep.subr.bf16.mxu0 0
    %173 = vmatpush1.bf16.msra.mxu0 %v143
    %174 = vmatprep.subr.bf16.mxu0 0
    %175 = vmatpush1.bf16.msra.mxu0 %v144
    %176 = vmatprep.subr.bf16.mxu0 0
    %177 = vmatpush1.bf16.msra.mxu0 0
    %178 = vmatprep.subr.bf16.mxu0 0
    %179 = vmatpush1.bf16.msra.mxu0 0
    %180 = vmatprep.subr.bf16.mxu0 0
    %181 = vmatpush1.bf16.msra.mxu0 0
    %182 = vmatprep.subr.bf16.mxu0 0
    %183 = vmatpush1.bf16.msra.mxu0 0
    %184 = vmatprep.subr.bf16.mxu0 0
    %185 = vmatpush1.bf16.msra.mxu0 0
    %186 = vmatprep.subr.bf16.mxu0 0
    %187 = vmatpush1.bf16.msra.mxu0 0
    %188 = vmatprep.subr.bf16.mxu0 0
    %189 = vmatpush1.bf16.msra.mxu0 0
    %190 = vmatprep.subr.bf16.mxu0 0
    %191 = vmatpush1.bf16.msra.mxu0 0
    %192 = vmatprep.subr.bf16.mxu0 0
    %193 = vmatpush1.bf16.msra.mxu0 0
    %194 = vmatprep.subr.bf16.mxu0 0
    %195 = vmatpush1.bf16.msra.mxu0 0
    %196 = vmatprep.subr.bf16.mxu0 0
    %197 = vmatpush1.bf16.msra.mxu0 0
    %198 = vmatprep.subr.bf16.mxu0 0
    %199 = vmatpush1.bf16.msra.mxu0 0
    %200 = vmatprep.subr.bf16.mxu0 0
    %201 = vmatpush1.bf16.msra.mxu0 0
    %202 = vmatprep.subr.bf16.mxu0 0
    %203 = vmatpush1.bf16.msra.mxu0 0
    %204 = vmatprep.mubr.bf16.mxu0 0
    %205 = vmatmul.mubr.bf16.gmra.mrb[0].mxu0 %v149
    %v206 = vpop.f32.mrb[0].mxu0
    %v207 = vadd.f32 %v93, %v206
    %v208 = vpop.f32.mrb[0].mxu0
    %v209 = vpop.f32.mrb[0].mxu0
    %v210 = vadd.f32 %v93, %v209
    %v211 = vpop.f32.mrb[0].mxu0
    %212 = vmatprep.mubr.bf16.mxu0 0
    %213 = vmatmul.mubr.bf16.gmra.mrb[0].mxu0 %v152
    %v214 = vpop.f32.mrb[0].mxu0
    %v215 = vadd.f32 %v93, %v214
    %v216 = vpop.f32.mrb[0].mxu0
    %v217 = vpop.f32.mrb[0].mxu0
    %v218 = vadd.f32 %v93, %v217
    %v219 = vpop.f32.mrb[0].mxu0
    %220 = vmatprep.mubr.bf16.mxu0 0
    %221 = vmatmul.mubr.bf16.gmra.mrb[0].mxu0 %v155
    %v222 = vpop.f32.mrb[0].mxu0
    %v223 = vadd.f32 %v93, %v222
    %v224 = vpop.f32.mrb[0].mxu0
    %v225 = vpop.f32.mrb[0].mxu0
    %v226 = vadd.f32 %v93, %v225
    %v227 = vpop.f32.mrb[0].mxu0
    %228 = vmatprep.mubr.bf16.mxu0 0
    %229 = vmatmul.mubr.bf16.gmra.mrb[0].mxu0 %v158
    %v230 = vpop.f32.mrb[0].mxu0
    %v231 = vadd.f32 %v93, %v230
    %v232 = vpop.f32.mrb[0].mxu0
    %v233 = vpop.f32.mrb[0].mxu0
    %v234 = vadd.f32 %v93, %v233
    %v235 = vpop.f32.mrb[0].mxu0
    %236 = vmatprep.mubr.bf16.mxu0 0
    %237 = vmatmul.mubr.bf16.gmra.mrb[0].mxu0 %v161
    %v238 = vpop.f32.mrb[0].mxu0
    %v239 = vadd.f32 %v93, %v238
    %v240 = vpop.f32.mrb[0].mxu0
    %v241 = vpop.f32.mrb[0].mxu0
    %v242 = vadd.f32 %v93, %v241
    %v243 = vpop.f32.mrb[0].mxu0
    %244 = vmatprep.mubr.bf16.mxu0 0
    %245 = vmatmul.mubr.bf16.gmra.mrb[0].mxu0 %v164
    %v246 = vpop.f32.mrb[0].mxu0
    %v247 = vadd.f32 %v93, %v246
    %v248 = vpop.f32.mrb[0].mxu0
    %v249 = vpop.f32.mrb[0].mxu0
    %v250 = vadd.f32 %v93, %v249
    %v251 = vpop.f32.mrb[0].mxu0
    %252 = vmatprep.mubr.bf16.mxu0 0
    %253 = vmatmul.mubr.bf16.gmra.mrb[0].mxu0 %v167
    %v254 = vpop.f32.mrb[0].mxu0
    %v255 = vadd.f32 %v93, %v254
    %v256 = vpop.f32.mrb[0].mxu0
    %v257 = vpop.f32.mrb[0].mxu0
    %v258 = vadd.f32 %v93, %v257
    %v259 = vpop.f32.mrb[0].mxu0
    %260 = vmatprep.mubr.bf16.mxu0 0
    %261 = vmatmul.mubr.bf16.gmra.mrb[0].mxu0 %v170
    %v262 = vpop.f32.mrb[0].mxu0
    %v263 = vadd.f32 %v93, %v262
    %v264 = vpop.f32.mrb[0].mxu0
    %v265 = vpop.f32.mrb[0].mxu0
    %v266 = vadd.f32 %v93, %v265
    %v267 = vpop.f32.mrb[0].mxu0
    %268 = vdwg.mxu0
    %v269 = vxor.u32 %v207, 2147483648
    %v270 = vxor.u32 %v210, 2147483648
    %v271 = vxor.u32 %v215, 2147483648
    %v272 = vxor.u32 %v218, 2147483648
    %v273 = vxor.u32 %v223, 2147483648
    %v274 = vxor.u32 %v226, 2147483648
    %v275 = vxor.u32 %v231, 2147483648
    %v276 = vxor.u32 %v234, 2147483648
    %v277 = vxor.u32 %v239, 2147483648
    %v278 = vxor.u32 %v242, 2147483648
    %v279 = vxor.u32 %v247, 2147483648
    %v280 = vxor.u32 %v250, 2147483648
    %v281 = vxor.u32 %v255, 2147483648
    %v282 = vxor.u32 %v258, 2147483648
    %v283 = vxor.u32 %v263, 2147483648
    %v284 = vxor.u32 %v266, 2147483648
    %v285 = vmul.f32 %v269, 1.442695
    %v286 = vpow.pop %v285
    %v287 = vmul.f32 %v270, 1.442695
    %v288 = vpow.pop %v287
    %v289 = vmul.f32 %v271, 1.442695
    %v290 = vpow.pop %v289
    %v291 = vmul.f32 %v272, 1.442695
    %v292 = vpow.pop %v291
    %v293 = vmul.f32 %v273, 1.442695
    %v294 = vpow.pop %v293
    %v295 = vmul.f32 %v274, 1.442695
    %v296 = vpow.pop %v295
    %v297 = vmul.f32 %v275, 1.442695
    %v298 = vpow.pop %v297
    %v299 = vmul.f32 %v276, 1.442695
    %v300 = vpow.pop %v299
    %v301 = vmul.f32 %v277, 1.442695
    %v302 = vpow.pop %v301
    %v303 = vmul.f32 %v278, 1.442695
    %v304 = vpow.pop %v303
    %v305 = vmul.f32 %v279, 1.442695
    %v306 = vpow.pop %v305
    %v307 = vmul.f32 %v280, 1.442695
    %v308 = vpow.pop %v307
    %v309 = vmul.f32 %v281, 1.442695
    %v310 = vpow.pop %v309
    %v311 = vmul.f32 %v282, 1.442695
    %v312 = vpow.pop %v311
    %v313 = vmul.f32 %v283, 1.442695
    %v314 = vpow.pop %v313
    %v315 = vmul.f32 %v284, 1.442695
    %v316 = vpow.pop %v315
    %v317 = vadd.f32 %v286, 1.0
    %v318 = vadd.f32 %v288, 1.0
    %v319 = vadd.f32 %v290, 1.0
    %v320 = vadd.f32 %v292, 1.0
    %v321 = vadd.f32 %v294, 1.0
    %v322 = vadd.f32 %v296, 1.0
    %v323 = vadd.f32 %v298, 1.0
    %v324 = vadd.f32 %v300, 1.0
    %v325 = vadd.f32 %v302, 1.0
    %v326 = vadd.f32 %v304, 1.0
    %v327 = vadd.f32 %v306, 1.0
    %v328 = vadd.f32 %v308, 1.0
    %v329 = vadd.f32 %v310, 1.0
    %v330 = vadd.f32 %v312, 1.0
    %v331 = vadd.f32 %v314, 1.0
    %v332 = vadd.f32 %v316, 1.0
    %v333 = vrcp.pop %v317
    %v334 = vmul.f32 1.0, %v333
    %v335 = vrcp.pop %v318
    %v336 = vmul.f32 1.0, %v335
    %v337 = vrcp.pop %v319
    %v338 = vmul.f32 1.0, %v337
    %v339 = vrcp.pop %v320
    %v340 = vmul.f32 1.0, %v339
    %v341 = vrcp.pop %v321
    %v342 = vmul.f32 1.0, %v341
    %v343 = vrcp.pop %v322
    %v344 = vmul.f32 1.0, %v343
    %v345 = vrcp.pop %v323
    %v346 = vmul.f32 1.0, %v345
    %v347 = vrcp.pop %v324
    %v348 = vmul.f32 1.0, %v347
    %v349 = vrcp.pop %v325
    %v350 = vmul.f32 1.0, %v349
    %v351 = vrcp.pop %v326
    %v352 = vmul.f32 1.0, %v351
    %v353 = vrcp.pop %v327
    %v354 = vmul.f32 1.0, %v353
    %v355 = vrcp.pop %v328
    %v356 = vmul.f32 1.0, %v355
    %v357 = vrcp.pop %v329
    %v358 = vmul.f32 1.0, %v357
    %v359 = vrcp.pop %v330
    %v360 = vmul.f32 1.0, %v359
    %v361 = vrcp.pop %v331
    %v362 = vmul.f32 1.0, %v361
    %v363 = vrcp.pop %v332
    %v364 = vmul.f32 1.0, %v363
    %v365 = vmul.f32 %v207, %v334
    %v366 = vmul.f32 %v210, %v336
    %v367 = vmul.f32 %v215, %v338
    %v368 = vmul.f32 %v218, %v340
    %v369 = vmul.f32 %v223, %v342
    %v370 = vmul.f32 %v226, %v344
    %v371 = vmul.f32 %v231, %v346
    %v372 = vmul.f32 %v234, %v348
    %v373 = vmul.f32 %v239, %v350
    %v374 = vmul.f32 %v242, %v352
    %v375 = vmul.f32 %v247, %v354
    %v376 = vmul.f32 %v250, %v356
    %v377 = vmul.f32 %v255, %v358
    %v378 = vmul.f32 %v258, %v360
    %v379 = vmul.f32 %v263, %v362
    %v380 = vmul.f32 %v266, %v364
    %v381 = vpack.c.bf16 %v366, %v365
    %v382 = vpack.c.bf16 %v368, %v367
    %v383 = vpack.c.bf16 %v370, %v369
    %v384 = vpack.c.bf16 %v372, %v371
    %v385 = vpack.c.bf16 %v374, %v373
    %v386 = vpack.c.bf16 %v376, %v375
    %v387 = vpack.c.bf16 %v378, %v377
    %v388 = vpack.c.bf16 %v380, %v379
    %v389 = vld [vmem:[#allocation3] sm:$0xff]
    %v390 = vld [vmem:[#allocation3 + $0x8] sm:$0xff]
    %v391 = vld [vmem:[#allocation3 + $0x10] sm:$0xff]
    %v392 = vld [vmem:[#allocation3 + $0x18] sm:$0xff]
    %v393 = vld [vmem:[#allocation3 + $0x20] sm:$0xff]
    %v394 = vld [vmem:[#allocation3 + $0x28] sm:$0xff]
    %v395 = vld [vmem:[#allocation3 + $0x30] sm:$0xff]
    %v396 = vld [vmem:[#allocation3 + $0x38] sm:$0xff]
    %v397 = vld [vmem:[#allocation3 + $0x40] sm:$0xff]
    %v398 = vld [vmem:[#allocation3 + $0x48] sm:$0xff]
    %v399 = vld [vmem:[#allocation3 + $0x50] sm:$0xff]
    %v400 = vld [vmem:[#allocation3 + $0x58] sm:$0xff]
    %v401 = vld [vmem:[#allocation3 + $0x60] sm:$0xff]
    %v402 = vld [vmem:[#allocation3 + $0x68] sm:$0xff]
    %v403 = vld [vmem:[#allocation3 + $0x70] sm:$0xff]
    %v404 = vld [vmem:[#allocation3 + $0x78] sm:$0xff]
    %v405 = vld [vmem:[#allocation3 + $0x80] sm:$0xff]
    %v406 = vld [vmem:[#allocation3 + $0x88] sm:$0xff]
    %v407 = vld [vmem:[#allocation3 + $0x90] sm:$0xff]
    %v408 = vld [vmem:[#allocation3 + $0x98] sm:$0xff]
    %v409 = vld [vmem:[#allocation3 + $0xa0] sm:$0xff]
    %v410 = vld [vmem:[#allocation3 + $0xa8] sm:$0xff]
    %v411 = vld [vmem:[#allocation3 + $0xb0] sm:$0xff]
    %v412 = vld [vmem:[#allocation3 + $0xb8] sm:$0xff]
    %v413 = vld [vmem:[#allocation3 + $0xc0] sm:$0xff]
    %v414 = vld [vmem:[#allocation3 + $0xc8] sm:$0xff]
    %v415 = vld [vmem:[#allocation3 + $0xd0] sm:$0xff]
    %v416 = vld [vmem:[#allocation3 + $0xd8] sm:$0xff]
    %v417 = vld [vmem:[#allocation3 + $0xe0] sm:$0xff]
    %v418 = vld [vmem:[#allocation3 + $0xe8] sm:$0xff]
    %v421 = vlaneseq
    %v422 = vshrl.u32 %v421, 7
    %v423 = vsub.s32 0, %v422
    %v424 = vrot.slane %v67, %v423
    %v425 = vlaneseq
    %v426 = vshrl.u32 %v425, 7
    %v427 = vsub.s32 1, %v426
    %v428 = vrot.slane %v67, %v427
    %v429 = vlaneseq
    %v430 = vshrl.u32 %v429, 7
    %v431 = vsub.s32 2, %v430
    %v432 = vrot.slane %v67, %v431
    %v433 = vlaneseq
    %v434 = vshrl.u32 %v433, 7
    %v435 = vsub.s32 3, %v434
    %v436 = vrot.slane %v67, %v435
    %v437 = vlaneseq
    %v438 = vshrl.u32 %v437, 7
    %v439 = vsub.s32 4, %v438
    %v440 = vrot.slane %v67, %v439
    %v441 = vlaneseq
    %v442 = vshrl.u32 %v441, 7
    %v443 = vsub.s32 5, %v442
    %v444 = vrot.slane %v67, %v443
    %v445 = vlaneseq
    %v446 = vshrl.u32 %v445, 7
    %v447 = vsub.s32 6, %v446
    %v448 = vrot.slane %v67, %v447
    %v449 = vlaneseq
    %v450 = vshrl.u32 %v449, 7
    %v451 = vsub.s32 7, %v450
    %v452 = vrot.slane %v67, %v451
    %v453 = vlaneseq
    %v454 = vshrl.u32 %v453, 7
    %v455 = vsub.s32 0, %v454
    %v456 = vrot.slane %v68, %v455
    %v457 = vlaneseq
    %v458 = vshrl.u32 %v457, 7
    %v459 = vsub.s32 1, %v458
    %v460 = vrot.slane %v68, %v459
    %v461 = vlaneseq
    %v462 = vshrl.u32 %v461, 7
    %v463 = vsub.s32 2, %v462
    %v464 = vrot.slane %v68, %v463
    %v465 = vlaneseq
    %v466 = vshrl.u32 %v465, 7
    %v467 = vsub.s32 3, %v466
    %v468 = vrot.slane %v68, %v467
    %v511 = vunpack.c.l.b16 %v389
    %v512 = vunpack.c.h.b16 %v389
    %v513 = vunpack.c.l.b16 %v390
    %v514 = vunpack.c.h.b16 %v390
    %v515 = vunpack.c.l.b16 %v391
    %v516 = vunpack.c.h.b16 %v391
    %v517 = vunpack.c.l.b16 %v392
    %v518 = vunpack.c.h.b16 %v392
    %v519 = vunpack.c.l.b16 %v393
    %v520 = vunpack.c.h.b16 %v393
    %v521 = vunpack.c.l.b16 %v394
    %v522 = vunpack.c.h.b16 %v394
    %v523 = vunpack.c.l.b16 %v395
    %v524 = vunpack.c.h.b16 %v395
    %v525 = vunpack.c.l.b16 %v396
    %v526 = vunpack.c.h.b16 %v396
    %v527 = vunpack.c.l.b16 %v397
    %v528 = vunpack.c.h.b16 %v397
    %v529 = vunpack.c.l.b16 %v398
    %v530 = vunpack.c.h.b16 %v398
    %v531 = vunpack.c.l.b16 %v399
    %v532 = vunpack.c.h.b16 %v399
    %v533 = vunpack.c.l.b16 %v400
    %v534 = vunpack.c.h.b16 %v400
    %v535 = vunpack.c.l.b16 %v401
    %v536 = vunpack.c.h.b16 %v401
    %v537 = vunpack.c.l.b16 %v402
    %v538 = vunpack.c.h.b16 %v402
    %v539 = vunpack.c.l.b16 %v403
    %v540 = vunpack.c.h.b16 %v403
    %v541 = vunpack.c.l.b16 %v404
    %v542 = vunpack.c.h.b16 %v404
    %v543 = vunpack.c.l.b16 %v405
    %v544 = vunpack.c.h.b16 %v405
    %v545 = vunpack.c.l.b16 %v406
    %v546 = vunpack.c.h.b16 %v406
    %v547 = vunpack.c.l.b16 %v407
    %v548 = vunpack.c.h.b16 %v407
    %v549 = vunpack.c.l.b16 %v408
    %v550 = vunpack.c.h.b16 %v408
    %v551 = vunpack.c.l.b16 %v409
    %v552 = vunpack.c.h.b16 %v409
    %v553 = vunpack.c.l.b16 %v410
    %v554 = vunpack.c.h.b16 %v410
    %v555 = vunpack.c.l.b16 %v411
    %v556 = vunpack.c.h.b16 %v411
    %v557 = vunpack.c.l.b16 %v412
    %v558 = vunpack.c.h.b16 %v412
    %v559 = vunpack.c.l.b16 %v413
    %v560 = vunpack.c.h.b16 %v413
    %v561 = vunpack.c.l.b16 %v414
    %v562 = vunpack.c.h.b16 %v414
    %v563 = vunpack.c.l.b16 %v415
    %v564 = vunpack.c.h.b16 %v415
    %v565 = vunpack.c.l.b16 %v416
    %v566 = vunpack.c.h.b16 %v416
    %v567 = vunpack.c.l.b16 %v417
    %v568 = vunpack.c.h.b16 %v417
    %v569 = vunpack.c.l.b16 %v418
    %v570 = vunpack.c.h.b16 %v418
    %v571 = vpack.c.b16 %v523, %v511
    %v572 = vpack.c.b16 %v524, %v512
    %v573 = vpack.c.b16 %v525, %v513
    %v574 = vpack.c.b16 %v526, %v514
    %v575 = vpack.c.b16 %v527, %v515
    %v576 = vpack.c.b16 %v528, %v516
    %v577 = vpack.c.b16 %v529, %v517
    %v578 = vpack.c.b16 %v530, %v518
    %v579 = vpack.c.b16 %v531, %v519
    %v580 = vpack.c.b16 %v532, %v520
    %v581 = vpack.c.b16 %v533, %v521
    %v582 = vpack.c.b16 %v534, %v522
    %v583 = vpack.c.b16 %v547, %v535
    %v584 = vpack.c.b16 %v548, %v536
    %v585 = vpack.c.b16 %v549, %v537
    %v586 = vpack.c.b16 %v550, %v538
    %v587 = vpack.c.b16 %v551, %v539
    %v588 = vpack.c.b16 %v552, %v540
    %v589 = vpack.c.b16 %v553, %v541
    %v590 = vpack.c.b16 %v554, %v542
    %v591 = vpack.c.b16 %v555, %v543
    %v592 = vpack.c.b16 %v556, %v544
    %v593 = vpack.c.b16 %v557, %v545
    %v594 = vpack.c.b16 %v558, %v546
    %v595 = vpack.c.b16 %v559, %v559
    %v596 = vpack.c.b16 %v560, %v560
    %v597 = vpack.c.b16 %v561, %v561
    %v598 = vpack.c.b16 %v562, %v562
    %v599 = vpack.c.b16 %v563, %v563
    %v600 = vpack.c.b16 %v564, %v564
    %v601 = vpack.c.b16 %v565, %v565
    %v602 = vpack.c.b16 %v566, %v566
    %v603 = vpack.c.b16 %v567, %v567
    %v604 = vpack.c.b16 %v568, %v568
    %v605 = vpack.c.b16 %v569, %v569
    %v606 = vpack.c.b16 %v570, %v570
    %vm631 = vcmask 326656
    %v633 = vsel %vm631, %v381, 0
    %v636 = vsel %vm631, %v382, 0
    %v639 = vsel %vm631, %v383, 0
    %v642 = vsel %vm631, %v384, 0
    %v645 = vsel %vm631, %v385, 0
    %v648 = vsel %vm631, %v386, 0
    %v651 = vsel %vm631, %v387, 0
    %v654 = vsel %vm631, %v388, 0
    %vm656 = vcmask 1043456
    %v658 = vsel %vm656, %v595, 0
    %v661 = vsel %vm656, %v596, 0
    %v664 = vsel %vm656, %v597, 0
    %v667 = vsel %vm656, %v598, 0
    %v670 = vsel %vm656, %v599, 0
    %v673 = vsel %vm656, %v600, 0
    %v676 = vsel %vm656, %v601, 0
    %v679 = vsel %vm656, %v602, 0
    %v682 = vsel %vm656, %v603, 0
    %v685 = vsel %vm656, %v604, 0
    %v688 = vsel %vm656, %v605, 0
    %v691 = vsel %vm656, %v606, 0
    %693 = vmatprep.subr.bf16.mxu0 %v572
    %694 = vmatpush1.bf16.msra.mxu0 %v571
    %695 = vmatprep.subr.bf16.mxu0 %v584
    %696 = vmatpush1.bf16.msra.mxu0 %v583
    %697 = vmatprep.subr.bf16.mxu0 %v661
    %698 = vmatpush1.bf16.msra.mxu0 %v658
    %699 = vmatprep.subr.bf16.mxu0 0
    %700 = vmatpush1.bf16.msra.mxu0 0
    %701 = vmatprep.subr.bf16.mxu0 0
    %702 = vmatpush1.bf16.msra.mxu0 0
    %703 = vmatprep.subr.bf16.mxu0 0
    %704 = vmatpush1.bf16.msra.mxu0 0
    %705 = vmatprep.subr.bf16.mxu0 0
    %706 = vmatpush1.bf16.msra.mxu0 0
    %707 = vmatprep.subr.bf16.mxu0 0
    %708 = vmatpush1.bf16.msra.mxu0 0
    %709 = vmatprep.subr.bf16.mxu0 0
    %710 = vmatpush1.bf16.msra.mxu0 0
    %711 = vmatprep.subr.bf16.mxu0 0
    %712 = vmatpush1.bf16.msra.mxu0 0
    %713 = vmatprep.subr.bf16.mxu0 0
    %714 = vmatpush1.bf16.msra.mxu0 0
    %715 = vmatprep.subr.bf16.mxu0 0
    %716 = vmatpush1.bf16.msra.mxu0 0
    %717 = vmatprep.subr.bf16.mxu0 0
    %718 = vmatpush1.bf16.msra.mxu0 0
    %719 = vmatprep.subr.bf16.mxu0 0
    %720 = vmatpush1.bf16.msra.mxu0 0
    %721 = vmatprep.subr.bf16.mxu0 0
    %722 = vmatpush1.bf16.msra.mxu0 0
    %723 = vmatprep.subr.bf16.mxu0 0
    %724 = vmatpush1.bf16.msra.mxu0 0
    %725 = vmatprep.mubr.bf16.mxu0 0
    %726 = vmatmul.mubr.bf16.gmra.mrb[0].mxu0 %v633
    %v727 = vpop.f32.mrb[0].mxu0
    %v728 = vadd.f32 %v424, %v727
    %v729 = vpop.f32.mrb[0].mxu0
    %v730 = vadd.f32 %v428, %v729
    %v731 = vpop.f32.mrb[0].mxu0
    %v732 = vadd.f32 %v424, %v731
    %v733 = vpop.f32.mrb[0].mxu0
    %v734 = vadd.f32 %v428, %v733
    %735 = vmatprep.mubr.bf16.mxu0 0
    %736 = vmatmul.mubr.bf16.gmra.mrb[0].mxu0 %v636
    %v737 = vpop.f32.mrb[0].mxu0
    %v738 = vadd.f32 %v424, %v737
    %v739 = vpop.f32.mrb[0].mxu0
    %v740 = vadd.f32 %v428, %v739
    %v741 = vpop.f32.mrb[0].mxu0
    %v742 = vadd.f32 %v424, %v741
    %v743 = vpop.f32.mrb[0].mxu0
    %v744 = vadd.f32 %v428, %v743
    %745 = vmatprep.mubr.bf16.mxu0 0
    %746 = vmatmul.mubr.bf16.gmra.mrb[0].mxu0 %v639
    %v747 = vpop.f32.mrb[0].mxu0
    %v748 = vadd.f32 %v424, %v747
    %v749 = vpop.f32.mrb[0].mxu0
    %v750 = vadd.f32 %v428, %v749
    %v751 = vpop.f32.mrb[0].mxu0
    %v752 = vadd.f32 %v424, %v751
    %v753 = vpop.f32.mrb[0].mxu0
    %v754 = vadd.f32 %v428, %v753
    %755 = vmatprep.mubr.bf16.mxu0 0
    %756 = vmatmul.mubr.bf16.gmra.mrb[0].mxu0 %v642
    %v757 = vpop.f32.mrb[0].mxu0
    %v758 = vadd.f32 %v424, %v757
    %v759 = vpop.f32.mrb[0].mxu0
    %v760 = vadd.f32 %v428, %v759
    %v761 = vpop.f32.mrb[0].mxu0
    %v762 = vadd.f32 %v424, %v761
    %v763 = vpop.f32.mrb[0].mxu0
    %v764 = vadd.f32 %v428, %v763
    %765 = vmatprep.mubr.bf16.mxu0 0
    %766 = vmatmul.mubr.bf16.gmra.mrb[0].mxu0 %v645
    %v767 = vpop.f32.mrb[0].mxu0
    %v768 = vadd.f32 %v424, %v767
    %v769 = vpop.f32.mrb[0].mxu0
    %v770 = vadd.f32 %v428, %v769
    %v771 = vpop.f32.mrb[0].mxu0
    %v772 = vadd.f32 %v424, %v771
    %v773 = vpop.f32.mrb[0].mxu0
    %v774 = vadd.f32 %v428, %v773
    %775 = vmatprep.mubr.bf16.mxu0 0
    %776 = vmatmul.mubr.bf16.gmra.mrb[0].mxu0 %v648
    %v777 = vpop.f32.mrb[0].mxu0
    %v778 = vadd.f32 %v424, %v777
    %v779 = vpop.f32.mrb[0].mxu0
    %v780 = vadd.f32 %v428, %v779
    %v781 = vpop.f32.mrb[0].mxu0
    %v782 = vadd.f32 %v424, %v781
    %v783 = vpop.f32.mrb[0].mxu0
    %v784 = vadd.f32 %v428, %v783
    %785 = vmatprep.mubr.bf16.mxu0 0
    %786 = vmatmul.mubr.bf16.gmra.mrb[0].mxu0 %v651
    %v787 = vpop.f32.mrb[0].mxu0
    %v788 = vadd.f32 %v424, %v787
    %v789 = vpop.f32.mrb[0].mxu0
    %v790 = vadd.f32 %v428, %v789
    %v791 = vpop.f32.mrb[0].mxu0
    %v792 = vadd.f32 %v424, %v791
    %v793 = vpop.f32.mrb[0].mxu0
    %v794 = vadd.f32 %v428, %v793
    %795 = vmatprep.mubr.bf16.mxu0 0
    %796 = vmatmul.mubr.bf16.gmra.mrb[0].mxu0 %v654
    %v797 = vpop.f32.mrb[0].mxu0
    %v798 = vadd.f32 %v424, %v797
    %v799 = vpop.f32.mrb[0].mxu0
    %v800 = vadd.f32 %v428, %v799
    %v801 = vpop.f32.mrb[0].mxu0
    %v802 = vadd.f32 %v424, %v801
    %v803 = vpop.f32.mrb[0].mxu0
    %v804 = vadd.f32 %v428, %v803
    %805 = vdwg.mxu0
    %806 = vmatprep.subr.bf16.mxu0 %v574
    %807 = vmatpush1.bf16.msra.mxu0 %v573
    %808 = vmatprep.subr.bf16.mxu0 %v586
    %809 = vmatpush1.bf16.msra.mxu0 %v585
    %810 = vmatprep.subr.bf16.mxu0 %v667
    %811 = vmatpush1.bf16.msra.mxu0 %v664
    %812 = vmatprep.subr.bf16.mxu0 0
    %813 = vmatpush1.bf16.msra.mxu0 0
    %814 = vmatprep.subr.bf16.mxu0 0
    %815 = vmatpush1.bf16.msra.mxu0 0
    %816 = vmatprep.subr.bf16.mxu0 0
    %817 = vmatpush1.bf16.msra.mxu0 0
    %818 = vmatprep.subr.bf16.mxu0 0
    %819 = vmatpush1.bf16.msra.mxu0 0
    %820 = vmatprep.subr.bf16.mxu0 0
    %821 = vmatpush1.bf16.msra.mxu0 0
    %822 = vmatprep.subr.bf16.mxu0 0
    %823 = vmatpush1.bf16.msra.mxu0 0
    %824 = vmatprep.subr.bf16.mxu0 0
    %825 = vmatpush1.bf16.msra.mxu0 0
    %826 = vmatprep.subr.bf16.mxu0 0
    %827 = vmatpush1.bf16.msra.mxu0 0
    %828 = vmatprep.subr.bf16.mxu0 0
    %829 = vmatpush1.bf16.msra.mxu0 0
    %830 = vmatprep.subr.bf16.mxu0 0
    %831 = vmatpush1.bf16.msra.mxu0 0
    %832 = vmatprep.subr.bf16.mxu0 0
    %833 = vmatpush1.bf16.msra.mxu0 0
    %834 = vmatprep.subr.bf16.mxu0 0
    %835 = vmatpush1.bf16.msra.mxu0 0
    %836 = vmatprep.subr.bf16.mxu0 0
    %837 = vmatpush1.bf16.msra.mxu0 0
    %838 = vmatprep.mubr.bf16.mxu0 0
    %839 = vmatmul.mubr.bf16.gmra.mrb[0].mxu0 %v633
    %v840 = vpop.f32.mrb[0].mxu0
    %v841 = vadd.f32 %v432, %v840
    %v842 = vpop.f32.mrb[0].mxu0
    %v843 = vadd.f32 %v436, %v842
    %v844 = vpop.f32.mrb[0].mxu0
    %v845 = vadd.f32 %v432, %v844
    %v846 = vpop.f32.mrb[0].mxu0
    %v847 = vadd.f32 %v436, %v846
    %848 = vmatprep.mubr.bf16.mxu0 0
    %849 = vmatmul.mubr.bf16.gmra.mrb[0].mxu0 %v636
    %v850 = vpop.f32.mrb[0].mxu0
    %v851 = vadd.f32 %v432, %v850
    %v852 = vpop.f32.mrb[0].mxu0
    %v853 = vadd.f32 %v436, %v852
    %v854 = vpop.f32.mrb[0].mxu0
    %v855 = vadd.f32 %v432, %v854
    %v856 = vpop.f32.mrb[0].mxu0
    %v857 = vadd.f32 %v436, %v856
    %858 = vmatprep.mubr.bf16.mxu0 0
    %859 = vmatmul.mubr.bf16.gmra.mrb[0].mxu0 %v639
    %v860 = vpop.f32.mrb[0].mxu0
    %v861 = vadd.f32 %v432, %v860
    %v862 = vpop.f32.mrb[0].mxu0
    %v863 = vadd.f32 %v436, %v862
    %v864 = vpop.f32.mrb[0].mxu0
    %v865 = vadd.f32 %v432, %v864
    %v866 = vpop.f32.mrb[0].mxu0
    %v867 = vadd.f32 %v436, %v866
    %868 = vmatprep.mubr.bf16.mxu0 0
    %869 = vmatmul.mubr.bf16.gmra.mrb[0].mxu0 %v642
    %v870 = vpop.f32.mrb[0].mxu0
    %v871 = vadd.f32 %v432, %v870
    %v872 = vpop.f32.mrb[0].mxu0
    %v873 = vadd.f32 %v436, %v872
    %v874 = vpop.f32.mrb[0].mxu0
    %v875 = vadd.f32 %v432, %v874
    %v876 = vpop.f32.mrb[0].mxu0
    %v877 = vadd.f32 %v436, %v876
    %878 = vmatprep.mubr.bf16.mxu0 0
    %879 = vmatmul.mubr.bf16.gmra.mrb[0].mxu0 %v645
    %v880 = vpop.f32.mrb[0].mxu0
    %v881 = vadd.f32 %v432, %v880
    %v882 = vpop.f32.mrb[0].mxu0
    %v883 = vadd.f32 %v436, %v882
    %v884 = vpop.f32.mrb[0].mxu0
    %v885 = vadd.f32 %v432, %v884
    %v886 = vpop.f32.mrb[0].mxu0
    %v887 = vadd.f32 %v436, %v886
    %888 = vmatprep.mubr.bf16.mxu0 0
    %889 = vmatmul.mubr.bf16.gmra.mrb[0].mxu0 %v648
    %v890 = vpop.f32.mrb[0].mxu0
    %v891 = vadd.f32 %v432, %v890
    %v892 = vpop.f32.mrb[0].mxu0
    %v893 = vadd.f32 %v436, %v892
    %v894 = vpop.f32.mrb[0].mxu0
    %v895 = vadd.f32 %v432, %v894
    %v896 = vpop.f32.mrb[0].mxu0
    %v897 = vadd.f32 %v436, %v896
    %898 = vmatprep.mubr.bf16.mxu0 0
    %899 = vmatmul.mubr.bf16.gmra.mrb[0].mxu0 %v651
    %v900 = vpop.f32.mrb[0].mxu0
    %v901 = vadd.f32 %v432, %v900
    %v902 = vpop.f32.mrb[0].mxu0
    %v903 = vadd.f32 %v436, %v902
    %v904 = vpop.f32.mrb[0].mxu0
    %v905 = vadd.f32 %v432, %v904
    %v906 = vpop.f32.mrb[0].mxu0
    %v907 = vadd.f32 %v436, %v906
    %908 = vmatprep.mubr.bf16.mxu0 0
    %909 = vmatmul.mubr.bf16.gmra.mrb[0].mxu0 %v654
    %v910 = vpop.f32.mrb[0].mxu0
    %v911 = vadd.f32 %v432, %v910
    %v912 = vpop.f32.mrb[0].mxu0
    %v913 = vadd.f32 %v436, %v912
    %v914 = vpop.f32.mrb[0].mxu0
    %v915 = vadd.f32 %v432, %v914
    %v916 = vpop.f32.mrb[0].mxu0
    %v917 = vadd.f32 %v436, %v916
    %918 = vdwg.mxu0
    %919 = vmatprep.subr.bf16.mxu0 %v576
    %920 = vmatpush1.bf16.msra.mxu0 %v575
    %921 = vmatprep.subr.bf16.mxu0 %v588
    %922 = vmatpush1.bf16.msra.mxu0 %v587
    %923 = vmatprep.subr.bf16.mxu0 %v673
    %924 = vmatpush1.bf16.msra.mxu0 %v670
    %925 = vmatprep.subr.bf16.mxu0 0
    %926 = vmatpush1.bf16.msra.mxu0 0
    %927 = vmatprep.subr.bf16.mxu0 0
    %928 = vmatpush1.bf16.msra.mxu0 0
    %929 = vmatprep.subr.bf16.mxu0 0
    %930 = vmatpush1.bf16.msra.mxu0 0
    %931 = vmatprep.subr.bf16.mxu0 0
    %932 = vmatpush1.bf16.msra.mxu0 0
    %933 = vmatprep.subr.bf16.mxu0 0
    %934 = vmatpush1.bf16.msra.mxu0 0
    %935 = vmatprep.subr.bf16.mxu0 0
    %936 = vmatpush1.bf16.msra.mxu0 0
    %937 = vmatprep.subr.bf16.mxu0 0
    %938 = vmatpush1.bf16.msra.mxu0 0
    %939 = vmatprep.subr.bf16.mxu0 0
    %940 = vmatpush1.bf16.msra.mxu0 0
    %941 = vmatprep.subr.bf16.mxu0 0
    %942 = vmatpush1.bf16.msra.mxu0 0
    %943 = vmatprep.subr.bf16.mxu0 0
    %944 = vmatpush1.bf16.msra.mxu0 0
    %945 = vmatprep.subr.bf16.mxu0 0
    %946 = vmatpush1.bf16.msra.mxu0 0
    %947 = vmatprep.subr.bf16.mxu0 0
    %948 = vmatpush1.bf16.msra.mxu0 0
    %949 = vmatprep.subr.bf16.mxu0 0
    %950 = vmatpush1.bf16.msra.mxu0 0
    %951 = vmatprep.mubr.bf16.mxu0 0
    %952 = vmatmul.mubr.bf16.gmra.mrb[0].mxu0 %v633
    %v953 = vpop.f32.mrb[0].mxu0
    %v954 = vadd.f32 %v440, %v953
    %v955 = vpop.f32.mrb[0].mxu0
    %v956 = vadd.f32 %v444, %v955
    %v957 = vpop.f32.mrb[0].mxu0
    %v958 = vadd.f32 %v440, %v957
    %v959 = vpop.f32.mrb[0].mxu0
    %v960 = vadd.f32 %v444, %v959
    %961 = vmatprep.mubr.bf16.mxu0 0
    %962 = vmatmul.mubr.bf16.gmra.mrb[0].mxu0 %v636
    %v963 = vpop.f32.mrb[0].mxu0
    %v964 = vadd.f32 %v440, %v963
    %v965 = vpop.f32.mrb[0].mxu0
    %v966 = vadd.f32 %v444, %v965
    %v967 = vpop.f32.mrb[0].mxu0
    %v968 = vadd.f32 %v440, %v967
    %v969 = vpop.f32.mrb[0].mxu0
    %v970 = vadd.f32 %v444, %v969
    %971 = vmatprep.mubr.bf16.mxu0 0
    %972 = vmatmul.mubr.bf16.gmra.mrb[0].mxu0 %v639
    %v973 = vpop.f32.mrb[0].mxu0
    %v974 = vadd.f32 %v440, %v973
    %v975 = vpop.f32.mrb[0].mxu0
    %v976 = vadd.f32 %v444, %v975
    %v977 = vpop.f32.mrb[0].mxu0
    %v978 = vadd.f32 %v440, %v977
    %v979 = vpop.f32.mrb[0].mxu0
    %v980 = vadd.f32 %v444, %v979
    %981 = vmatprep.mubr.bf16.mxu0 0
    %982 = vmatmul.mubr.bf16.gmra.mrb[0].mxu0 %v642
    %v983 = vpop.f32.mrb[0].mxu0
    %v984 = vadd.f32 %v440, %v983
    %v985 = vpop.f32.mrb[0].mxu0
    %v986 = vadd.f32 %v444, %v985
    %v987 = vpop.f32.mrb[0].mxu0
    %v988 = vadd.f32 %v440, %v987
    %v989 = vpop.f32.mrb[0].mxu0
    %v990 = vadd.f32 %v444, %v989
    %991 = vmatprep.mubr.bf16.mxu0 0
    %992 = vmatmul.mubr.bf16.gmra.mrb[0].mxu0 %v645
    %v993 = vpop.f32.mrb[0].mxu0
    %v994 = vadd.f32 %v440, %v993
    %v995 = vpop.f32.mrb[0].mxu0
    %v996 = vadd.f32 %v444, %v995
    %v997 = vpop.f32.mrb[0].mxu0
    %v998 = vadd.f32 %v440, %v997
    %v999 = vpop.f32.mrb[0].mxu0
    %v1000 = vadd.f32 %v444, %v999
    %1001 = vmatprep.mubr.bf16.mxu0 0
    %1002 = vmatmul.mubr.bf16.gmra.mrb[0].mxu0 %v648
    %v1003 = vpop.f32.mrb[0].mxu0
    %v1004 = vadd.f32 %v440, %v1003
    %v1005 = vpop.f32.mrb[0].mxu0
    %v1006 = vadd.f32 %v444, %v1005
    %v1007 = vpop.f32.mrb[0].mxu0
    %v1008 = vadd.f32 %v440, %v1007
    %v1009 = vpop.f32.mrb[0].mxu0
    %v1010 = vadd.f32 %v444, %v1009
    %1011 = vmatprep.mubr.bf16.mxu0 0
    %1012 = vmatmul.mubr.bf16.gmra.mrb[0].mxu0 %v651
    %v1013 = vpop.f32.mrb[0].mxu0
    %v1014 = vadd.f32 %v440, %v1013
    %v1015 = vpop.f32.mrb[0].mxu0
    %v1016 = vadd.f32 %v444, %v1015
    %v1017 = vpop.f32.mrb[0].mxu0
    %v1018 = vadd.f32 %v440, %v1017
    %v1019 = vpop.f32.mrb[0].mxu0
    %v1020 = vadd.f32 %v444, %v1019
    %1021 = vmatprep.mubr.bf16.mxu0 0
    %1022 = vmatmul.mubr.bf16.gmra.mrb[0].mxu0 %v654
    %v1023 = vpop.f32.mrb[0].mxu0
    %v1024 = vadd.f32 %v440, %v1023
    %v1025 = vpop.f32.mrb[0].mxu0
    %v1026 = vadd.f32 %v444, %v1025
    %v1027 = vpop.f32.mrb[0].mxu0
    %v1028 = vadd.f32 %v440, %v1027
    %v1029 = vpop.f32.mrb[0].mxu0
    %v1030 = vadd.f32 %v444, %v1029
    %1031 = vdwg.mxu0
    %1032 = vmatprep.subr.bf16.mxu0 %v578
    %1033 = vmatpush1.bf16.msra.mxu0 %v577
    %1034 = vmatprep.subr.bf16.mxu0 %v590
    %1035 = vmatpush1.bf16.msra.mxu0 %v589
    %1036 = vmatprep.subr.bf16.mxu0 %v679
    %1037 = vmatpush1.bf16.msra.mxu0 %v676
    %1038 = vmatprep.subr.bf16.mxu0 0
    %1039 = vmatpush1.bf16.msra.mxu0 0
    %1040 = vmatprep.subr.bf16.mxu0 0
    %1041 = vmatpush1.bf16.msra.mxu0 0
    %1042 = vmatprep.subr.bf16.mxu0 0
    %1043 = vmatpush1.bf16.msra.mxu0 0
    %1044 = vmatprep.subr.bf16.mxu0 0
    %1045 = vmatpush1.bf16.msra.mxu0 0
    %1046 = vmatprep.subr.bf16.mxu0 0
    %1047 = vmatpush1.bf16.msra.mxu0 0
    %1048 = vmatprep.subr.bf16.mxu0 0
    %1049 = vmatpush1.bf16.msra.mxu0 0
    %1050 = vmatprep.subr.bf16.mxu0 0
    %1051 = vmatpush1.bf16.msra.mxu0 0
    %1052 = vmatprep.subr.bf16.mxu0 0
    %1053 = vmatpush1.bf16.msra.mxu0 0
    %1054 = vmatprep.subr.bf16.mxu0 0
    %1055 = vmatpush1.bf16.msra.mxu0 0
    %1056 = vmatprep.subr.bf16.mxu0 0
    %1057 = vmatpush1.bf16.msra.mxu0 0
    %1058 = vmatprep.subr.bf16.mxu0 0
    %1059 = vmatpush1.bf16.msra.mxu0 0
    %1060 = vmatprep.subr.bf16.mxu0 0
    %1061 = vmatpush1.bf16.msra.mxu0 0
    %1062 = vmatprep.subr.bf16.mxu0 0
    %1063 = vmatpush1.bf16.msra.mxu0 0
    %1064 = vmatprep.mubr.bf16.mxu0 0
    %1065 = vmatmul.mubr.bf16.gmra.mrb[0].mxu0 %v633
    %v1066 = vpop.f32.mrb[0].mxu0
    %v1067 = vadd.f32 %v448, %v1066
    %v1068 = vpop.f32.mrb[0].mxu0
    %v1069 = vadd.f32 %v452, %v1068
    %v1070 = vpop.f32.mrb[0].mxu0
    %v1071 = vadd.f32 %v448, %v1070
    %v1072 = vpop.f32.mrb[0].mxu0
    %v1073 = vadd.f32 %v452, %v1072
    %1074 = vmatprep.mubr.bf16.mxu0 0
    %1075 = vmatmul.mubr.bf16.gmra.mrb[0].mxu0 %v636
    %v1076 = vpop.f32.mrb[0].mxu0
    %v1077 = vadd.f32 %v448, %v1076
    %v1078 = vpop.f32.mrb[0].mxu0
    %v1079 = vadd.f32 %v452, %v1078
    %v1080 = vpop.f32.mrb[0].mxu0
    %v1081 = vadd.f32 %v448, %v1080
    %v1082 = vpop.f32.mrb[0].mxu0
    %v1083 = vadd.f32 %v452, %v1082
    %1084 = vmatprep.mubr.bf16.mxu0 0
    %1085 = vmatmul.mubr.bf16.gmra.mrb[0].mxu0 %v639
    %v1086 = vpop.f32.mrb[0].mxu0
    %v1087 = vadd.f32 %v448, %v1086
    %v1088 = vpop.f32.mrb[0].mxu0
    %v1089 = vadd.f32 %v452, %v1088
    %v1090 = vpop.f32.mrb[0].mxu0
    %v1091 = vadd.f32 %v448, %v1090
    %v1092 = vpop.f32.mrb[0].mxu0
    %v1093 = vadd.f32 %v452, %v1092
    %1094 = vmatprep.mubr.bf16.mxu0 0
    %1095 = vmatmul.mubr.bf16.gmra.mrb[0].mxu0 %v642
    %v1096 = vpop.f32.mrb[0].mxu0
    %v1097 = vadd.f32 %v448, %v1096
    %v1098 = vpop.f32.mrb[0].mxu0
    %v1099 = vadd.f32 %v452, %v1098
    %v1100 = vpop.f32.mrb[0].mxu0
    %v1101 = vadd.f32 %v448, %v1100
    %v1102 = vpop.f32.mrb[0].mxu0
    %v1103 = vadd.f32 %v452, %v1102
    %1104 = vmatprep.mubr.bf16.mxu0 0
    %1105 = vmatmul.mubr.bf16.gmra.mrb[0].mxu0 %v645
    %v1106 = vpop.f32.mrb[0].mxu0
    %v1107 = vadd.f32 %v448, %v1106
    %v1108 = vpop.f32.mrb[0].mxu0
    %v1109 = vadd.f32 %v452, %v1108
    %v1110 = vpop.f32.mrb[0].mxu0
    %v1111 = vadd.f32 %v448, %v1110
    %v1112 = vpop.f32.mrb[0].mxu0
    %v1113 = vadd.f32 %v452, %v1112
    %1114 = vmatprep.mubr.bf16.mxu0 0
    %1115 = vmatmul.mubr.bf16.gmra.mrb[0].mxu0 %v648
    %v1116 = vpop.f32.mrb[0].mxu0
    %v1117 = vadd.f32 %v448, %v1116
    %v1118 = vpop.f32.mrb[0].mxu0
    %v1119 = vadd.f32 %v452, %v1118
    %v1120 = vpop.f32.mrb[0].mxu0
    %v1121 = vadd.f32 %v448, %v1120
    %v1122 = vpop.f32.mrb[0].mxu0
    %v1123 = vadd.f32 %v452, %v1122
    %1124 = vmatprep.mubr.bf16.mxu0 0
    %1125 = vmatmul.mubr.bf16.gmra.mrb[0].mxu0 %v651
    %v1126 = vpop.f32.mrb[0].mxu0
    %v1127 = vadd.f32 %v448, %v1126
    %v1128 = vpop.f32.mrb[0].mxu0
    %v1129 = vadd.f32 %v452, %v1128
    %v1130 = vpop.f32.mrb[0].mxu0
    %v1131 = vadd.f32 %v448, %v1130
    %v1132 = vpop.f32.mrb[0].mxu0
    %v1133 = vadd.f32 %v452, %v1132
    %1134 = vmatprep.mubr.bf16.mxu0 0
    %1135 = vmatmul.mubr.bf16.gmra.mrb[0].mxu0 %v654
    %v1136 = vpop.f32.mrb[0].mxu0
    %v1137 = vadd.f32 %v448, %v1136
    %v1138 = vpop.f32.mrb[0].mxu0
    %v1139 = vadd.f32 %v452, %v1138
    %v1140 = vpop.f32.mrb[0].mxu0
    %v1141 = vadd.f32 %v448, %v1140
    %v1142 = vpop.f32.mrb[0].mxu0
    %v1143 = vadd.f32 %v452, %v1142
    %1144 = vdwg.mxu0
    %1145 = vmatprep.subr.bf16.mxu0 %v580
    %1146 = vmatpush1.bf16.msra.mxu0 %v579
    %1147 = vmatprep.subr.bf16.mxu0 %v592
    %1148 = vmatpush1.bf16.msra.mxu0 %v591
    %1149 = vmatprep.subr.bf16.mxu0 %v685
    %1150 = vmatpush1.bf16.msra.mxu0 %v682
    %1151 = vmatprep.subr.bf16.mxu0 0
    %1152 = vmatpush1.bf16.msra.mxu0 0
    %1153 = vmatprep.subr.bf16.mxu0 0
    %1154 = vmatpush1.bf16.msra.mxu0 0
    %1155 = vmatprep.subr.bf16.mxu0 0
    %1156 = vmatpush1.bf16.msra.mxu0 0
    %1157 = vmatprep.subr.bf16.mxu0 0
    %1158 = vmatpush1.bf16.msra.mxu0 0
    %1159 = vmatprep.subr.bf16.mxu0 0
    %1160 = vmatpush1.bf16.msra.mxu0 0
    %1161 = vmatprep.subr.bf16.mxu0 0
    %1162 = vmatpush1.bf16.msra.mxu0 0
    %1163 = vmatprep.subr.bf16.mxu0 0
    %1164 = vmatpush1.bf16.msra.mxu0 0
    %1165 = vmatprep.subr.bf16.mxu0 0
    %1166 = vmatpush1.bf16.msra.mxu0 0
    %1167 = vmatprep.subr.bf16.mxu0 0
    %1168 = vmatpush1.bf16.msra.mxu0 0
    %1169 = vmatprep.subr.bf16.mxu0 0
    %1170 = vmatpush1.bf16.msra.mxu0 0
    %1171 = vmatprep.subr.bf16.mxu0 0
    %1172 = vmatpush1.bf16.msra.mxu0 0
    %1173 = vmatprep.subr.bf16.mxu0 0
    %1174 = vmatpush1.bf16.msra.mxu0 0
    %1175 = vmatprep.subr.bf16.mxu0 0
    %1176 = vmatpush1.bf16.msra.mxu0 0
    %1177 = vmatprep.mubr.bf16.mxu0 0
    %1178 = vmatmul.mubr.bf16.gmra.mrb[0].mxu0 %v633
    %v1179 = vpop.f32.mrb[0].mxu0
    %v1180 = vadd.f32 %v456, %v1179
    %v1181 = vpop.f32.mrb[0].mxu0
    %v1182 = vadd.f32 %v460, %v1181
    %v1183 = vpop.f32.mrb[0].mxu0
    %v1184 = vadd.f32 %v456, %v1183
    %v1185 = vpop.f32.mrb[0].mxu0
    %v1186 = vadd.f32 %v460, %v1185
    %1187 = vmatprep.mubr.bf16.mxu0 0
    %1188 = vmatmul.mubr.bf16.gmra.mrb[0].mxu0 %v636
    %v1189 = vpop.f32.mrb[0].mxu0
    %v1190 = vadd.f32 %v456, %v1189
    %v1191 = vpop.f32.mrb[0].mxu0
    %v1192 = vadd.f32 %v460, %v1191
    %v1193 = vpop.f32.mrb[0].mxu0
    %v1194 = vadd.f32 %v456, %v1193
    %v1195 = vpop.f32.mrb[0].mxu0
    %v1196 = vadd.f32 %v460, %v1195
    %1197 = vmatprep.mubr.bf16.mxu0 0
    %1198 = vmatmul.mubr.bf16.gmra.mrb[0].mxu0 %v639
    %v1199 = vpop.f32.mrb[0].mxu0
    %v1200 = vadd.f32 %v456, %v1199
    %v1201 = vpop.f32.mrb[0].mxu0
    %v1202 = vadd.f32 %v460, %v1201
    %v1203 = vpop.f32.mrb[0].mxu0
    %v1204 = vadd.f32 %v456, %v1203
    %v1205 = vpop.f32.mrb[0].mxu0
    %v1206 = vadd.f32 %v460, %v1205
    %1207 = vmatprep.mubr.bf16.mxu0 0
    %1208 = vmatmul.mubr.bf16.gmra.mrb[0].mxu0 %v642
    %v1209 = vpop.f32.mrb[0].mxu0
    %v1210 = vadd.f32 %v456, %v1209
    %v1211 = vpop.f32.mrb[0].mxu0
    %v1212 = vadd.f32 %v460, %v1211
    %v1213 = vpop.f32.mrb[0].mxu0
    %v1214 = vadd.f32 %v456, %v1213
    %v1215 = vpop.f32.mrb[0].mxu0
    %v1216 = vadd.f32 %v460, %v1215
    %1217 = vmatprep.mubr.bf16.mxu0 0
    %1218 = vmatmul.mubr.bf16.gmra.mrb[0].mxu0 %v645
    %v1219 = vpop.f32.mrb[0].mxu0
    %v1220 = vadd.f32 %v456, %v1219
    %v1221 = vpop.f32.mrb[0].mxu0
    %v1222 = vadd.f32 %v460, %v1221
    %v1223 = vpop.f32.mrb[0].mxu0
    %v1224 = vadd.f32 %v456, %v1223
    %v1225 = vpop.f32.mrb[0].mxu0
    %v1226 = vadd.f32 %v460, %v1225
    %1227 = vmatprep.mubr.bf16.mxu0 0
    %1228 = vmatmul.mubr.bf16.gmra.mrb[0].mxu0 %v648
    %v1229 = vpop.f32.mrb[0].mxu0
    %v1230 = vadd.f32 %v456, %v1229
    %v1231 = vpop.f32.mrb[0].mxu0
    %v1232 = vadd.f32 %v460, %v1231
    %v1233 = vpop.f32.mrb[0].mxu0
    %v1234 = vadd.f32 %v456, %v1233
    %v1235 = vpop.f32.mrb[0].mxu0
    %v1236 = vadd.f32 %v460, %v1235
    %1237 = vmatprep.mubr.bf16.mxu0 0
    %1238 = vmatmul.mubr.bf16.gmra.mrb[0].mxu0 %v651
    %v1239 = vpop.f32.mrb[0].mxu0
    %v1240 = vadd.f32 %v456, %v1239
    %v1241 = vpop.f32.mrb[0].mxu0
    %v1242 = vadd.f32 %v460, %v1241
    %v1243 = vpop.f32.mrb[0].mxu0
    %v1244 = vadd.f32 %v456, %v1243
    %v1245 = vpop.f32.mrb[0].mxu0
    %v1246 = vadd.f32 %v460, %v1245
    %1247 = vmatprep.mubr.bf16.mxu0 0
    %1248 = vmatmul.mubr.bf16.gmra.mrb[0].mxu0 %v654
    %v1249 = vpop.f32.mrb[0].mxu0
    %v1250 = vadd.f32 %v456, %v1249
    %v1251 = vpop.f32.mrb[0].mxu0
    %v1252 = vadd.f32 %v460, %v1251
    %v1253 = vpop.f32.mrb[0].mxu0
    %v1254 = vadd.f32 %v456, %v1253
    %v1255 = vpop.f32.mrb[0].mxu0
    %v1256 = vadd.f32 %v460, %v1255
    %1257 = vdwg.mxu0
    %1258 = vmatprep.subr.bf16.mxu0 %v582
    %1259 = vmatpush1.bf16.msra.mxu0 %v581
    %1260 = vmatprep.subr.bf16.mxu0 %v594
    %1261 = vmatpush1.bf16.msra.mxu0 %v593
    %1262 = vmatprep.subr.bf16.mxu0 %v691
    %1263 = vmatpush1.bf16.msra.mxu0 %v688
    %1264 = vmatprep.subr.bf16.mxu0 0
    %1265 = vmatpush1.bf16.msra.mxu0 0
    %1266 = vmatprep.subr.bf16.mxu0 0
    %1267 = vmatpush1.bf16.msra.mxu0 0
    %1268 = vmatprep.subr.bf16.mxu0 0
    %1269 = vmatpush1.bf16.msra.mxu0 0
    %1270 = vmatprep.subr.bf16.mxu0 0
    %1271 = vmatpush1.bf16.msra.mxu0 0
    %1272 = vmatprep.subr.bf16.mxu0 0
    %1273 = vmatpush1.bf16.msra.mxu0 0
    %1274 = vmatprep.subr.bf16.mxu0 0
    %1275 = vmatpush1.bf16.msra.mxu0 0
    %1276 = vmatprep.subr.bf16.mxu0 0
    %1277 = vmatpush1.bf16.msra.mxu0 0
    %1278 = vmatprep.subr.bf16.mxu0 0
    %1279 = vmatpush1.bf16.msra.mxu0 0
    %1280 = vmatprep.subr.bf16.mxu0 0
    %1281 = vmatpush1.bf16.msra.mxu0 0
    %1282 = vmatprep.subr.bf16.mxu0 0
    %1283 = vmatpush1.bf16.msra.mxu0 0
    %1284 = vmatprep.subr.bf16.mxu0 0
    %1285 = vmatpush1.bf16.msra.mxu0 0
    %1286 = vmatprep.subr.bf16.mxu0 0
    %1287 = vmatpush1.bf16.msra.mxu0 0
    %1288 = vmatprep.subr.bf16.mxu0 0
    %1289 = vmatpush1.bf16.msra.mxu0 0
    %1290 = vmatprep.mubr.bf16.mxu0 0
    %1291 = vmatmul.mubr.bf16.gmra.mrb[0].mxu0 %v633
    %v1292 = vpop.f32.mrb[0].mxu0
    %v1293 = vadd.f32 %v464, %v1292
    %v1294 = vpop.f32.mrb[0].mxu0
    %v1295 = vadd.f32 %v468, %v1294
    %v1296 = vpop.f32.mrb[0].mxu0
    %v1297 = vadd.f32 %v464, %v1296
    %v1298 = vpop.f32.mrb[0].mxu0
    %v1299 = vadd.f32 %v468, %v1298
    %1300 = vmatprep.mubr.bf16.mxu0 0
    %1301 = vmatmul.mubr.bf16.gmra.mrb[0].mxu0 %v636
    %v1302 = vpop.f32.mrb[0].mxu0
    %v1303 = vadd.f32 %v464, %v1302
    %v1304 = vpop.f32.mrb[0].mxu0
    %v1305 = vadd.f32 %v468, %v1304
    %v1306 = vpop.f32.mrb[0].mxu0
    %v1307 = vadd.f32 %v464, %v1306
    %v1308 = vpop.f32.mrb[0].mxu0
    %v1309 = vadd.f32 %v468, %v1308
    %1310 = vmatprep.mubr.bf16.mxu0 0
    %1311 = vmatmul.mubr.bf16.gmra.mrb[0].mxu0 %v639
    %v1312 = vpop.f32.mrb[0].mxu0
    %v1313 = vadd.f32 %v464, %v1312
    %v1314 = vpop.f32.mrb[0].mxu0
    %v1315 = vadd.f32 %v468, %v1314
    %v1316 = vpop.f32.mrb[0].mxu0
    %v1317 = vadd.f32 %v464, %v1316
    %v1318 = vpop.f32.mrb[0].mxu0
    %v1319 = vadd.f32 %v468, %v1318
    %1320 = vmatprep.mubr.bf16.mxu0 0
    %1321 = vmatmul.mubr.bf16.gmra.mrb[0].mxu0 %v642
    %v1322 = vpop.f32.mrb[0].mxu0
    %v1323 = vadd.f32 %v464, %v1322
    %v1324 = vpop.f32.mrb[0].mxu0
    %v1325 = vadd.f32 %v468, %v1324
    %v1326 = vpop.f32.mrb[0].mxu0
    %v1327 = vadd.f32 %v464, %v1326
    %v1328 = vpop.f32.mrb[0].mxu0
    %v1329 = vadd.f32 %v468, %v1328
    %1330 = vmatprep.mubr.bf16.mxu0 0
    %1331 = vmatmul.mubr.bf16.gmra.mrb[0].mxu0 %v645
    %v1332 = vpop.f32.mrb[0].mxu0
    %v1333 = vadd.f32 %v464, %v1332
    %v1334 = vpop.f32.mrb[0].mxu0
    %v1335 = vadd.f32 %v468, %v1334
    %v1336 = vpop.f32.mrb[0].mxu0
    %v1337 = vadd.f32 %v464, %v1336
    %v1338 = vpop.f32.mrb[0].mxu0
    %v1339 = vadd.f32 %v468, %v1338
    %1340 = vmatprep.mubr.bf16.mxu0 0
    %1341 = vmatmul.mubr.bf16.gmra.mrb[0].mxu0 %v648
    %v1342 = vpop.f32.mrb[0].mxu0
    %v1343 = vadd.f32 %v464, %v1342
    %v1344 = vpop.f32.mrb[0].mxu0
    %v1345 = vadd.f32 %v468, %v1344
    %v1346 = vpop.f32.mrb[0].mxu0
    %v1347 = vadd.f32 %v464, %v1346
    %v1348 = vpop.f32.mrb[0].mxu0
    %v1349 = vadd.f32 %v468, %v1348
    %1350 = vmatprep.mubr.bf16.mxu0 0
    %1351 = vmatmul.mubr.bf16.gmra.mrb[0].mxu0 %v651
    %v1352 = vpop.f32.mrb[0].mxu0
    %v1353 = vadd.f32 %v464, %v1352
    %v1354 = vpop.f32.mrb[0].mxu0
    %v1355 = vadd.f32 %v468, %v1354
    %v1356 = vpop.f32.mrb[0].mxu0
    %v1357 = vadd.f32 %v464, %v1356
    %v1358 = vpop.f32.mrb[0].mxu0
    %v1359 = vadd.f32 %v468, %v1358
    %1360 = vmatprep.mubr.bf16.mxu0 0
    %1361 = vmatmul.mubr.bf16.gmra.mrb[0].mxu0 %v654
    %v1362 = vpop.f32.mrb[0].mxu0
    %v1363 = vadd.f32 %v464, %v1362
    %v1364 = vpop.f32.mrb[0].mxu0
    %v1365 = vadd.f32 %v468, %v1364
    %v1366 = vpop.f32.mrb[0].mxu0
    %v1367 = vadd.f32 %v464, %v1366
    %v1368 = vpop.f32.mrb[0].mxu0
    %v1369 = vadd.f32 %v468, %v1368
    %1370 = vdwg.mxu0
    %v1371 = vxor.u32 %v728, 2147483648
    %v1372 = vxor.u32 %v730, 2147483648
    %v1373 = vxor.u32 %v841, 2147483648
    %v1374 = vxor.u32 %v843, 2147483648
    %v1375 = vxor.u32 %v954, 2147483648
    %v1376 = vxor.u32 %v956, 2147483648
    %v1377 = vxor.u32 %v1067, 2147483648
    %v1378 = vxor.u32 %v1069, 2147483648
    %v1379 = vxor.u32 %v1180, 2147483648
    %v1380 = vxor.u32 %v1182, 2147483648
    %v1381 = vxor.u32 %v1293, 2147483648
    %v1382 = vxor.u32 %v1295, 2147483648
    %v1383 = vxor.u32 %v732, 2147483648
    %v1384 = vxor.u32 %v734, 2147483648
    %v1385 = vxor.u32 %v845, 2147483648
    %v1386 = vxor.u32 %v847, 2147483648
    %v1387 = vxor.u32 %v958, 2147483648
    %v1388 = vxor.u32 %v960, 2147483648
    %v1389 = vxor.u32 %v1071, 2147483648
    %v1390 = vxor.u32 %v1073, 2147483648
    %v1391 = vxor.u32 %v1184, 2147483648
    %v1392 = vxor.u32 %v1186, 2147483648
    %v1393 = vxor.u32 %v1297, 2147483648
    %v1394 = vxor.u32 %v1299, 2147483648
    %v1395 = vxor.u32 %v738, 2147483648
    %v1396 = vxor.u32 %v740, 2147483648
    %v1397 = vxor.u32 %v851, 2147483648
    %v1398 = vxor.u32 %v853, 2147483648
    %v1399 = vxor.u32 %v964, 2147483648
    %v1400 = vxor.u32 %v966, 2147483648
    %v1401 = vxor.u32 %v1077, 2147483648
    %v1402 = vxor.u32 %v1079, 2147483648
    %v1403 = vxor.u32 %v1190, 2147483648
    %v1404 = vxor.u32 %v1192, 2147483648
    %v1405 = vxor.u32 %v1303, 2147483648
    %v1406 = vxor.u32 %v1305, 2147483648
    %v1407 = vxor.u32 %v742, 2147483648
    %v1408 = vxor.u32 %v744, 2147483648
    %v1409 = vxor.u32 %v855, 2147483648
    %v1410 = vxor.u32 %v857, 2147483648
    %v1411 = vxor.u32 %v968, 2147483648
    %v1412 = vxor.u32 %v970, 2147483648
    %v1413 = vxor.u32 %v1081, 2147483648
    %v1414 = vxor.u32 %v1083, 2147483648
    %v1415 = vxor.u32 %v1194, 2147483648
    %v1416 = vxor.u32 %v1196, 2147483648
    %v1417 = vxor.u32 %v1307, 2147483648
    %v1418 = vxor.u32 %v1309, 2147483648
    %v1419 = vxor.u32 %v748, 2147483648
    %v1420 = vxor.u32 %v750, 2147483648
    %v1421 = vxor.u32 %v861, 2147483648
    %v1422 = vxor.u32 %v863, 2147483648
    %v1423 = vxor.u32 %v974, 2147483648
    %v1424 = vxor.u32 %v976, 2147483648
    %v1425 = vxor.u32 %v1087, 2147483648
    %v1426 = vxor.u32 %v1089, 2147483648
    %v1427 = vxor.u32 %v1200, 2147483648
    %v1428 = vxor.u32 %v1202, 2147483648
    %v1429 = vxor.u32 %v1313, 2147483648
    %v1430 = vxor.u32 %v1315, 2147483648
    %v1431 = vxor.u32 %v752, 2147483648
    %v1432 = vxor.u32 %v754, 2147483648
    %v1433 = vxor.u32 %v865, 2147483648
    %v1434 = vxor.u32 %v867, 2147483648
    %v1435 = vxor.u32 %v978, 2147483648
    %v1436 = vxor.u32 %v980, 2147483648
    %v1437 = vxor.u32 %v1091, 2147483648
    %v1438 = vxor.u32 %v1093, 2147483648
    %v1439 = vxor.u32 %v1204, 2147483648
    %v1440 = vxor.u32 %v1206, 2147483648
    %v1441 = vxor.u32 %v1317, 2147483648
    %v1442 = vxor.u32 %v1319, 2147483648
    %v1443 = vxor.u32 %v758, 2147483648
    %v1444 = vxor.u32 %v760, 2147483648
    %v1445 = vxor.u32 %v871, 2147483648
    %v1446 = vxor.u32 %v873, 2147483648
    %v1447 = vxor.u32 %v984, 2147483648
    %v1448 = vxor.u32 %v986, 2147483648
    %v1449 = vxor.u32 %v1097, 2147483648
    %v1450 = vxor.u32 %v1099, 2147483648
    %v1451 = vxor.u32 %v1210, 2147483648
    %v1452 = vxor.u32 %v1212, 2147483648
    %v1453 = vxor.u32 %v1323, 2147483648
    %v1454 = vxor.u32 %v1325, 2147483648
    %v1455 = vxor.u32 %v762, 2147483648
    %v1456 = vxor.u32 %v764, 2147483648
    %v1457 = vxor.u32 %v875, 2147483648
    %v1458 = vxor.u32 %v877, 2147483648
    %v1459 = vxor.u32 %v988, 2147483648
    %v1460 = vxor.u32 %v990, 2147483648
    %v1461 = vxor.u32 %v1101, 2147483648
    %v1462 = vxor.u32 %v1103, 2147483648
    %v1463 = vxor.u32 %v1214, 2147483648
    %v1464 = vxor.u32 %v1216, 2147483648
    %v1465 = vxor.u32 %v1327, 2147483648
    %v1466 = vxor.u32 %v1329, 2147483648
    %v1467 = vxor.u32 %v768, 2147483648
    %v1468 = vxor.u32 %v770, 2147483648
    %v1469 = vxor.u32 %v881, 2147483648
    %v1470 = vxor.u32 %v883, 2147483648
    %v1471 = vxor.u32 %v994, 2147483648
    %v1472 = vxor.u32 %v996, 2147483648
    %v1473 = vxor.u32 %v1107, 2147483648
    %v1474 = vxor.u32 %v1109, 2147483648
    %v1475 = vxor.u32 %v1220, 2147483648
    %v1476 = vxor.u32 %v1222, 2147483648
    %v1477 = vxor.u32 %v1333, 2147483648
    %v1478 = vxor.u32 %v1335, 2147483648
    %v1479 = vxor.u32 %v772, 2147483648
    %v1480 = vxor.u32 %v774, 2147483648
    %v1481 = vxor.u32 %v885, 2147483648
    %v1482 = vxor.u32 %v887, 2147483648
    %v1483 = vxor.u32 %v998, 2147483648
    %v1484 = vxor.u32 %v1000, 2147483648
    %v1485 = vxor.u32 %v1111, 2147483648
    %v1486 = vxor.u32 %v1113, 2147483648
    %v1487 = vxor.u32 %v1224, 2147483648
    %v1488 = vxor.u32 %v1226, 2147483648
    %v1489 = vxor.u32 %v1337, 2147483648
    %v1490 = vxor.u32 %v1339, 2147483648
    %v1491 = vxor.u32 %v778, 2147483648
    %v1492 = vxor.u32 %v780, 2147483648
    %v1493 = vxor.u32 %v891, 2147483648
    %v1494 = vxor.u32 %v893, 2147483648
    %v1495 = vxor.u32 %v1004, 2147483648
    %v1496 = vxor.u32 %v1006, 2147483648
    %v1497 = vxor.u32 %v1117, 2147483648
    %v1498 = vxor.u32 %v1119, 2147483648
    %v1499 = vxor.u32 %v1230, 2147483648
    %v1500 = vxor.u32 %v1232, 2147483648
    %v1501 = vxor.u32 %v1343, 2147483648
    %v1502 = vxor.u32 %v1345, 2147483648
    %v1503 = vxor.u32 %v782, 2147483648
    %v1504 = vxor.u32 %v784, 2147483648
    %v1505 = vxor.u32 %v895, 2147483648
    %v1506 = vxor.u32 %v897, 2147483648
    %v1507 = vxor.u32 %v1008, 2147483648
    %v1508 = vxor.u32 %v1010, 2147483648
    %v1509 = vxor.u32 %v1121, 2147483648
    %v1510 = vxor.u32 %v1123, 2147483648
    %v1511 = vxor.u32 %v1234, 2147483648
    %v1512 = vxor.u32 %v1236, 2147483648
    %v1513 = vxor.u32 %v1347, 2147483648
    %v1514 = vxor.u32 %v1349, 2147483648
    %v1515 = vxor.u32 %v788, 2147483648
    %v1516 = vxor.u32 %v790, 2147483648
    %v1517 = vxor.u32 %v901, 2147483648
    %v1518 = vxor.u32 %v903, 2147483648
    %v1519 = vxor.u32 %v1014, 2147483648
    %v1520 = vxor.u32 %v1016, 2147483648
    %v1521 = vxor.u32 %v1127, 2147483648
    %v1522 = vxor.u32 %v1129, 2147483648
    %v1523 = vxor.u32 %v1240, 2147483648
    %v1524 = vxor.u32 %v1242, 2147483648
    %v1525 = vxor.u32 %v1353, 2147483648
    %v1526 = vxor.u32 %v1355, 2147483648
    %v1527 = vxor.u32 %v792, 2147483648
    %v1528 = vxor.u32 %v794, 2147483648
    %v1529 = vxor.u32 %v905, 2147483648
    %v1530 = vxor.u32 %v907, 2147483648
    %v1531 = vxor.u32 %v1018, 2147483648
    %v1532 = vxor.u32 %v1020, 2147483648
    %v1533 = vxor.u32 %v1131, 2147483648
    %v1534 = vxor.u32 %v1133, 2147483648
    %v1535 = vxor.u32 %v1244, 2147483648
    %v1536 = vxor.u32 %v1246, 2147483648
    %v1537 = vxor.u32 %v1357, 2147483648
    %v1538 = vxor.u32 %v1359, 2147483648
    %v1539 = vxor.u32 %v798, 2147483648
    %v1540 = vxor.u32 %v800, 2147483648
    %v1541 = vxor.u32 %v911, 2147483648
    %v1542 = vxor.u32 %v913, 2147483648
    %v1543 = vxor.u32 %v1024, 2147483648
    %v1544 = vxor.u32 %v1026, 2147483648
    %v1545 = vxor.u32 %v1137, 2147483648
    %v1546 = vxor.u32 %v1139, 2147483648
    %v1547 = vxor.u32 %v1250, 2147483648
    %v1548 = vxor.u32 %v1252, 2147483648
    %v1549 = vxor.u32 %v1363, 2147483648
    %v1550 = vxor.u32 %v1365, 2147483648
    %v1551 = vxor.u32 %v802, 2147483648
    %v1552 = vxor.u32 %v804, 2147483648
    %v1553 = vxor.u32 %v915, 2147483648
    %v1554 = vxor.u32 %v917, 2147483648
    %v1555 = vxor.u32 %v1028, 2147483648
    %v1556 = vxor.u32 %v1030, 2147483648
    %v1557 = vxor.u32 %v1141, 2147483648
    %v1558 = vxor.u32 %v1143, 2147483648
    %v1559 = vxor.u32 %v1254, 2147483648
    %v1560 = vxor.u32 %v1256, 2147483648
    %v1561 = vxor.u32 %v1367, 2147483648
    %v1562 = vxor.u32 %v1369, 2147483648
    %v1563 = vmul.f32 %v1371, 1.442695
    %v1564 = vpow.pop %v1563
    %v1565 = vmul.f32 %v1372, 1.442695
    %v1566 = vpow.pop %v1565
    %v1567 = vmul.f32 %v1373, 1.442695
    %v1568 = vpow.pop %v1567
    %v1569 = vmul.f32 %v1374, 1.442695
    %v1570 = vpow.pop %v1569
    %v1571 = vmul.f32 %v1375, 1.442695
    %v1572 = vpow.pop %v1571
    %v1573 = vmul.f32 %v1376, 1.442695
    %v1574 = vpow.pop %v1573
    %v1575 = vmul.f32 %v1377, 1.442695
    %v1576 = vpow.pop %v1575
    %v1577 = vmul.f32 %v1378, 1.442695
    %v1578 = vpow.pop %v1577
    %v1579 = vmul.f32 %v1379, 1.442695
    %v1580 = vpow.pop %v1579
    %v1581 = vmul.f32 %v1380, 1.442695
    %v1582 = vpow.pop %v1581
    %v1583 = vmul.f32 %v1381, 1.442695
    %v1584 = vpow.pop %v1583
    %v1585 = vmul.f32 %v1382, 1.442695
    %v1586 = vpow.pop %v1585
    %v1587 = vmul.f32 %v1383, 1.442695
    %v1588 = vpow.pop %v1587
    %v1589 = vmul.f32 %v1384, 1.442695
    %v1590 = vpow.pop %v1589
    %v1591 = vmul.f32 %v1385, 1.442695
    %v1592 = vpow.pop %v1591
    %v1593 = vmul.f32 %v1386, 1.442695
    %v1594 = vpow.pop %v1593
    %v1595 = vmul.f32 %v1387, 1.442695
    %v1596 = vpow.pop %v1595
    %v1597 = vmul.f32 %v1388, 1.442695
    %v1598 = vpow.pop %v1597
    %v1599 = vmul.f32 %v1389, 1.442695
    %v1600 = vpow.pop %v1599
    %v1601 = vmul.f32 %v1390, 1.442695
    %v1602 = vpow.pop %v1601
    %v1603 = vmul.f32 %v1391, 1.442695
    %v1604 = vpow.pop %v1603
    %v1605 = vmul.f32 %v1392, 1.442695
    %v1606 = vpow.pop %v1605
    %v1607 = vmul.f32 %v1393, 1.442695
    %v1608 = vpow.pop %v1607
    %v1609 = vmul.f32 %v1394, 1.442695
    %v1610 = vpow.pop %v1609
    %v1611 = vmul.f32 %v1395, 1.442695
    %v1612 = vpow.pop %v1611
    %v1613 = vmul.f32 %v1396, 1.442695
    %v1614 = vpow.pop %v1613
    %v1615 = vmul.f32 %v1397, 1.442695
    %v1616 = vpow.pop %v1615
    %v1617 = vmul.f32 %v1398, 1.442695
    %v1618 = vpow.pop %v1617
    %v1619 = vmul.f32 %v1399, 1.442695
    %v1620 = vpow.pop %v1619
    %v1621 = vmul.f32 %v1400, 1.442695
    %v1622 = vpow.pop %v1621
    %v1623 = vmul.f32 %v1401, 1.442695
    %v1624 = vpow.pop %v1623
    %v1625 = vmul.f32 %v1402, 1.442695
    %v1626 = vpow.pop %v1625
    %v1627 = vmul.f32 %v1403, 1.442695
    %v1628 = vpow.pop %v1627
    %v1629 = vmul.f32 %v1404, 1.442695
    %v1630 = vpow.pop %v1629
    %v1631 = vmul.f32 %v1405, 1.442695
    %v1632 = vpow.pop %v1631
    %v1633 = vmul.f32 %v1406, 1.442695
    %v1634 = vpow.pop %v1633
    %v1635 = vmul.f32 %v1407, 1.442695
    %v1636 = vpow.pop %v1635
    %v1637 = vmul.f32 %v1408, 1.442695
    %v1638 = vpow.pop %v1637
    %v1639 = vmul.f32 %v1409, 1.442695
    %v1640 = vpow.pop %v1639
    %v1641 = vmul.f32 %v1410, 1.442695
    %v1642 = vpow.pop %v1641
    %v1643 = vmul.f32 %v1411, 1.442695
    %v1644 = vpow.pop %v1643
    %v1645 = vmul.f32 %v1412, 1.442695
    %v1646 = vpow.pop %v1645
    %v1647 = vmul.f32 %v1413, 1.442695
    %v1648 = vpow.pop %v1647
    %v1649 = vmul.f32 %v1414, 1.442695
    %v1650 = vpow.pop %v1649
    %v1651 = vmul.f32 %v1415, 1.442695
    %v1652 = vpow.pop %v1651
    %v1653 = vmul.f32 %v1416, 1.442695
    %v1654 = vpow.pop %v1653
    %v1655 = vmul.f32 %v1417, 1.442695
    %v1656 = vpow.pop %v1655
    %v1657 = vmul.f32 %v1418, 1.442695
    %v1658 = vpow.pop %v1657
    %v1659 = vmul.f32 %v1419, 1.442695
    %v1660 = vpow.pop %v1659
    %v1661 = vmul.f32 %v1420, 1.442695
    %v1662 = vpow.pop %v1661
    %v1663 = vmul.f32 %v1421, 1.442695
    %v1664 = vpow.pop %v1663
    %v1665 = vmul.f32 %v1422, 1.442695
    %v1666 = vpow.pop %v1665
    %v1667 = vmul.f32 %v1423, 1.442695
    %v1668 = vpow.pop %v1667
    %v1669 = vmul.f32 %v1424, 1.442695
    %v1670 = vpow.pop %v1669
    %v1671 = vmul.f32 %v1425, 1.442695
    %v1672 = vpow.pop %v1671
    %v1673 = vmul.f32 %v1426, 1.442695
    %v1674 = vpow.pop %v1673
    %v1675 = vmul.f32 %v1427, 1.442695
    %v1676 = vpow.pop %v1675
    %v1677 = vmul.f32 %v1428, 1.442695
    %v1678 = vpow.pop %v1677
    %v1679 = vmul.f32 %v1429, 1.442695
    %v1680 = vpow.pop %v1679
    %v1681 = vmul.f32 %v1430, 1.442695
    %v1682 = vpow.pop %v1681
    %v1683 = vmul.f32 %v1431, 1.442695
    %v1684 = vpow.pop %v1683
    %v1685 = vmul.f32 %v1432, 1.442695
    %v1686 = vpow.pop %v1685
    %v1687 = vmul.f32 %v1433, 1.442695
    %v1688 = vpow.pop %v1687
    %v1689 = vmul.f32 %v1434, 1.442695
    %v1690 = vpow.pop %v1689
    %v1691 = vmul.f32 %v1435, 1.442695
    %v1692 = vpow.pop %v1691
    %v1693 = vmul.f32 %v1436, 1.442695
    %v1694 = vpow.pop %v1693
    %v1695 = vmul.f32 %v1437, 1.442695
    %v1696 = vpow.pop %v1695
    %v1697 = vmul.f32 %v1438, 1.442695
    %v1698 = vpow.pop %v1697
    %v1699 = vmul.f32 %v1439, 1.442695
    %v1700 = vpow.pop %v1699
    %v1701 = vmul.f32 %v1440, 1.442695
    %v1702 = vpow.pop %v1701
    %v1703 = vmul.f32 %v1441, 1.442695
    %v1704 = vpow.pop %v1703
    %v1705 = vmul.f32 %v1442, 1.442695
    %v1706 = vpow.pop %v1705
    %v1707 = vmul.f32 %v1443, 1.442695
    %v1708 = vpow.pop %v1707
    %v1709 = vmul.f32 %v1444, 1.442695
    %v1710 = vpow.pop %v1709
    %v1711 = vmul.f32 %v1445, 1.442695
    %v1712 = vpow.pop %v1711
    %v1713 = vmul.f32 %v1446, 1.442695
    %v1714 = vpow.pop %v1713
    %v1715 = vmul.f32 %v1447, 1.442695
    %v1716 = vpow.pop %v1715
    %v1717 = vmul.f32 %v1448, 1.442695
    %v1718 = vpow.pop %v1717
    %v1719 = vmul.f32 %v1449, 1.442695
    %v1720 = vpow.pop %v1719
    %v1721 = vmul.f32 %v1450, 1.442695
    %v1722 = vpow.pop %v1721
    %v1723 = vmul.f32 %v1451, 1.442695
    %v1724 = vpow.pop %v1723
    %v1725 = vmul.f32 %v1452, 1.442695
    %v1726 = vpow.pop %v1725
    %v1727 = vmul.f32 %v1453, 1.442695
    %v1728 = vpow.pop %v1727
    %v1729 = vmul.f32 %v1454, 1.442695
    %v1730 = vpow.pop %v1729
    %v1731 = vmul.f32 %v1455, 1.442695
    %v1732 = vpow.pop %v1731
    %v1733 = vmul.f32 %v1456, 1.442695
    %v1734 = vpow.pop %v1733
    %v1735 = vmul.f32 %v1457, 1.442695
    %v1736 = vpow.pop %v1735
    %v1737 = vmul.f32 %v1458, 1.442695
    %v1738 = vpow.pop %v1737
    %v1739 = vmul.f32 %v1459, 1.442695
    %v1740 = vpow.pop %v1739
    %v1741 = vmul.f32 %v1460, 1.442695
    %v1742 = vpow.pop %v1741
    %v1743 = vmul.f32 %v1461, 1.442695
    %v1744 = vpow.pop %v1743
    %v1745 = vmul.f32 %v1462, 1.442695
    %v1746 = vpow.pop %v1745
    %v1747 = vmul.f32 %v1463, 1.442695
    %v1748 = vpow.pop %v1747
    %v1749 = vmul.f32 %v1464, 1.442695
    %v1750 = vpow.pop %v1749
    %v1751 = vmul.f32 %v1465, 1.442695
    %v1752 = vpow.pop %v1751
    %v1753 = vmul.f32 %v1466, 1.442695
    %v1754 = vpow.pop %v1753
    %v1755 = vmul.f32 %v1467, 1.442695
    %v1756 = vpow.pop %v1755
    %v1757 = vmul.f32 %v1468, 1.442695
    %v1758 = vpow.pop %v1757
    %v1759 = vmul.f32 %v1469, 1.442695
    %v1760 = vpow.pop %v1759
    %v1761 = vmul.f32 %v1470, 1.442695
    %v1762 = vpow.pop %v1761
    %v1763 = vmul.f32 %v1471, 1.442695
    %v1764 = vpow.pop %v1763
    %v1765 = vmul.f32 %v1472, 1.442695
    %v1766 = vpow.pop %v1765
    %v1767 = vmul.f32 %v1473, 1.442695
    %v1768 = vpow.pop %v1767
    %v1769 = vmul.f32 %v1474, 1.442695
    %v1770 = vpow.pop %v1769
    %v1771 = vmul.f32 %v1475, 1.442695
    %v1772 = vpow.pop %v1771
    %v1773 = vmul.f32 %v1476, 1.442695
    %v1774 = vpow.pop %v1773
    %v1775 = vmul.f32 %v1477, 1.442695
    %v1776 = vpow.pop %v1775
    %v1777 = vmul.f32 %v1478, 1.442695
    %v1778 = vpow.pop %v1777
    %v1779 = vmul.f32 %v1479, 1.442695
    %v1780 = vpow.pop %v1779
    %v1781 = vmul.f32 %v1480, 1.442695
    %v1782 = vpow.pop %v1781
    %v1783 = vmul.f32 %v1481, 1.442695
    %v1784 = vpow.pop %v1783
    %v1785 = vmul.f32 %v1482, 1.442695
    %v1786 = vpow.pop %v1785
    %v1787 = vmul.f32 %v1483, 1.442695
    %v1788 = vpow.pop %v1787
    %v1789 = vmul.f32 %v1484, 1.442695
    %v1790 = vpow.pop %v1789
    %v1791 = vmul.f32 %v1485, 1.442695
    %v1792 = vpow.pop %v1791
    %v1793 = vmul.f32 %v1486, 1.442695
    %v1794 = vpow.pop %v1793
    %v1795 = vmul.f32 %v1487, 1.442695
    %v1796 = vpow.pop %v1795
    %v1797 = vmul.f32 %v1488, 1.442695
    %v1798 = vpow.pop %v1797
    %v1799 = vmul.f32 %v1489, 1.442695
    %v1800 = vpow.pop %v1799
    %v1801 = vmul.f32 %v1490, 1.442695
    %v1802 = vpow.pop %v1801
    %v1803 = vmul.f32 %v1491, 1.442695
    %v1804 = vpow.pop %v1803
    %v1805 = vmul.f32 %v1492, 1.442695
    %v1806 = vpow.pop %v1805
    %v1807 = vmul.f32 %v1493, 1.442695
    %v1808 = vpow.pop %v1807
    %v1809 = vmul.f32 %v1494, 1.442695
    %v1810 = vpow.pop %v1809
    %v1811 = vmul.f32 %v1495, 1.442695
    %v1812 = vpow.pop %v1811
    %v1813 = vmul.f32 %v1496, 1.442695
    %v1814 = vpow.pop %v1813
    %v1815 = vmul.f32 %v1497, 1.442695
    %v1816 = vpow.pop %v1815
    %v1817 = vmul.f32 %v1498, 1.442695
    %v1818 = vpow.pop %v1817
    %v1819 = vmul.f32 %v1499, 1.442695
    %v1820 = vpow.pop %v1819
    %v1821 = vmul.f32 %v1500, 1.442695
    %v1822 = vpow.pop %v1821
    %v1823 = vmul.f32 %v1501, 1.442695
    %v1824 = vpow.pop %v1823
    %v1825 = vmul.f32 %v1502, 1.442695
    %v1826 = vpow.pop %v1825
    %v1827 = vmul.f32 %v1503, 1.442695
    %v1828 = vpow.pop %v1827
    %v1829 = vmul.f32 %v1504, 1.442695
    %v1830 = vpow.pop %v1829
    %v1831 = vmul.f32 %v1505, 1.442695
    %v1832 = vpow.pop %v1831
    %v1833 = vmul.f32 %v1506, 1.442695
    %v1834 = vpow.pop %v1833
    %v1835 = vmul.f32 %v1507, 1.442695
    %v1836 = vpow.pop %v1835
    %v1837 = vmul.f32 %v1508, 1.442695
    %v1838 = vpow.pop %v1837
    %v1839 = vmul.f32 %v1509, 1.442695
    %v1840 = vpow.pop %v1839
    %v1841 = vmul.f32 %v1510, 1.442695
    %v1842 = vpow.pop %v1841
    %v1843 = vmul.f32 %v1511, 1.442695
    %v1844 = vpow.pop %v1843
    %v1845 = vmul.f32 %v1512, 1.442695
    %v1846 = vpow.pop %v1845
    %v1847 = vmul.f32 %v1513, 1.442695
    %v1848 = vpow.pop %v1847
    %v1849 = vmul.f32 %v1514, 1.442695
    %v1850 = vpow.pop %v1849
    %v1851 = vmul.f32 %v1515, 1.442695
    %v1852 = vpow.pop %v1851
    %v1853 = vmul.f32 %v1516, 1.442695
    %v1854 = vpow.pop %v1853
    %v1855 = vmul.f32 %v1517, 1.442695
    %v1856 = vpow.pop %v1855
    %v1857 = vmul.f32 %v1518, 1.442695
    %v1858 = vpow.pop %v1857
    %v1859 = vmul.f32 %v1519, 1.442695
    %v1860 = vpow.pop %v1859
    %v1861 = vmul.f32 %v1520, 1.442695
    %v1862 = vpow.pop %v1861
    %v1863 = vmul.f32 %v1521, 1.442695
    %v1864 = vpow.pop %v1863
    %v1865 = vmul.f32 %v1522, 1.442695
    %v1866 = vpow.pop %v1865
    %v1867 = vmul.f32 %v1523, 1.442695
    %v1868 = vpow.pop %v1867
    %v1869 = vmul.f32 %v1524, 1.442695
    %v1870 = vpow.pop %v1869
    %v1871 = vmul.f32 %v1525, 1.442695
    %v1872 = vpow.pop %v1871
    %v1873 = vmul.f32 %v1526, 1.442695
    %v1874 = vpow.pop %v1873
    %v1875 = vmul.f32 %v1527, 1.442695
    %v1876 = vpow.pop %v1875
    %v1877 = vmul.f32 %v1528, 1.442695
    %v1878 = vpow.pop %v1877
    %v1879 = vmul.f32 %v1529, 1.442695
    %v1880 = vpow.pop %v1879
    %v1881 = vmul.f32 %v1530, 1.442695
    %v1882 = vpow.pop %v1881
    %v1883 = vmul.f32 %v1531, 1.442695
    %v1884 = vpow.pop %v1883
    %v1885 = vmul.f32 %v1532, 1.442695
    %v1886 = vpow.pop %v1885
    %v1887 = vmul.f32 %v1533, 1.442695
    %v1888 = vpow.pop %v1887
    %v1889 = vmul.f32 %v1534, 1.442695
    %v1890 = vpow.pop %v1889
    %v1891 = vmul.f32 %v1535, 1.442695
    %v1892 = vpow.pop %v1891
    %v1893 = vmul.f32 %v1536, 1.442695
    %v1894 = vpow.pop %v1893
    %v1895 = vmul.f32 %v1537, 1.442695
    %v1896 = vpow.pop %v1895
    %v1897 = vmul.f32 %v1538, 1.442695
    %v1898 = vpow.pop %v1897
    %v1899 = vmul.f32 %v1539, 1.442695
    %v1900 = vpow.pop %v1899
    %v1901 = vmul.f32 %v1540, 1.442695
    %v1902 = vpow.pop %v1901
    %v1903 = vmul.f32 %v1541, 1.442695
    %v1904 = vpow.pop %v1903
    %v1905 = vmul.f32 %v1542, 1.442695
    %v1906 = vpow.pop %v1905
    %v1907 = vmul.f32 %v1543, 1.442695
    %v1908 = vpow.pop %v1907
    %v1909 = vmul.f32 %v1544, 1.442695
    %v1910 = vpow.pop %v1909
    %v1911 = vmul.f32 %v1545, 1.442695
    %v1912 = vpow.pop %v1911
    %v1913 = vmul.f32 %v1546, 1.442695
    %v1914 = vpow.pop %v1913
    %v1915 = vmul.f32 %v1547, 1.442695
    %v1916 = vpow.pop %v1915
    %v1917 = vmul.f32 %v1548, 1.442695
    %v1918 = vpow.pop %v1917
    %v1919 = vmul.f32 %v1549, 1.442695
    %v1920 = vpow.pop %v1919
    %v1921 = vmul.f32 %v1550, 1.442695
    %v1922 = vpow.pop %v1921
    %v1923 = vmul.f32 %v1551, 1.442695
    %v1924 = vpow.pop %v1923
    %v1925 = vmul.f32 %v1552, 1.442695
    %v1926 = vpow.pop %v1925
    %v1927 = vmul.f32 %v1553, 1.442695
    %v1928 = vpow.pop %v1927
    %v1929 = vmul.f32 %v1554, 1.442695
    %v1930 = vpow.pop %v1929
    %v1931 = vmul.f32 %v1555, 1.442695
    %v1932 = vpow.pop %v1931
    %v1933 = vmul.f32 %v1556, 1.442695
    %v1934 = vpow.pop %v1933
    %v1935 = vmul.f32 %v1557, 1.442695
    %v1936 = vpow.pop %v1935
    %v1937 = vmul.f32 %v1558, 1.442695
    %v1938 = vpow.pop %v1937
    %v1939 = vmul.f32 %v1559, 1.442695
    %v1940 = vpow.pop %v1939
    %v1941 = vmul.f32 %v1560, 1.442695
    %v1942 = vpow.pop %v1941
    %v1943 = vmul.f32 %v1561, 1.442695
    %v1944 = vpow.pop %v1943
    %v1945 = vmul.f32 %v1562, 1.442695
    %v1946 = vpow.pop %v1945
    %v1947 = vadd.f32 %v1564, 1.0
    %v1948 = vadd.f32 %v1566, 1.0
    %v1949 = vadd.f32 %v1568, 1.0
    %v1950 = vadd.f32 %v1570, 1.0
    %v1951 = vadd.f32 %v1572, 1.0
    %v1952 = vadd.f32 %v1574, 1.0
    %v1953 = vadd.f32 %v1576, 1.0
    %v1954 = vadd.f32 %v1578, 1.0
    %v1955 = vadd.f32 %v1580, 1.0
    %v1956 = vadd.f32 %v1582, 1.0
    %v1957 = vadd.f32 %v1584, 1.0
    %v1958 = vadd.f32 %v1586, 1.0
    %v1959 = vadd.f32 %v1588, 1.0
    %v1960 = vadd.f32 %v1590, 1.0
    %v1961 = vadd.f32 %v1592, 1.0
    %v1962 = vadd.f32 %v1594, 1.0
    %v1963 = vadd.f32 %v1596, 1.0
    %v1964 = vadd.f32 %v1598, 1.0
    %v1965 = vadd.f32 %v1600, 1.0
    %v1966 = vadd.f32 %v1602, 1.0
    %v1967 = vadd.f32 %v1604, 1.0
    %v1968 = vadd.f32 %v1606, 1.0
    %v1969 = vadd.f32 %v1608, 1.0
    %v1970 = vadd.f32 %v1610, 1.0
    %v1971 = vadd.f32 %v1612, 1.0
    %v1972 = vadd.f32 %v1614, 1.0
    %v1973 = vadd.f32 %v1616, 1.0
    %v1974 = vadd.f32 %v1618, 1.0
    %v1975 = vadd.f32 %v1620, 1.0
    %v1976 = vadd.f32 %v1622, 1.0
    %v1977 = vadd.f32 %v1624, 1.0
    %v1978 = vadd.f32 %v1626, 1.0
    %v1979 = vadd.f32 %v1628, 1.0
    %v1980 = vadd.f32 %v1630, 1.0
    %v1981 = vadd.f32 %v1632, 1.0
    %v1982 = vadd.f32 %v1634, 1.0
    %v1983 = vadd.f32 %v1636, 1.0
    %v1984 = vadd.f32 %v1638, 1.0
    %v1985 = vadd.f32 %v1640, 1.0
    %v1986 = vadd.f32 %v1642, 1.0
    %v1987 = vadd.f32 %v1644, 1.0
    %v1988 = vadd.f32 %v1646, 1.0
    %v1989 = vadd.f32 %v1648, 1.0
    %v1990 = vadd.f32 %v1650, 1.0
    %v1991 = vadd.f32 %v1652, 1.0
    %v1992 = vadd.f32 %v1654, 1.0
    %v1993 = vadd.f32 %v1656, 1.0
    %v1994 = vadd.f32 %v1658, 1.0
    %v1995 = vadd.f32 %v1660, 1.0
    %v1996 = vadd.f32 %v1662, 1.0
    %v1997 = vadd.f32 %v1664, 1.0
    %v1998 = vadd.f32 %v1666, 1.0
    %v1999 = vadd.f32 %v1668, 1.0
    %v2000 = vadd.f32 %v1670, 1.0
    %v2001 = vadd.f32 %v1672, 1.0
    %v2002 = vadd.f32 %v1674, 1.0
    %v2003 = vadd.f32 %v1676, 1.0
    %v2004 = vadd.f32 %v1678, 1.0
    %v2005 = vadd.f32 %v1680, 1.0
    %v2006 = vadd.f32 %v1682, 1.0
    %v2007 = vadd.f32 %v1684, 1.0
    %v2008 = vadd.f32 %v1686, 1.0
    %v2009 = vadd.f32 %v1688, 1.0
    %v2010 = vadd.f32 %v1690, 1.0
    %v2011 = vadd.f32 %v1692, 1.0
    %v2012 = vadd.f32 %v1694, 1.0
    %v2013 = vadd.f32 %v1696, 1.0
    %v2014 = vadd.f32 %v1698, 1.0
    %v2015 = vadd.f32 %v1700, 1.0
    %v2016 = vadd.f32 %v1702, 1.0
    %v2017 = vadd.f32 %v1704, 1.0
    %v2018 = vadd.f32 %v1706, 1.0
    %v2019 = vadd.f32 %v1708, 1.0
    %v2020 = vadd.f32 %v1710, 1.0
    %v2021 = vadd.f32 %v1712, 1.0
    %v2022 = vadd.f32 %v1714, 1.0
    %v2023 = vadd.f32 %v1716, 1.0
    %v2024 = vadd.f32 %v1718, 1.0
    %v2025 = vadd.f32 %v1720, 1.0
    %v2026 = vadd.f32 %v1722, 1.0
    %v2027 = vadd.f32 %v1724, 1.0
    %v2028 = vadd.f32 %v1726, 1.0
    %v2029 = vadd.f32 %v1728, 1.0
    %v2030 = vadd.f32 %v1730, 1.0
    %v2031 = vadd.f32 %v1732, 1.0
    %v2032 = vadd.f32 %v1734, 1.0
    %v2033 = vadd.f32 %v1736, 1.0
    %v2034 = vadd.f32 %v1738, 1.0
    %v2035 = vadd.f32 %v1740, 1.0
    %v2036 = vadd.f32 %v1742, 1.0
    %v2037 = vadd.f32 %v1744, 1.0
    %v2038 = vadd.f32 %v1746, 1.0
    %v2039 = vadd.f32 %v1748, 1.0
    %v2040 = vadd.f32 %v1750, 1.0
    %v2041 = vadd.f32 %v1752, 1.0
    %v2042 = vadd.f32 %v1754, 1.0
    %v2043 = vadd.f32 %v1756, 1.0
    %v2044 = vadd.f32 %v1758, 1.0
    %v2045 = vadd.f32 %v1760, 1.0
    %v2046 = vadd.f32 %v1762, 1.0
    %v2047 = vadd.f32 %v1764, 1.0
    %v2048 = vadd.f32 %v1766, 1.0
    %v2049 = vadd.f32 %v1768, 1.0
    %v2050 = vadd.f32 %v1770, 1.0
    %v2051 = vadd.f32 %v1772, 1.0
    %v2052 = vadd.f32 %v1774, 1.0
    %v2053 = vadd.f32 %v1776, 1.0
    %v2054 = vadd.f32 %v1778, 1.0
    %v2055 = vadd.f32 %v1780, 1.0
    %v2056 = vadd.f32 %v1782, 1.0
    %v2057 = vadd.f32 %v1784, 1.0
    %v2058 = vadd.f32 %v1786, 1.0
    %v2059 = vadd.f32 %v1788, 1.0
    %v2060 = vadd.f32 %v1790, 1.0
    %v2061 = vadd.f32 %v1792, 1.0
    %v2062 = vadd.f32 %v1794, 1.0
    %v2063 = vadd.f32 %v1796, 1.0
    %v2064 = vadd.f32 %v1798, 1.0
    %v2065 = vadd.f32 %v1800, 1.0
    %v2066 = vadd.f32 %v1802, 1.0
    %v2067 = vadd.f32 %v1804, 1.0
    %v2068 = vadd.f32 %v1806, 1.0
    %v2069 = vadd.f32 %v1808, 1.0
    %v2070 = vadd.f32 %v1810, 1.0
    %v2071 = vadd.f32 %v1812, 1.0
    %v2072 = vadd.f32 %v1814, 1.0
    %v2073 = vadd.f32 %v1816, 1.0
    %v2074 = vadd.f32 %v1818, 1.0
    %v2075 = vadd.f32 %v1820, 1.0
    %v2076 = vadd.f32 %v1822, 1.0
    %v2077 = vadd.f32 %v1824, 1.0
    %v2078 = vadd.f32 %v1826, 1.0
    %v2079 = vadd.f32 %v1828, 1.0
    %v2080 = vadd.f32 %v1830, 1.0
    %v2081 = vadd.f32 %v1832, 1.0
    %v2082 = vadd.f32 %v1834, 1.0
    %v2083 = vadd.f32 %v1836, 1.0
    %v2084 = vadd.f32 %v1838, 1.0
    %v2085 = vadd.f32 %v1840, 1.0
    %v2086 = vadd.f32 %v1842, 1.0
    %v2087 = vadd.f32 %v1844, 1.0
    %v2088 = vadd.f32 %v1846, 1.0
    %v2089 = vadd.f32 %v1848, 1.0
    %v2090 = vadd.f32 %v1850, 1.0
    %v2091 = vadd.f32 %v1852, 1.0
    %v2092 = vadd.f32 %v1854, 1.0
    %v2093 = vadd.f32 %v1856, 1.0
    %v2094 = vadd.f32 %v1858, 1.0
    %v2095 = vadd.f32 %v1860, 1.0
    %v2096 = vadd.f32 %v1862, 1.0
    %v2097 = vadd.f32 %v1864, 1.0
    %v2098 = vadd.f32 %v1866, 1.0
    %v2099 = vadd.f32 %v1868, 1.0
    %v2100 = vadd.f32 %v1870, 1.0
    %v2101 = vadd.f32 %v1872, 1.0
    %v2102 = vadd.f32 %v1874, 1.0
    %v2103 = vadd.f32 %v1876, 1.0
    %v2104 = vadd.f32 %v1878, 1.0
    %v2105 = vadd.f32 %v1880, 1.0
    %v2106 = vadd.f32 %v1882, 1.0
    %v2107 = vadd.f32 %v1884, 1.0
    %v2108 = vadd.f32 %v1886, 1.0
    %v2109 = vadd.f32 %v1888, 1.0
    %v2110 = vadd.f32 %v1890, 1.0
    %v2111 = vadd.f32 %v1892, 1.0
    %v2112 = vadd.f32 %v1894, 1.0
    %v2113 = vadd.f32 %v1896, 1.0
    %v2114 = vadd.f32 %v1898, 1.0
    %v2115 = vadd.f32 %v1900, 1.0
    %v2116 = vadd.f32 %v1902, 1.0
    %v2117 = vadd.f32 %v1904, 1.0
    %v2118 = vadd.f32 %v1906, 1.0
    %v2119 = vadd.f32 %v1908, 1.0
    %v2120 = vadd.f32 %v1910, 1.0
    %v2121 = vadd.f32 %v1912, 1.0
    %v2122 = vadd.f32 %v1914, 1.0
    %v2123 = vadd.f32 %v1916, 1.0
    %v2124 = vadd.f32 %v1918, 1.0
    %v2125 = vadd.f32 %v1920, 1.0
    %v2126 = vadd.f32 %v1922, 1.0
    %v2127 = vadd.f32 %v1924, 1.0
    %v2128 = vadd.f32 %v1926, 1.0
    %v2129 = vadd.f32 %v1928, 1.0
    %v2130 = vadd.f32 %v1930, 1.0
    %v2131 = vadd.f32 %v1932, 1.0
    %v2132 = vadd.f32 %v1934, 1.0
    %v2133 = vadd.f32 %v1936, 1.0
    %v2134 = vadd.f32 %v1938, 1.0
    %v2135 = vadd.f32 %v1940, 1.0
    %v2136 = vadd.f32 %v1942, 1.0
    %v2137 = vadd.f32 %v1944, 1.0
    %v2138 = vadd.f32 %v1946, 1.0
    %v2139 = vrcp.pop %v1947
    %v2140 = vmul.f32 1.0, %v2139
    %v2141 = vrcp.pop %v1948
    %v2142 = vmul.f32 1.0, %v2141
    %v2143 = vrcp.pop %v1949
    %v2144 = vmul.f32 1.0, %v2143
    %v2145 = vrcp.pop %v1950
    %v2146 = vmul.f32 1.0, %v2145
    %v2147 = vrcp.pop %v1951
    %v2148 = vmul.f32 1.0, %v2147
    %v2149 = vrcp.pop %v1952
    %v2150 = vmul.f32 1.0, %v2149
    %v2151 = vrcp.pop %v1953
    %v2152 = vmul.f32 1.0, %v2151
    %v2153 = vrcp.pop %v1954
    %v2154 = vmul.f32 1.0, %v2153
    %v2155 = vrcp.pop %v1955
    %v2156 = vmul.f32 1.0, %v2155
    %v2157 = vrcp.pop %v1956
    %v2158 = vmul.f32 1.0, %v2157
    %v2159 = vrcp.pop %v1957
    %v2160 = vmul.f32 1.0, %v2159
    %v2161 = vrcp.pop %v1958
    %v2162 = vmul.f32 1.0, %v2161
    %v2163 = vrcp.pop %v1959
    %v2164 = vmul.f32 1.0, %v2163
    %v2165 = vrcp.pop %v1960
    %v2166 = vmul.f32 1.0, %v2165
    %v2167 = vrcp.pop %v1961
    %v2168 = vmul.f32 1.0, %v2167
    %v2169 = vrcp.pop %v1962
    %v2170 = vmul.f32 1.0, %v2169
    %v2171 = vrcp.pop %v1963
    %v2172 = vmul.f32 1.0, %v2171
    %v2173 = vrcp.pop %v1964
    %v2174 = vmul.f32 1.0, %v2173
    %v2175 = vrcp.pop %v1965
    %v2176 = vmul.f32 1.0, %v2175
    %v2177 = vrcp.pop %v1966
    %v2178 = vmul.f32 1.0, %v2177
    %v2179 = vrcp.pop %v1967
    %v2180 = vmul.f32 1.0, %v2179
    %v2181 = vrcp.pop %v1968
    %v2182 = vmul.f32 1.0, %v2181
    %v2183 = vrcp.pop %v1969
    %v2184 = vmul.f32 1.0, %v2183
    %v2185 = vrcp.pop %v1970
    %v2186 = vmul.f32 1.0, %v2185
    %v2187 = vrcp.pop %v1971
    %v2188 = vmul.f32 1.0, %v2187
    %v2189 = vrcp.pop %v1972
    %v2190 = vmul.f32 1.0, %v2189
    %v2191 = vrcp.pop %v1973
    %v2192 = vmul.f32 1.0, %v2191
    %v2193 = vrcp.pop %v1974
    %v2194 = vmul.f32 1.0, %v2193
    %v2195 = vrcp.pop %v1975
    %v2196 = vmul.f32 1.0, %v2195
    %v2197 = vrcp.pop %v1976
    %v2198 = vmul.f32 1.0, %v2197
    %v2199 = vrcp.pop %v1977
    %v2200 = vmul.f32 1.0, %v2199
    %v2201 = vrcp.pop %v1978
    %v2202 = vmul.f32 1.0, %v2201
    %v2203 = vrcp.pop %v1979
    %v2204 = vmul.f32 1.0, %v2203
    %v2205 = vrcp.pop %v1980
    %v2206 = vmul.f32 1.0, %v2205
    %v2207 = vrcp.pop %v1981
    %v2208 = vmul.f32 1.0, %v2207
    %v2209 = vrcp.pop %v1982
    %v2210 = vmul.f32 1.0, %v2209
    %v2211 = vrcp.pop %v1983
    %v2212 = vmul.f32 1.0, %v2211
    %v2213 = vrcp.pop %v1984
    %v2214 = vmul.f32 1.0, %v2213
    %v2215 = vrcp.pop %v1985
    %v2216 = vmul.f32 1.0, %v2215
    %v2217 = vrcp.pop %v1986
    %v2218 = vmul.f32 1.0, %v2217
    %v2219 = vrcp.pop %v1987
    %v2220 = vmul.f32 1.0, %v2219
    %v2221 = vrcp.pop %v1988
    %v2222 = vmul.f32 1.0, %v2221
    %v2223 = vrcp.pop %v1989
    %v2224 = vmul.f32 1.0, %v2223
    %v2225 = vrcp.pop %v1990
    %v2226 = vmul.f32 1.0, %v2225
    %v2227 = vrcp.pop %v1991
    %v2228 = vmul.f32 1.0, %v2227
    %v2229 = vrcp.pop %v1992
    %v2230 = vmul.f32 1.0, %v2229
    %v2231 = vrcp.pop %v1993
    %v2232 = vmul.f32 1.0, %v2231
    %v2233 = vrcp.pop %v1994
    %v2234 = vmul.f32 1.0, %v2233
    %v2235 = vrcp.pop %v1995
    %v2236 = vmul.f32 1.0, %v2235
    %v2237 = vrcp.pop %v1996
    %v2238 = vmul.f32 1.0, %v2237
    %v2239 = vrcp.pop %v1997
    %v2240 = vmul.f32 1.0, %v2239
    %v2241 = vrcp.pop %v1998
    %v2242 = vmul.f32 1.0, %v2241
    %v2243 = vrcp.pop %v1999
    %v2244 = vmul.f32 1.0, %v2243
    %v2245 = vrcp.pop %v2000
    %v2246 = vmul.f32 1.0, %v2245
    %v2247 = vrcp.pop %v2001
    %v2248 = vmul.f32 1.0, %v2247
    %v2249 = vrcp.pop %v2002
    %v2250 = vmul.f32 1.0, %v2249
    %v2251 = vrcp.pop %v2003
    %v2252 = vmul.f32 1.0, %v2251
    %v2253 = vrcp.pop %v2004
    %v2254 = vmul.f32 1.0, %v2253
    %v2255 = vrcp.pop %v2005
    %v2256 = vmul.f32 1.0, %v2255
    %v2257 = vrcp.pop %v2006
    %v2258 = vmul.f32 1.0, %v2257
    %v2259 = vrcp.pop %v2007
    %v2260 = vmul.f32 1.0, %v2259
    %v2261 = vrcp.pop %v2008
    %v2262 = vmul.f32 1.0, %v2261
    %v2263 = vrcp.pop %v2009
    %v2264 = vmul.f32 1.0, %v2263
    %v2265 = vrcp.pop %v2010
    %v2266 = vmul.f32 1.0, %v2265
    %v2267 = vrcp.pop %v2011
    %v2268 = vmul.f32 1.0, %v2267
    %v2269 = vrcp.pop %v2012
    %v2270 = vmul.f32 1.0, %v2269
    %v2271 = vrcp.pop %v2013
    %v2272 = vmul.f32 1.0, %v2271
    %v2273 = vrcp.pop %v2014
    %v2274 = vmul.f32 1.0, %v2273
    %v2275 = vrcp.pop %v2015
    %v2276 = vmul.f32 1.0, %v2275
    %v2277 = vrcp.pop %v2016
    %v2278 = vmul.f32 1.0, %v2277
    %v2279 = vrcp.pop %v2017
    %v2280 = vmul.f32 1.0, %v2279
    %v2281 = vrcp.pop %v2018
    %v2282 = vmul.f32 1.0, %v2281
    %v2283 = vrcp.pop %v2019
    %v2284 = vmul.f32 1.0, %v2283
    %v2285 = vrcp.pop %v2020
    %v2286 = vmul.f32 1.0, %v2285
    %v2287 = vrcp.pop %v2021
    %v2288 = vmul.f32 1.0, %v2287
    %v2289 = vrcp.pop %v2022
    %v2290 = vmul.f32 1.0, %v2289
    %v2291 = vrcp.pop %v2023
    %v2292 = vmul.f32 1.0, %v2291
    %v2293 = vrcp.pop %v2024
    %v2294 = vmul.f32 1.0, %v2293
    %v2295 = vrcp.pop %v2025
    %v2296 = vmul.f32 1.0, %v2295
    %v2297 = vrcp.pop %v2026
    %v2298 = vmul.f32 1.0, %v2297
    %v2299 = vrcp.pop %v2027
    %v2300 = vmul.f32 1.0, %v2299
    %v2301 = vrcp.pop %v2028
    %v2302 = vmul.f32 1.0, %v2301
    %v2303 = vrcp.pop %v2029
    %v2304 = vmul.f32 1.0, %v2303
    %v2305 = vrcp.pop %v2030
    %v2306 = vmul.f32 1.0, %v2305
    %v2307 = vrcp.pop %v2031
    %v2308 = vmul.f32 1.0, %v2307
    %v2309 = vrcp.pop %v2032
    %v2310 = vmul.f32 1.0, %v2309
    %v2311 = vrcp.pop %v2033
    %v2312 = vmul.f32 1.0, %v2311
    %v2313 = vrcp.pop %v2034
    %v2314 = vmul.f32 1.0, %v2313
    %v2315 = vrcp.pop %v2035
    %v2316 = vmul.f32 1.0, %v2315
    %v2317 = vrcp.pop %v2036
    %v2318 = vmul.f32 1.0, %v2317
    %v2319 = vrcp.pop %v2037
    %v2320 = vmul.f32 1.0, %v2319
    %v2321 = vrcp.pop %v2038
    %v2322 = vmul.f32 1.0, %v2321
    %v2323 = vrcp.pop %v2039
    %v2324 = vmul.f32 1.0, %v2323
    %v2325 = vrcp.pop %v2040
    %v2326 = vmul.f32 1.0, %v2325
    %v2327 = vrcp.pop %v2041
    %v2328 = vmul.f32 1.0, %v2327
    %v2329 = vrcp.pop %v2042
    %v2330 = vmul.f32 1.0, %v2329
    %v2331 = vrcp.pop %v2043
    %v2332 = vmul.f32 1.0, %v2331
    %v2333 = vrcp.pop %v2044
    %v2334 = vmul.f32 1.0, %v2333
    %v2335 = vrcp.pop %v2045
    %v2336 = vmul.f32 1.0, %v2335
    %v2337 = vrcp.pop %v2046
    %v2338 = vmul.f32 1.0, %v2337
    %v2339 = vrcp.pop %v2047
    %v2340 = vmul.f32 1.0, %v2339
    %v2341 = vrcp.pop %v2048
    %v2342 = vmul.f32 1.0, %v2341
    %v2343 = vrcp.pop %v2049
    %v2344 = vmul.f32 1.0, %v2343
    %v2345 = vrcp.pop %v2050
    %v2346 = vmul.f32 1.0, %v2345
    %v2347 = vrcp.pop %v2051
    %v2348 = vmul.f32 1.0, %v2347
    %v2349 = vrcp.pop %v2052
    %v2350 = vmul.f32 1.0, %v2349
    %v2351 = vrcp.pop %v2053
    %v2352 = vmul.f32 1.0, %v2351
    %v2353 = vrcp.pop %v2054
    %v2354 = vmul.f32 1.0, %v2353
    %v2355 = vrcp.pop %v2055
    %v2356 = vmul.f32 1.0, %v2355
    %v2357 = vrcp.pop %v2056
    %v2358 = vmul.f32 1.0, %v2357
    %v2359 = vrcp.pop %v2057
    %v2360 = vmul.f32 1.0, %v2359
    %v2361 = vrcp.pop %v2058
    %v2362 = vmul.f32 1.0, %v2361
    %v2363 = vrcp.pop %v2059
    %v2364 = vmul.f32 1.0, %v2363
    %v2365 = vrcp.pop %v2060
    %v2366 = vmul.f32 1.0, %v2365
    %v2367 = vrcp.pop %v2061
    %v2368 = vmul.f32 1.0, %v2367
    %v2369 = vrcp.pop %v2062
    %v2370 = vmul.f32 1.0, %v2369
    %v2371 = vrcp.pop %v2063
    %v2372 = vmul.f32 1.0, %v2371
    %v2373 = vrcp.pop %v2064
    %v2374 = vmul.f32 1.0, %v2373
    %v2375 = vrcp.pop %v2065
    %v2376 = vmul.f32 1.0, %v2375
    %v2377 = vrcp.pop %v2066
    %v2378 = vmul.f32 1.0, %v2377
    %v2379 = vrcp.pop %v2067
    %v2380 = vmul.f32 1.0, %v2379
    %v2381 = vrcp.pop %v2068
    %v2382 = vmul.f32 1.0, %v2381
    %v2383 = vrcp.pop %v2069
    %v2384 = vmul.f32 1.0, %v2383
    %v2385 = vrcp.pop %v2070
    %v2386 = vmul.f32 1.0, %v2385
    %v2387 = vrcp.pop %v2071
    %v2388 = vmul.f32 1.0, %v2387
    %v2389 = vrcp.pop %v2072
    %v2390 = vmul.f32 1.0, %v2389
    %v2391 = vrcp.pop %v2073
    %v2392 = vmul.f32 1.0, %v2391
    %v2393 = vrcp.pop %v2074
    %v2394 = vmul.f32 1.0, %v2393
    %v2395 = vrcp.pop %v2075
    %v2396 = vmul.f32 1.0, %v2395
    %v2397 = vrcp.pop %v2076
    %v2398 = vmul.f32 1.0, %v2397
    %v2399 = vrcp.pop %v2077
    %v2400 = vmul.f32 1.0, %v2399
    %v2401 = vrcp.pop %v2078
    %v2402 = vmul.f32 1.0, %v2401
    %v2403 = vrcp.pop %v2079
    %v2404 = vmul.f32 1.0, %v2403
    %v2405 = vrcp.pop %v2080
    %v2406 = vmul.f32 1.0, %v2405
    %v2407 = vrcp.pop %v2081
    %v2408 = vmul.f32 1.0, %v2407
    %v2409 = vrcp.pop %v2082
    %v2410 = vmul.f32 1.0, %v2409
    %v2411 = vrcp.pop %v2083
    %v2412 = vmul.f32 1.0, %v2411
    %v2413 = vrcp.pop %v2084
    %v2414 = vmul.f32 1.0, %v2413
    %v2415 = vrcp.pop %v2085
    %v2416 = vmul.f32 1.0, %v2415
    %v2417 = vrcp.pop %v2086
    %v2418 = vmul.f32 1.0, %v2417
    %v2419 = vrcp.pop %v2087
    %v2420 = vmul.f32 1.0, %v2419
    %v2421 = vrcp.pop %v2088
    %v2422 = vmul.f32 1.0, %v2421
    %v2423 = vrcp.pop %v2089
    %v2424 = vmul.f32 1.0, %v2423
    %v2425 = vrcp.pop %v2090
    %v2426 = vmul.f32 1.0, %v2425
    %v2427 = vrcp.pop %v2091
    %v2428 = vmul.f32 1.0, %v2427
    %v2429 = vrcp.pop %v2092
    %v2430 = vmul.f32 1.0, %v2429
    %v2431 = vrcp.pop %v2093
    %v2432 = vmul.f32 1.0, %v2431
    %v2433 = vrcp.pop %v2094
    %v2434 = vmul.f32 1.0, %v2433
    %v2435 = vrcp.pop %v2095
    %v2436 = vmul.f32 1.0, %v2435
    %v2437 = vrcp.pop %v2096
    %v2438 = vmul.f32 1.0, %v2437
    %v2439 = vrcp.pop %v2097
    %v2440 = vmul.f32 1.0, %v2439
    %v2441 = vrcp.pop %v2098
    %v2442 = vmul.f32 1.0, %v2441
    %v2443 = vrcp.pop %v2099
    %v2444 = vmul.f32 1.0, %v2443
    %v2445 = vrcp.pop %v2100
    %v2446 = vmul.f32 1.0, %v2445
    %v2447 = vrcp.pop %v2101
    %v2448 = vmul.f32 1.0, %v2447
    %v2449 = vrcp.pop %v2102
    %v2450 = vmul.f32 1.0, %v2449
    %v2451 = vrcp.pop %v2103
    %v2452 = vmul.f32 1.0, %v2451
    %v2453 = vrcp.pop %v2104
    %v2454 = vmul.f32 1.0, %v2453
    %v2455 = vrcp.pop %v2105
    %v2456 = vmul.f32 1.0, %v2455
    %v2457 = vrcp.pop %v2106
    %v2458 = vmul.f32 1.0, %v2457
    %v2459 = vrcp.pop %v2107
    %v2460 = vmul.f32 1.0, %v2459
    %v2461 = vrcp.pop %v2108
    %v2462 = vmul.f32 1.0, %v2461
    %v2463 = vrcp.pop %v2109
    %v2464 = vmul.f32 1.0, %v2463
    %v2465 = vrcp.pop %v2110
    %v2466 = vmul.f32 1.0, %v2465
    %v2467 = vrcp.pop %v2111
    %v2468 = vmul.f32 1.0, %v2467
    %v2469 = vrcp.pop %v2112
    %v2470 = vmul.f32 1.0, %v2469
    %v2471 = vrcp.pop %v2113
    %v2472 = vmul.f32 1.0, %v2471
    %v2473 = vrcp.pop %v2114
    %v2474 = vmul.f32 1.0, %v2473
    %v2475 = vrcp.pop %v2115
    %v2476 = vmul.f32 1.0, %v2475
    %v2477 = vrcp.pop %v2116
    %v2478 = vmul.f32 1.0, %v2477
    %v2479 = vrcp.pop %v2117
    %v2480 = vmul.f32 1.0, %v2479
    %v2481 = vrcp.pop %v2118
    %v2482 = vmul.f32 1.0, %v2481
    %v2483 = vrcp.pop %v2119
    %v2484 = vmul.f32 1.0, %v2483
    %v2485 = vrcp.pop %v2120
    %v2486 = vmul.f32 1.0, %v2485
    %v2487 = vrcp.pop %v2121
    %v2488 = vmul.f32 1.0, %v2487
    %v2489 = vrcp.pop %v2122
    %v2490 = vmul.f32 1.0, %v2489
    %v2491 = vrcp.pop %v2123
    %v2492 = vmul.f32 1.0, %v2491
    %v2493 = vrcp.pop %v2124
    %v2494 = vmul.f32 1.0, %v2493
    %v2495 = vrcp.pop %v2125
    %v2496 = vmul.f32 1.0, %v2495
    %v2497 = vrcp.pop %v2126
    %v2498 = vmul.f32 1.0, %v2497
    %v2499 = vrcp.pop %v2127
    %v2500 = vmul.f32 1.0, %v2499
    %v2501 = vrcp.pop %v2128
    %v2502 = vmul.f32 1.0, %v2501
    %v2503 = vrcp.pop %v2129
    %v2504 = vmul.f32 1.0, %v2503
    %v2505 = vrcp.pop %v2130
    %v2506 = vmul.f32 1.0, %v2505
    %v2507 = vrcp.pop %v2131
    %v2508 = vmul.f32 1.0, %v2507
    %v2509 = vrcp.pop %v2132
    %v2510 = vmul.f32 1.0, %v2509
    %v2511 = vrcp.pop %v2133
    %v2512 = vmul.f32 1.0, %v2511
    %v2513 = vrcp.pop %v2134
    %v2514 = vmul.f32 1.0, %v2513
    %v2515 = vrcp.pop %v2135
    %v2516 = vmul.f32 1.0, %v2515
    %v2517 = vrcp.pop %v2136
    %v2518 = vmul.f32 1.0, %v2517
    %v2519 = vrcp.pop %v2137
    %v2520 = vmul.f32 1.0, %v2519
    %v2521 = vrcp.pop %v2138
    %v2522 = vmul.f32 1.0, %v2521
    %v2523 = vmul.f32 %v728, %v2140
    %v2524 = vmul.f32 %v730, %v2142
    %v2525 = vmul.f32 %v841, %v2144
    %v2526 = vmul.f32 %v843, %v2146
    %v2527 = vmul.f32 %v954, %v2148
    %v2528 = vmul.f32 %v956, %v2150
    %v2529 = vmul.f32 %v1067, %v2152
    %v2530 = vmul.f32 %v1069, %v2154
    %v2531 = vmul.f32 %v1180, %v2156
    %v2532 = vmul.f32 %v1182, %v2158
    %v2533 = vmul.f32 %v1293, %v2160
    %v2534 = vmul.f32 %v1295, %v2162
    %v2535 = vmul.f32 %v732, %v2164
    %v2536 = vmul.f32 %v734, %v2166
    %v2537 = vmul.f32 %v845, %v2168
    %v2538 = vmul.f32 %v847, %v2170
    %v2539 = vmul.f32 %v958, %v2172
    %v2540 = vmul.f32 %v960, %v2174
    %v2541 = vmul.f32 %v1071, %v2176
    %v2542 = vmul.f32 %v1073, %v2178
    %v2543 = vmul.f32 %v1184, %v2180
    %v2544 = vmul.f32 %v1186, %v2182
    %v2545 = vmul.f32 %v1297, %v2184
    %v2546 = vmul.f32 %v1299, %v2186
    %v2547 = vmul.f32 %v738, %v2188
    %v2548 = vmul.f32 %v740, %v2190
    %v2549 = vmul.f32 %v851, %v2192
    %v2550 = vmul.f32 %v853, %v2194
    %v2551 = vmul.f32 %v964, %v2196
    %v2552 = vmul.f32 %v966, %v2198
    %v2553 = vmul.f32 %v1077, %v2200
    %v2554 = vmul.f32 %v1079, %v2202
    %v2555 = vmul.f32 %v1190, %v2204
    %v2556 = vmul.f32 %v1192, %v2206
    %v2557 = vmul.f32 %v1303, %v2208
    %v2558 = vmul.f32 %v1305, %v2210
    %v2559 = vmul.f32 %v742, %v2212
    %v2560 = vmul.f32 %v744, %v2214
    %v2561 = vmul.f32 %v855, %v2216
    %v2562 = vmul.f32 %v857, %v2218
    %v2563 = vmul.f32 %v968, %v2220
    %v2564 = vmul.f32 %v970, %v2222
    %v2565 = vmul.f32 %v1081, %v2224
    %v2566 = vmul.f32 %v1083, %v2226
    %v2567 = vmul.f32 %v1194, %v2228
    %v2568 = vmul.f32 %v1196, %v2230
    %v2569 = vmul.f32 %v1307, %v2232
    %v2570 = vmul.f32 %v1309, %v2234
    %v2571 = vmul.f32 %v748, %v2236
    %v2572 = vmul.f32 %v750, %v2238
    %v2573 = vmul.f32 %v861, %v2240
    %v2574 = vmul.f32 %v863, %v2242
    %v2575 = vmul.f32 %v974, %v2244
    %v2576 = vmul.f32 %v976, %v2246
    %v2577 = vmul.f32 %v1087, %v2248
    %v2578 = vmul.f32 %v1089, %v2250
    %v2579 = vmul.f32 %v1200, %v2252
    %v2580 = vmul.f32 %v1202, %v2254
    %v2581 = vmul.f32 %v1313, %v2256
    %v2582 = vmul.f32 %v1315, %v2258
    %v2583 = vmul.f32 %v752, %v2260
    %v2584 = vmul.f32 %v754, %v2262
    %v2585 = vmul.f32 %v865, %v2264
    %v2586 = vmul.f32 %v867, %v2266
    %v2587 = vmul.f32 %v978, %v2268
    %v2588 = vmul.f32 %v980, %v2270
    %v2589 = vmul.f32 %v1091, %v2272
    %v2590 = vmul.f32 %v1093, %v2274
    %v2591 = vmul.f32 %v1204, %v2276
    %v2592 = vmul.f32 %v1206, %v2278
    %v2593 = vmul.f32 %v1317, %v2280
    %v2594 = vmul.f32 %v1319, %v2282
    %v2595 = vmul.f32 %v758, %v2284
    %v2596 = vmul.f32 %v760, %v2286
    %v2597 = vmul.f32 %v871, %v2288
    %v2598 = vmul.f32 %v873, %v2290
    %v2599 = vmul.f32 %v984, %v2292
    %v2600 = vmul.f32 %v986, %v2294
    %v2601 = vmul.f32 %v1097, %v2296
    %v2602 = vmul.f32 %v1099, %v2298
    %v2603 = vmul.f32 %v1210, %v2300
    %v2604 = vmul.f32 %v1212, %v2302
    %v2605 = vmul.f32 %v1323, %v2304
    %v2606 = vmul.f32 %v1325, %v2306
    %v2607 = vmul.f32 %v762, %v2308
    %v2608 = vmul.f32 %v764, %v2310
    %v2609 = vmul.f32 %v875, %v2312
    %v2610 = vmul.f32 %v877, %v2314
    %v2611 = vmul.f32 %v988, %v2316
    %v2612 = vmul.f32 %v990, %v2318
    %v2613 = vmul.f32 %v1101, %v2320
    %v2614 = vmul.f32 %v1103, %v2322
    %v2615 = vmul.f32 %v1214, %v2324
    %v2616 = vmul.f32 %v1216, %v2326
    %v2617 = vmul.f32 %v1327, %v2328
    %v2618 = vmul.f32 %v1329, %v2330
    %v2619 = vmul.f32 %v768, %v2332
    %v2620 = vmul.f32 %v770, %v2334
    %v2621 = vmul.f32 %v881, %v2336
    %v2622 = vmul.f32 %v883, %v2338
    %v2623 = vmul.f32 %v994, %v2340
    %v2624 = vmul.f32 %v996, %v2342
    %v2625 = vmul.f32 %v1107, %v2344
    %v2626 = vmul.f32 %v1109, %v2346
    %v2627 = vmul.f32 %v1220, %v2348
    %v2628 = vmul.f32 %v1222, %v2350
    %v2629 = vmul.f32 %v1333, %v2352
    %v2630 = vmul.f32 %v1335, %v2354
    %v2631 = vmul.f32 %v772, %v2356
    %v2632 = vmul.f32 %v774, %v2358
    %v2633 = vmul.f32 %v885, %v2360
    %v2634 = vmul.f32 %v887, %v2362
    %v2635 = vmul.f32 %v998, %v2364
    %v2636 = vmul.f32 %v1000, %v2366
    %v2637 = vmul.f32 %v1111, %v2368
    %v2638 = vmul.f32 %v1113, %v2370
    %v2639 = vmul.f32 %v1224, %v2372
    %v2640 = vmul.f32 %v1226, %v2374
    %v2641 = vmul.f32 %v1337, %v2376
    %v2642 = vmul.f32 %v1339, %v2378
    %v2643 = vmul.f32 %v778, %v2380
    %v2644 = vmul.f32 %v780, %v2382
    %v2645 = vmul.f32 %v891, %v2384
    %v2646 = vmul.f32 %v893, %v2386
    %v2647 = vmul.f32 %v1004, %v2388
    %v2648 = vmul.f32 %v1006, %v2390
    %v2649 = vmul.f32 %v1117, %v2392
    %v2650 = vmul.f32 %v1119, %v2394
    %v2651 = vmul.f32 %v1230, %v2396
    %v2652 = vmul.f32 %v1232, %v2398
    %v2653 = vmul.f32 %v1343, %v2400
    %v2654 = vmul.f32 %v1345, %v2402
    %v2655 = vmul.f32 %v782, %v2404
    %v2656 = vmul.f32 %v784, %v2406
    %v2657 = vmul.f32 %v895, %v2408
    %v2658 = vmul.f32 %v897, %v2410
    %v2659 = vmul.f32 %v1008, %v2412
    %v2660 = vmul.f32 %v1010, %v2414
    %v2661 = vmul.f32 %v1121, %v2416
    %v2662 = vmul.f32 %v1123, %v2418
    %v2663 = vmul.f32 %v1234, %v2420
    %v2664 = vmul.f32 %v1236, %v2422
    %v2665 = vmul.f32 %v1347, %v2424
    %v2666 = vmul.f32 %v1349, %v2426
    %v2667 = vmul.f32 %v788, %v2428
    %v2668 = vmul.f32 %v790, %v2430
    %v2669 = vmul.f32 %v901, %v2432
    %v2670 = vmul.f32 %v903, %v2434
    %v2671 = vmul.f32 %v1014, %v2436
    %v2672 = vmul.f32 %v1016, %v2438
    %v2673 = vmul.f32 %v1127, %v2440
    %v2674 = vmul.f32 %v1129, %v2442
    %v2675 = vmul.f32 %v1240, %v2444
    %v2676 = vmul.f32 %v1242, %v2446
    %v2677 = vmul.f32 %v1353, %v2448
    %v2678 = vmul.f32 %v1355, %v2450
    %v2679 = vmul.f32 %v792, %v2452
    %v2680 = vmul.f32 %v794, %v2454
    %v2681 = vmul.f32 %v905, %v2456
    %v2682 = vmul.f32 %v907, %v2458
    %v2683 = vmul.f32 %v1018, %v2460
    %v2684 = vmul.f32 %v1020, %v2462
    %v2685 = vmul.f32 %v1131, %v2464
    %v2686 = vmul.f32 %v1133, %v2466
    %v2687 = vmul.f32 %v1244, %v2468
    %v2688 = vmul.f32 %v1246, %v2470
    %v2689 = vmul.f32 %v1357, %v2472
    %v2690 = vmul.f32 %v1359, %v2474
    %v2691 = vmul.f32 %v798, %v2476
    %v2692 = vmul.f32 %v800, %v2478
    %v2693 = vmul.f32 %v911, %v2480
    %v2694 = vmul.f32 %v913, %v2482
    %v2695 = vmul.f32 %v1024, %v2484
    %v2696 = vmul.f32 %v1026, %v2486
    %v2697 = vmul.f32 %v1137, %v2488
    %v2698 = vmul.f32 %v1139, %v2490
    %v2699 = vmul.f32 %v1250, %v2492
    %v2700 = vmul.f32 %v1252, %v2494
    %v2701 = vmul.f32 %v1363, %v2496
    %v2702 = vmul.f32 %v1365, %v2498
    %v2703 = vmul.f32 %v802, %v2500
    %v2704 = vmul.f32 %v804, %v2502
    %v2705 = vmul.f32 %v915, %v2504
    %v2706 = vmul.f32 %v917, %v2506
    %v2707 = vmul.f32 %v1028, %v2508
    %v2708 = vmul.f32 %v1030, %v2510
    %v2709 = vmul.f32 %v1141, %v2512
    %v2710 = vmul.f32 %v1143, %v2514
    %v2711 = vmul.f32 %v1254, %v2516
    %v2712 = vmul.f32 %v1256, %v2518
    %v2713 = vmul.f32 %v1367, %v2520
    %v2714 = vmul.f32 %v1369, %v2522
    %v2715 = vpack.c.bf16 %v2535, %v2523
    %v2716 = vpack.c.bf16 %v2536, %v2524
    %v2717 = vpack.c.bf16 %v2537, %v2525
    %v2718 = vpack.c.bf16 %v2538, %v2526
    %v2719 = vpack.c.bf16 %v2539, %v2527
    %v2720 = vpack.c.bf16 %v2540, %v2528
    %v2721 = vpack.c.bf16 %v2541, %v2529
    %v2722 = vpack.c.bf16 %v2542, %v2530
    %v2723 = vpack.c.bf16 %v2543, %v2531
    %v2724 = vpack.c.bf16 %v2544, %v2532
    %v2725 = vpack.c.bf16 %v2545, %v2533
    %v2726 = vpack.c.bf16 %v2546, %v2534
    %v2727 = vpack.c.bf16 %v2559, %v2547
    %v2728 = vpack.c.bf16 %v2560, %v2548
    %v2729 = vpack.c.bf16 %v2561, %v2549
    %v2730 = vpack.c.bf16 %v2562, %v2550
    %v2731 = vpack.c.bf16 %v2563, %v2551
    %v2732 = vpack.c.bf16 %v2564, %v2552
    %v2733 = vpack.c.bf16 %v2565, %v2553
    %v2734 = vpack.c.bf16 %v2566, %v2554
    %v2735 = vpack.c.bf16 %v2567, %v2555
    %v2736 = vpack.c.bf16 %v2568, %v2556
    %v2737 = vpack.c.bf16 %v2569, %v2557
    %v2738 = vpack.c.bf16 %v2570, %v2558
    %v2739 = vpack.c.bf16 %v2583, %v2571
    %v2740 = vpack.c.bf16 %v2584, %v2572
    %v2741 = vpack.c.bf16 %v2585, %v2573
    %v2742 = vpack.c.bf16 %v2586, %v2574
    %v2743 = vpack.c.bf16 %v2587, %v2575
    %v2744 = vpack.c.bf16 %v2588, %v2576
    %v2745 = vpack.c.bf16 %v2589, %v2577
    %v2746 = vpack.c.bf16 %v2590, %v2578
    %v2747 = vpack.c.bf16 %v2591, %v2579
    %v2748 = vpack.c.bf16 %v2592, %v2580
    %v2749 = vpack.c.bf16 %v2593, %v2581
    %v2750 = vpack.c.bf16 %v2594, %v2582
    %v2751 = vpack.c.bf16 %v2607, %v2595
    %v2752 = vpack.c.bf16 %v2608, %v2596
    %v2753 = vpack.c.bf16 %v2609, %v2597
    %v2754 = vpack.c.bf16 %v2610, %v2598
    %v2755 = vpack.c.bf16 %v2611, %v2599
    %v2756 = vpack.c.bf16 %v2612, %v2600
    %v2757 = vpack.c.bf16 %v2613, %v2601
    %v2758 = vpack.c.bf16 %v2614, %v2602
    %v2759 = vpack.c.bf16 %v2615, %v2603
    %v2760 = vpack.c.bf16 %v2616, %v2604
    %v2761 = vpack.c.bf16 %v2617, %v2605
    %v2762 = vpack.c.bf16 %v2618, %v2606
    %v2763 = vpack.c.bf16 %v2631, %v2619
    %v2764 = vpack.c.bf16 %v2632, %v2620
    %v2765 = vpack.c.bf16 %v2633, %v2621
    %v2766 = vpack.c.bf16 %v2634, %v2622
    %v2767 = vpack.c.bf16 %v2635, %v2623
    %v2768 = vpack.c.bf16 %v2636, %v2624
    %v2769 = vpack.c.bf16 %v2637, %v2625
    %v2770 = vpack.c.bf16 %v2638, %v2626
    %v2771 = vpack.c.bf16 %v2639, %v2627
    %v2772 = vpack.c.bf16 %v2640, %v2628
    %v2773 = vpack.c.bf16 %v2641, %v2629
    %v2774 = vpack.c.bf16 %v2642, %v2630
    %v2775 = vpack.c.bf16 %v2655, %v2643
    %v2776 = vpack.c.bf16 %v2656, %v2644
    %v2777 = vpack.c.bf16 %v2657, %v2645
    %v2778 = vpack.c.bf16 %v2658, %v2646
    %v2779 = vpack.c.bf16 %v2659, %v2647
    %v2780 = vpack.c.bf16 %v2660, %v2648
    %v2781 = vpack.c.bf16 %v2661, %v2649
    %v2782 = vpack.c.bf16 %v2662, %v2650
    %v2783 = vpack.c.bf16 %v2663, %v2651
    %v2784 = vpack.c.bf16 %v2664, %v2652
    %v2785 = vpack.c.bf16 %v2665, %v2653
    %v2786 = vpack.c.bf16 %v2666, %v2654
    %v2787 = vpack.c.bf16 %v2679, %v2667
    %v2788 = vpack.c.bf16 %v2680, %v2668
    %v2789 = vpack.c.bf16 %v2681, %v2669
    %v2790 = vpack.c.bf16 %v2682, %v2670
    %v2791 = vpack.c.bf16 %v2683, %v2671
    %v2792 = vpack.c.bf16 %v2684, %v2672
    %v2793 = vpack.c.bf16 %v2685, %v2673
    %v2794 = vpack.c.bf16 %v2686, %v2674
    %v2795 = vpack.c.bf16 %v2687, %v2675
    %v2796 = vpack.c.bf16 %v2688, %v2676
    %v2797 = vpack.c.bf16 %v2689, %v2677
    %v2798 = vpack.c.bf16 %v2690, %v2678
    %v2799 = vpack.c.bf16 %v2703, %v2691
    %v2800 = vpack.c.bf16 %v2704, %v2692
    %v2801 = vpack.c.bf16 %v2705, %v2693
    %v2802 = vpack.c.bf16 %v2706, %v2694
    %v2803 = vpack.c.bf16 %v2707, %v2695
    %v2804 = vpack.c.bf16 %v2708, %v2696
    %v2805 = vpack.c.bf16 %v2709, %v2697
    %v2806 = vpack.c.bf16 %v2710, %v2698
    %v2807 = vpack.c.bf16 %v2711, %v2699
    %v2808 = vpack.c.bf16 %v2712, %v2700
    %v2809 = vpack.c.bf16 %v2713, %v2701
    %v2810 = vpack.c.bf16 %v2714, %v2702
    %v2811 = vld [vmem:[#allocation2] sm:$0xff]
    %v2812 = vld [vmem:[#allocation2 + $0x8] sm:$0xff]
    %v2813 = vld [vmem:[#allocation2 + $0x10] sm:$0xff]
    %v2814 = vld [vmem:[%s1] sm:$0x1]
    %2815 = vmatprep.subr.bf16.mxu0 %v2716
    %2816 = vmatpush1.bf16.msra.mxu0 %v2715
    %2817 = vmatprep.subr.bf16.mxu0 %v2728
    %2818 = vmatpush1.bf16.msra.mxu0 %v2727
    %2819 = vmatprep.subr.bf16.mxu0 %v2740
    %2820 = vmatpush1.bf16.msra.mxu0 %v2739
    %2821 = vmatprep.subr.bf16.mxu0 %v2752
    %2822 = vmatpush1.bf16.msra.mxu0 %v2751
    %2823 = vmatprep.subr.bf16.mxu0 %v2764
    %2824 = vmatpush1.bf16.msra.mxu0 %v2763
    %2825 = vmatprep.subr.bf16.mxu0 %v2776
    %2826 = vmatpush1.bf16.msra.mxu0 %v2775
    %2827 = vmatprep.subr.bf16.mxu0 %v2788
    %2828 = vmatpush1.bf16.msra.mxu0 %v2787
    %2829 = vmatprep.subr.bf16.mxu0 %v2800
    %2830 = vmatpush1.bf16.msra.mxu0 %v2799
    %2831 = vmatprep.subr.bf16.mxu0 0
    %2832 = vmatpush1.bf16.msra.mxu0 0
    %2833 = vmatprep.subr.bf16.mxu0 0
    %2834 = vmatpush1.bf16.msra.mxu0 0
    %2835 = vmatprep.subr.bf16.mxu0 0
    %2836 = vmatpush1.bf16.msra.mxu0 0
    %2837 = vmatprep.subr.bf16.mxu0 0
    %2838 = vmatpush1.bf16.msra.mxu0 0
    %2839 = vmatprep.subr.bf16.mxu0 0
    %2840 = vmatpush1.bf16.msra.mxu0 0
    %2841 = vmatprep.subr.bf16.mxu0 0
    %2842 = vmatpush1.bf16.msra.mxu0 0
    %2843 = vmatprep.subr.bf16.mxu0 0
    %2844 = vmatpush1.bf16.msra.mxu0 0
    %2845 = vmatprep.subr.bf16.mxu0 0
    %2846 = vmatpush1.bf16.msra.mxu0 0
    %2847 = vmatprep.mubr.bf16.mxu0 0
    %2848 = vmatmul.mubr.bf16.gmra.mrb[0].mxu0 %v2814
    %v2849 = vpop.f32.mrb[0].mxu0
    %v2850 = vadd.f32 0.0, %v2849
    %v2851 = vpop.f32.mrb[0].mxu0
    %v2852 = vadd.f32 0.0, %v2851
    %v2853 = vpop.f32.mrb[0].mxu0
    %v2854 = vpop.f32.mrb[0].mxu0
    %2855 = vdwg.mxu0
    %2856 = vmatprep.subr.bf16.mxu0 %v2718
    %2857 = vmatpush1.bf16.msra.mxu0 %v2717
    %2858 = vmatprep.subr.bf16.mxu0 %v2730
    %2859 = vmatpush1.bf16.msra.mxu0 %v2729
    %2860 = vmatprep.subr.bf16.mxu0 %v2742
    %2861 = vmatpush1.bf16.msra.mxu0 %v2741
    %2862 = vmatprep.subr.bf16.mxu0 %v2754
    %2863 = vmatpush1.bf16.msra.mxu0 %v2753
    %2864 = vmatprep.subr.bf16.mxu0 %v2766
    %2865 = vmatpush1.bf16.msra.mxu0 %v2765
    %2866 = vmatprep.subr.bf16.mxu0 %v2778
    %2867 = vmatpush1.bf16.msra.mxu0 %v2777
    %2868 = vmatprep.subr.bf16.mxu0 %v2790
    %2869 = vmatpush1.bf16.msra.mxu0 %v2789
    %2870 = vmatprep.subr.bf16.mxu0 %v2802
    %2871 = vmatpush1.bf16.msra.mxu0 %v2801
    %2872 = vmatprep.subr.bf16.mxu0 0
    %2873 = vmatpush1.bf16.msra.mxu0 0
    %2874 = vmatprep.subr.bf16.mxu0 0
    %2875 = vmatpush1.bf16.msra.mxu0 0
    %2876 = vmatprep.subr.bf16.mxu0 0
    %2877 = vmatpush1.bf16.msra.mxu0 0
    %2878 = vmatprep.subr.bf16.mxu0 0
    %2879 = vmatpush1.bf16.msra.mxu0 0
    %2880 = vmatprep.subr.bf16.mxu0 0
    %2881 = vmatpush1.bf16.msra.mxu0 0
    %2882 = vmatprep.subr.bf16.mxu0 0
    %2883 = vmatpush1.bf16.msra.mxu0 0
    %2884 = vmatprep.subr.bf16.mxu0 0
    %2885 = vmatpush1.bf16.msra.mxu0 0
    %2886 = vmatprep.subr.bf16.mxu0 0
    %2887 = vmatpush1.bf16.msra.mxu0 0
    %2888 = vmatprep.mubr.bf16.mxu0 0
    %2889 = vmatmul.mubr.bf16.gmra.mrb[0].mxu0 %v2814
    %v2890 = vpop.f32.mrb[0].mxu0
    %v2891 = vadd.f32 0.0, %v2890
    %v2892 = vpop.f32.mrb[0].mxu0
    %v2893 = vadd.f32 0.0, %v2892
    %v2894 = vpop.f32.mrb[0].mxu0
    %v2895 = vpop.f32.mrb[0].mxu0
    %2896 = vdwg.mxu0
    %2897 = vmatprep.subr.bf16.mxu0 %v2720
    %2898 = vmatpush1.bf16.msra.mxu0 %v2719
    %2899 = vmatprep.subr.bf16.mxu0 %v2732
    %2900 = vmatpush1.bf16.msra.mxu0 %v2731
    %2901 = vmatprep.subr.bf16.mxu0 %v2744
    %2902 = vmatpush1.bf16.msra.mxu0 %v2743
    %2903 = vmatprep.subr.bf16.mxu0 %v2756
    %2904 = vmatpush1.bf16.msra.mxu0 %v2755
    %2905 = vmatprep.subr.bf16.mxu0 %v2768
    %2906 = vmatpush1.bf16.msra.mxu0 %v2767
    %2907 = vmatprep.subr.bf16.mxu0 %v2780
    %2908 = vmatpush1.bf16.msra.mxu0 %v2779
    %2909 = vmatprep.subr.bf16.mxu0 %v2792
    %2910 = vmatpush1.bf16.msra.mxu0 %v2791
    %2911 = vmatprep.subr.bf16.mxu0 %v2804
    %2912 = vmatpush1.bf16.msra.mxu0 %v2803
    %2913 = vmatprep.subr.bf16.mxu0 0
    %2914 = vmatpush1.bf16.msra.mxu0 0
    %2915 = vmatprep.subr.bf16.mxu0 0
    %2916 = vmatpush1.bf16.msra.mxu0 0
    %2917 = vmatprep.subr.bf16.mxu0 0
    %2918 = vmatpush1.bf16.msra.mxu0 0
    %2919 = vmatprep.subr.bf16.mxu0 0
    %2920 = vmatpush1.bf16.msra.mxu0 0
    %2921 = vmatprep.subr.bf16.mxu0 0
    %2922 = vmatpush1.bf16.msra.mxu0 0
    %2923 = vmatprep.subr.bf16.mxu0 0
    %2924 = vmatpush1.bf16.msra.mxu0 0
    %2925 = vmatprep.subr.bf16.mxu0 0
    %2926 = vmatpush1.bf16.msra.mxu0 0
    %2927 = vmatprep.subr.bf16.mxu0 0
    %2928 = vmatpush1.bf16.msra.mxu0 0
    %2929 = vmatprep.mubr.bf16.mxu0 0
    %2930 = vmatmul.mubr.bf16.gmra.mrb[0].mxu0 %v2814
    %v2931 = vpop.f32.mrb[0].mxu0
    %v2932 = vadd.f32 0.0, %v2931
    %v2933 = vpop.f32.mrb[0].mxu0
    %v2934 = vadd.f32 0.0, %v2933
    %v2935 = vpop.f32.mrb[0].mxu0
    %v2936 = vpop.f32.mrb[0].mxu0
    %2937 = vdwg.mxu0
    %2938 = vmatprep.subr.bf16.mxu0 %v2722
    %2939 = vmatpush1.bf16.msra.mxu0 %v2721
    %2940 = vmatprep.subr.bf16.mxu0 %v2734
    %2941 = vmatpush1.bf16.msra.mxu0 %v2733
    %2942 = vmatprep.subr.bf16.mxu0 %v2746
    %2943 = vmatpush1.bf16.msra.mxu0 %v2745
    %2944 = vmatprep.subr.bf16.mxu0 %v2758
    %2945 = vmatpush1.bf16.msra.mxu0 %v2757
    %2946 = vmatprep.subr.bf16.mxu0 %v2770
    %2947 = vmatpush1.bf16.msra.mxu0 %v2769
    %2948 = vmatprep.subr.bf16.mxu0 %v2782
    %2949 = vmatpush1.bf16.msra.mxu0 %v2781
    %2950 = vmatprep.subr.bf16.mxu0 %v2794
    %2951 = vmatpush1.bf16.msra.mxu0 %v2793
    %2952 = vmatprep.subr.bf16.mxu0 %v2806
    %2953 = vmatpush1.bf16.msra.mxu0 %v2805
    %2954 = vmatprep.subr.bf16.mxu0 0
    %2955 = vmatpush1.bf16.msra.mxu0 0
    %2956 = vmatprep.subr.bf16.mxu0 0
    %2957 = vmatpush1.bf16.msra.mxu0 0
    %2958 = vmatprep.subr.bf16.mxu0 0
    %2959 = vmatpush1.bf16.msra.mxu0 0
    %2960 = vmatprep.subr.bf16.mxu0 0
    %2961 = vmatpush1.bf16.msra.mxu0 0
    %2962 = vmatprep.subr.bf16.mxu0 0
    %2963 = vmatpush1.bf16.msra.mxu0 0
    %2964 = vmatprep.subr.bf16.mxu0 0
    %2965 = vmatpush1.bf16.msra.mxu0 0
    %2966 = vmatprep.subr.bf16.mxu0 0
    %2967 = vmatpush1.bf16.msra.mxu0 0
    %2968 = vmatprep.subr.bf16.mxu0 0
    %2969 = vmatpush1.bf16.msra.mxu0 0
    %2970 = vmatprep.mubr.bf16.mxu0 0
    %2971 = vmatmul.mubr.bf16.gmra.mrb[0].mxu0 %v2814
    %v2972 = vpop.f32.mrb[0].mxu0
    %v2973 = vadd.f32 0.0, %v2972
    %v2974 = vpop.f32.mrb[0].mxu0
    %v2975 = vadd.f32 0.0, %v2974
    %v2976 = vpop.f32.mrb[0].mxu0
    %v2977 = vpop.f32.mrb[0].mxu0
    %2978 = vdwg.mxu0
    %2979 = vmatprep.subr.bf16.mxu0 %v2724
    %2980 = vmatpush1.bf16.msra.mxu0 %v2723
    %2981 = vmatprep.subr.bf16.mxu0 %v2736
    %2982 = vmatpush1.bf16.msra.mxu0 %v2735
    %2983 = vmatprep.subr.bf16.mxu0 %v2748
    %2984 = vmatpush1.bf16.msra.mxu0 %v2747
    %2985 = vmatprep.subr.bf16.mxu0 %v2760
    %2986 = vmatpush1.bf16.msra.mxu0 %v2759
    %2987 = vmatprep.subr.bf16.mxu0 %v2772
    %2988 = vmatpush1.bf16.msra.mxu0 %v2771
    %2989 = vmatprep.subr.bf16.mxu0 %v2784
    %2990 = vmatpush1.bf16.msra.mxu0 %v2783
    %2991 = vmatprep.subr.bf16.mxu0 %v2796
    %2992 = vmatpush1.bf16.msra.mxu0 %v2795
    %2993 = vmatprep.subr.bf16.mxu0 %v2808
    %2994 = vmatpush1.bf16.msra.mxu0 %v2807
    %2995 = vmatprep.subr.bf16.mxu0 0
    %2996 = vmatpush1.bf16.msra.mxu0 0
    %2997 = vmatprep.subr.bf16.mxu0 0
    %2998 = vmatpush1.bf16.msra.mxu0 0
    %2999 = vmatprep.subr.bf16.mxu0 0
    %3000 = vmatpush1.bf16.msra.mxu0 0
    %3001 = vmatprep.subr.bf16.mxu0 0
    %3002 = vmatpush1.bf16.msra.mxu0 0
    %3003 = vmatprep.subr.bf16.mxu0 0
    %3004 = vmatpush1.bf16.msra.mxu0 0
    %3005 = vmatprep.subr.bf16.mxu0 0
    %3006 = vmatpush1.bf16.msra.mxu0 0
    %3007 = vmatprep.subr.bf16.mxu0 0
    %3008 = vmatpush1.bf16.msra.mxu0 0
    %3009 = vmatprep.subr.bf16.mxu0 0
    %3010 = vmatpush1.bf16.msra.mxu0 0
    %3011 = vmatprep.mubr.bf16.mxu0 0
    %3012 = vmatmul.mubr.bf16.gmra.mrb[0].mxu0 %v2814
    %v3013 = vpop.f32.mrb[0].mxu0
    %v3014 = vadd.f32 0.0, %v3013
    %v3015 = vpop.f32.mrb[0].mxu0
    %v3016 = vadd.f32 0.0, %v3015
    %v3017 = vpop.f32.mrb[0].mxu0
    %v3018 = vpop.f32.mrb[0].mxu0
    %3019 = vdwg.mxu0
    %3020 = vmatprep.subr.bf16.mxu0 %v2726
    %3021 = vmatpush1.bf16.msra.mxu0 %v2725
    %3022 = vmatprep.subr.bf16.mxu0 %v2738
    %3023 = vmatpush1.bf16.msra.mxu0 %v2737
    %3024 = vmatprep.subr.bf16.mxu0 %v2750
    %3025 = vmatpush1.bf16.msra.mxu0 %v2749
    %3026 = vmatprep.subr.bf16.mxu0 %v2762
    %3027 = vmatpush1.bf16.msra.mxu0 %v2761
    %3028 = vmatprep.subr.bf16.mxu0 %v2774
    %3029 = vmatpush1.bf16.msra.mxu0 %v2773
    %3030 = vmatprep.subr.bf16.mxu0 %v2786
    %3031 = vmatpush1.bf16.msra.mxu0 %v2785
    %3032 = vmatprep.subr.bf16.mxu0 %v2798
    %3033 = vmatpush1.bf16.msra.mxu0 %v2797
    %3034 = vmatprep.subr.bf16.mxu0 %v2810
    %3035 = vmatpush1.bf16.msra.mxu0 %v2809
    %3036 = vmatprep.subr.bf16.mxu0 0
    %3037 = vmatpush1.bf16.msra.mxu0 0
    %3038 = vmatprep.subr.bf16.mxu0 0
    %3039 = vmatpush1.bf16.msra.mxu0 0
    %3040 = vmatprep.subr.bf16.mxu0 0
    %3041 = vmatpush1.bf16.msra.mxu0 0
    %3042 = vmatprep.subr.bf16.mxu0 0
    %3043 = vmatpush1.bf16.msra.mxu0 0
    %3044 = vmatprep.subr.bf16.mxu0 0
    %3045 = vmatpush1.bf16.msra.mxu0 0
    %3046 = vmatprep.subr.bf16.mxu0 0
    %3047 = vmatpush1.bf16.msra.mxu0 0
    %3048 = vmatprep.subr.bf16.mxu0 0
    %3049 = vmatpush1.bf16.msra.mxu0 0
    %3050 = vmatprep.subr.bf16.mxu0 0
    %3051 = vmatpush1.bf16.msra.mxu0 0
    %3052 = vmatprep.mubr.bf16.mxu0 0
    %3053 = vmatmul.mubr.bf16.gmra.mrb[0].mxu0 %v2814
    %v3054 = vpop.f32.mrb[0].mxu0
    %v3055 = vadd.f32 0.0, %v3054
    %v3056 = vpop.f32.mrb[0].mxu0
    %v3057 = vadd.f32 0.0, %v3056
    %v3058 = vpop.f32.mrb[0].mxu0
    %v3059 = vpop.f32.mrb[0].mxu0
    %3060 = vdwg.mxu0
    %v3073 = vcombine.low %v2850, %v2852
    %v3074 = vcombine.low %v2891, %v2893
    %v3076 = vunpack.c.l.s4 1983009808
    %v3077 = vunpack.c.0.s8 %v3076
    %v3078 = vlaneseq
    %v3079 = vshrl.u32 %v3078, 7
    %v3080 = vsub.s32 %v3077, %v3079
    %v3081 = vrot.slane %v3073, %v3080
    %v3083 = vunpack.c.l.s4 1983009808
    %v3084 = vunpack.c.0.s8 %v3083
    %v3085 = vlaneseq
    %v3086 = vshrl.u32 %v3085, 7
    %v3087 = vsub.s32 %v3084, %v3086
    %v3088 = vrot.slane %v3074, %v3087
    %v3089 = vcombine.low %v3081, %v3088
    %v3090 = vcombine.low %v2932, %v2934
    %v3091 = vcombine.low %v2973, %v2975
    %v3093 = vunpack.c.l.s4 1983009808
    %v3094 = vunpack.c.0.s8 %v3093
    %v3095 = vlaneseq
    %v3096 = vshrl.u32 %v3095, 7
    %v3097 = vsub.s32 %v3094, %v3096
    %v3098 = vrot.slane %v3090, %v3097
    %v3100 = vunpack.c.l.s4 1983009808
    %v3101 = vunpack.c.0.s8 %v3100
    %v3102 = vlaneseq
    %v3103 = vshrl.u32 %v3102, 7
    %v3104 = vsub.s32 %v3101, %v3103
    %v3105 = vrot.slane %v3091, %v3104
    %v3106 = vcombine.low %v3098, %v3105
    %v3107 = vcombine.low %v3014, %v3016
    %v3108 = vcombine.low %v3055, %v3057
    %v3110 = vunpack.c.l.s4 1983009808
    %v3111 = vunpack.c.0.s8 %v3110
    %v3112 = vlaneseq
    %v3113 = vshrl.u32 %v3112, 7
    %v3114 = vsub.s32 %v3111, %v3113
    %v3115 = vrot.slane %v3107, %v3114
    %v3117 = vunpack.c.l.s4 1983009808
    %v3118 = vunpack.c.0.s8 %v3117
    %v3119 = vlaneseq
    %v3120 = vshrl.u32 %v3119, 7
    %v3121 = vsub.s32 %v3118, %v3120
    %v3122 = vrot.slane %v3108, %v3121
    %v3123 = vcombine.low %v3115, %v3122
    %v3127 = vadd.f32 %v2811, %v3089
    %v3128 = vadd.f32 %v2812, %v3106
    %v3129 = vadd.f32 %v2813, %v3123
    %3130 = vst [vmem:[#allocation2] sm:$0xff] %v3127
    %3131 = vst [vmem:[#allocation2 + $0x8] sm:$0xff] %v3128
    %3132 = vst [vmem:[#allocation2 + $0x10] sm:$0xff] %v3129
    // Predicated region
    $region46: #{image_guard_forward.1} parent=1 // pred_check
      %p3133 = pneg %p59
    $region47: #{image_guard_forward.1} parent=1 // pred_check_branch
      %3135 = sbr.rel (%p3133) target = $region49
    $region48: #{image_guard_forward.1} parent=1 // pred_region
      %v3136 = vld [vmem:[%s7 + $0xd] sm:$0xff]
      %v3137 = vld [vmem:[%s7 + $0x15] sm:$0x1]
      %v3138 = vld [vmem:[#allocation2] sm:$0xff]
      %v3139 = vld [vmem:[#allocation2 + $0x8] sm:$0xff]
      %v3140 = vld [vmem:[#allocation2 + $0x10] sm:$0xff]
      %v3144 = vcombine.high %v3138, %v3138
      %v3146 = vunpack.c.l.s4 1983009808
      %v3147 = vunpack.c.0.s8 %v3146
      %v3148 = vlaneseq
      %v3149 = vshrl.u32 %v3148, 7
      %v3150 = vsub.s32 %v3147, %v3149
      %v3151 = vrot.slane %v3138, %v3150
      %v3153 = vunpack.c.l.s4 1983009808
      %v3154 = vunpack.c.0.s8 %v3153
      %v3155 = vlaneseq
      %v3156 = vshrl.u32 %v3155, 7
      %v3157 = vsub.s32 %v3154, %v3156
      %v3158 = vrot.slane %v3144, %v3157
      %v3159 = vcombine.high %v3151, %v3151
      %v3160 = vcombine.high %v3158, %v3158
      %v3161 = vcombine.high %v3139, %v3139
      %v3163 = vunpack.c.l.s4 1983009808
      %v3164 = vunpack.c.0.s8 %v3163
      %v3165 = vlaneseq
      %v3166 = vshrl.u32 %v3165, 7
      %v3167 = vsub.s32 %v3164, %v3166
      %v3168 = vrot.slane %v3139, %v3167
      %v3170 = vunpack.c.l.s4 1983009808
      %v3171 = vunpack.c.0.s8 %v3170
      %v3172 = vlaneseq
      %v3173 = vshrl.u32 %v3172, 7
      %v3174 = vsub.s32 %v3171, %v3173
      %v3175 = vrot.slane %v3161, %v3174
      %v3176 = vcombine.high %v3168, %v3168
      %v3177 = vcombine.high %v3175, %v3175
      %v3178 = vcombine.high %v3140, %v3140
      %v3180 = vunpack.c.l.s4 1983009808
      %v3181 = vunpack.c.0.s8 %v3180
      %v3182 = vlaneseq
      %v3183 = vshrl.u32 %v3182, 7
      %v3184 = vsub.s32 %v3181, %v3183
      %v3185 = vrot.slane %v3140, %v3184
      %v3187 = vunpack.c.l.s4 1983009808
      %v3188 = vunpack.c.0.s8 %v3187
      %v3189 = vlaneseq
      %v3190 = vshrl.u32 %v3189, 7
      %v3191 = vsub.s32 %v3188, %v3190
      %v3192 = vrot.slane %v3178, %v3191
      %v3193 = vcombine.high %v3185, %v3185
      %v3194 = vcombine.high %v3192, %v3192
      %v3207 = vpack.c.bf16 %v3151, %v3151
      %v3208 = vpack.c.bf16 %v3159, %v3159
      %v3209 = vpack.c.bf16 %v3158, %v3158
      %v3210 = vpack.c.bf16 %v3160, %v3160
      %v3211 = vpack.c.bf16 %v3168, %v3168
      %v3212 = vpack.c.bf16 %v3176, %v3176
      %v3213 = vpack.c.bf16 %v3175, %v3175
      %v3214 = vpack.c.bf16 %v3177, %v3177
      %v3215 = vpack.c.bf16 %v3185, %v3185
      %v3216 = vpack.c.bf16 %v3193, %v3193
      %v3217 = vpack.c.bf16 %v3192, %v3192
      %v3218 = vpack.c.bf16 %v3194, %v3194
      %v3219 = vld [vmem:[%s4] sm:$0xff]
      %v3220 = vld [vmem:[%s4 + $0x8] sm:$0xff]
      %v3221 = vld [vmem:[%s4 + $0x10] sm:$0xff]
      %v3222 = vld [vmem:[%s4 + $0x18] sm:$0xff]
      %v3223 = vld [vmem:[%s4 + $0x20] sm:$0xff]
      %v3224 = vld [vmem:[%s4 + $0x28] sm:$0xff]
      %v3225 = vld [vmem:[%s4 + $0x30] sm:$0xff]
      %v3226 = vld [vmem:[%s4 + $0x38] sm:$0xff]
      %v3227 = vld [vmem:[%s4 + $0x40] sm:$0xff]
      %v3228 = vld [vmem:[%s4 + $0x48] sm:$0xff]
      %v3229 = vld [vmem:[%s4 + $0x50] sm:$0xff]
      %v3230 = vld [vmem:[%s4 + $0x58] sm:$0xff]
      %v3231 = vld [vmem:[%s4 + $0x60] sm:$0xff]
      %v3232 = vld [vmem:[%s4 + $0x68] sm:$0xff]
      %v3233 = vld [vmem:[%s4 + $0x70] sm:$0xff]
      %v3234 = vld [vmem:[%s4 + $0x78] sm:$0xff]
      %v3235 = vld [vmem:[%s4 + $0x80] sm:$0xff]
      %v3236 = vld [vmem:[%s4 + $0x88] sm:$0xff]
      %v3237 = vld [vmem:[%s4 + $0x90] sm:$0xff]
      %v3238 = vld [vmem:[%s4 + $0x98] sm:$0xff]
      %v3239 = vld [vmem:[%s4 + $0xa0] sm:$0xff]
      %v3240 = vld [vmem:[%s4 + $0xa8] sm:$0xff]
      %v3241 = vld [vmem:[%s4 + $0xb0] sm:$0xff]
      %v3242 = vld [vmem:[%s4 + $0xb8] sm:$0xff]
      %v3243 = vld [vmem:[%s4 + $0xc0] sm:$0xff]
      %v3244 = vld [vmem:[%s4 + $0xc8] sm:$0xff]
      %v3245 = vld [vmem:[%s4 + $0xd0] sm:$0xff]
      %v3246 = vld [vmem:[%s4 + $0xd8] sm:$0xff]
      %v3247 = vld [vmem:[%s4 + $0xe0] sm:$0xff]
      %v3248 = vld [vmem:[%s4 + $0xe8] sm:$0xff]
      %v3249 = vld [vmem:[%s4 + $0xf0] sm:$0xff]
      %v3250 = vld [vmem:[%s4 + $0xf8] sm:$0xff]
      %v3251 = vld [vmem:[%s4 + $0x100] sm:$0xff]
      %v3252 = vld [vmem:[%s4 + $0x108] sm:$0xff]
      %v3253 = vld [vmem:[%s4 + $0x110] sm:$0xff]
      %v3254 = vld [vmem:[%s4 + $0x118] sm:$0xff]
      %v3255 = vld [vmem:[%s4 + $0x120] sm:$0xff]
      %v3256 = vld [vmem:[%s4 + $0x128] sm:$0xff]
      %v3257 = vld [vmem:[%s4 + $0x130] sm:$0xff]
      %v3258 = vld [vmem:[%s4 + $0x138] sm:$0xff]
      %v3259 = vld [vmem:[%s4 + $0x140] sm:$0xff]
      %v3260 = vld [vmem:[%s4 + $0x148] sm:$0xff]
      %v3261 = vld [vmem:[%s4 + $0x150] sm:$0xff]
      %v3262 = vld [vmem:[%s4 + $0x158] sm:$0xff]
      %v3263 = vld [vmem:[%s4 + $0x160] sm:$0xff]
      %v3264 = vld [vmem:[%s4 + $0x168] sm:$0xff]
      %v3265 = vld [vmem:[%s4 + $0x170] sm:$0xff]
      %v3266 = vld [vmem:[%s4 + $0x178] sm:$0xff]
      %v3267 = vld [vmem:[%s4 + $0x180] sm:$0xff]
      %v3268 = vld [vmem:[%s4 + $0x188] sm:$0xff]
      %v3269 = vld [vmem:[%s4 + $0x190] sm:$0xff]
      %v3270 = vld [vmem:[%s4 + $0x198] sm:$0xff]
      %v3271 = vld [vmem:[%s4 + $0x1a0] sm:$0xff]
      %v3272 = vld [vmem:[%s4 + $0x1a8] sm:$0xff]
      %v3273 = vld [vmem:[%s4 + $0x1b0] sm:$0xff]
      %v3274 = vld [vmem:[%s4 + $0x1b8] sm:$0xff]
      %v3275 = vld [vmem:[%s4 + $0x1c0] sm:$0xff]
      %v3276 = vld [vmem:[%s4 + $0x1c8] sm:$0xff]
      %v3277 = vld [vmem:[%s4 + $0x1d0] sm:$0xff]
      %v3278 = vld [vmem:[%s4 + $0x1d8] sm:$0xff]
      %v3279 = vld [vmem:[%s4 + $0x1e0] sm:$0xff]
      %v3280 = vld [vmem:[%s4 + $0x1e8] sm:$0xff]
      %v3281 = vld [vmem:[%s4 + $0x1f0] sm:$0xff]
      %v3282 = vld [vmem:[%s4 + $0x1f8] sm:$0xff]
      %v3283 = vld [vmem:[%s4 + $0x200] sm:$0xff]
      %v3284 = vld [vmem:[%s4 + $0x208] sm:$0xff]
      %v3285 = vld [vmem:[%s4 + $0x210] sm:$0xff]
      %v3286 = vld [vmem:[%s4 + $0x218] sm:$0xff]
      %v3287 = vld [vmem:[%s4 + $0x220] sm:$0xff]
      %v3288 = vld [vmem:[%s4 + $0x228] sm:$0xff]
      %v3289 = vld [vmem:[%s4 + $0x230] sm:$0xff]
      %v3290 = vld [vmem:[%s4 + $0x238] sm:$0xff]
      %v3291 = vld [vmem:[%s4 + $0x240] sm:$0xff]
      %v3292 = vld [vmem:[%s4 + $0x248] sm:$0xff]
      %v3293 = vld [vmem:[%s4 + $0x250] sm:$0xff]
      %v3294 = vld [vmem:[%s4 + $0x258] sm:$0xff]
      %v3295 = vld [vmem:[%s4 + $0x260] sm:$0xff]
      %v3296 = vld [vmem:[%s4 + $0x268] sm:$0xff]
      %v3297 = vld [vmem:[%s4 + $0x270] sm:$0xff]
      %v3298 = vld [vmem:[%s4 + $0x278] sm:$0xff]
      %v3299 = vld [vmem:[%s4 + $0x280] sm:$0xff]
      %v3300 = vld [vmem:[%s4 + $0x288] sm:$0xff]
      %v3301 = vld [vmem:[%s4 + $0x290] sm:$0xff]
      %v3302 = vld [vmem:[%s4 + $0x298] sm:$0xff]
      %v3303 = vld [vmem:[%s4 + $0x2a0] sm:$0xff]
      %v3304 = vld [vmem:[%s4 + $0x2a8] sm:$0xff]
      %v3305 = vld [vmem:[%s4 + $0x2b0] sm:$0xff]
      %v3306 = vld [vmem:[%s4 + $0x2b8] sm:$0xff]
      %v3307 = vld [vmem:[%s4 + $0x2c0] sm:$0xff]
      %v3308 = vld [vmem:[%s4 + $0x2c8] sm:$0xff]
      %v3309 = vld [vmem:[%s4 + $0x2d0] sm:$0xff]
      %v3310 = vld [vmem:[%s4 + $0x2d8] sm:$0xff]
      %v3311 = vld [vmem:[%s4 + $0x2e0] sm:$0xff]
      %v3312 = vld [vmem:[%s4 + $0x2e8] sm:$0xff]
      %v3313 = vld [vmem:[%s4 + $0x2f0] sm:$0xff]
      %v3314 = vld [vmem:[%s4 + $0x2f8] sm:$0xff]
      %v3315 = vld [vmem:[%s4 + $0x300] sm:$0xff]
      %v3316 = vld [vmem:[%s4 + $0x308] sm:$0xff]
      %v3317 = vld [vmem:[%s4 + $0x310] sm:$0xff]
      %v3318 = vld [vmem:[%s4 + $0x318] sm:$0xff]
      %v3319 = vld [vmem:[%s4 + $0x320] sm:$0xff]
      %v3320 = vld [vmem:[%s4 + $0x328] sm:$0xff]
      %v3321 = vld [vmem:[%s4 + $0x330] sm:$0xff]
      %v3322 = vld [vmem:[%s4 + $0x338] sm:$0xff]
      %v3323 = vld [vmem:[%s4 + $0x340] sm:$0xff]
      %v3324 = vld [vmem:[%s4 + $0x348] sm:$0xff]
      %v3325 = vld [vmem:[%s4 + $0x350] sm:$0xff]
      %v3326 = vld [vmem:[%s4 + $0x358] sm:$0xff]
      %v3327 = vld [vmem:[%s4 + $0x360] sm:$0xff]
      %v3328 = vld [vmem:[%s4 + $0x368] sm:$0xff]
      %v3329 = vld [vmem:[%s4 + $0x370] sm:$0xff]
      %v3330 = vld [vmem:[%s4 + $0x378] sm:$0xff]
      %v3331 = vld [vmem:[%s4 + $0x380] sm:$0xff]
      %v3332 = vld [vmem:[%s4 + $0x388] sm:$0xff]
      %v3333 = vld [vmem:[%s4 + $0x390] sm:$0xff]
      %v3334 = vld [vmem:[%s4 + $0x398] sm:$0xff]
      %v3335 = vld [vmem:[%s4 + $0x3a0] sm:$0xff]
      %v3336 = vld [vmem:[%s4 + $0x3a8] sm:$0xff]
      %v3337 = vld [vmem:[%s4 + $0x3b0] sm:$0xff]
      %v3338 = vld [vmem:[%s4 + $0x3b8] sm:$0xff]
      %v3339 = vld [vmem:[%s4 + $0x3c0] sm:$0xff]
      %v3340 = vld [vmem:[%s4 + $0x3c8] sm:$0xff]
      %v3341 = vld [vmem:[%s4 + $0x3d0] sm:$0xff]
      %v3342 = vld [vmem:[%s4 + $0x3d8] sm:$0xff]
      %v3343 = vld [vmem:[%s4 + $0x3e0] sm:$0xff]
      %v3344 = vld [vmem:[%s4 + $0x3e8] sm:$0xff]
      %v3345 = vld [vmem:[%s4 + $0x3f0] sm:$0xff]
      %v3346 = vld [vmem:[%s4 + $0x3f8] sm:$0xff]
      %v3347 = vld [vmem:[%s4 + $0x400] sm:$0xff]
      %v3348 = vld [vmem:[%s4 + $0x408] sm:$0xff]
      %v3349 = vld [vmem:[%s4 + $0x410] sm:$0xff]
      %v3350 = vld [vmem:[%s4 + $0x418] sm:$0xff]
      %v3351 = vld [vmem:[%s4 + $0x420] sm:$0xff]
      %v3352 = vld [vmem:[%s4 + $0x428] sm:$0xff]
      %v3353 = vld [vmem:[%s4 + $0x430] sm:$0xff]
      %v3354 = vld [vmem:[%s4 + $0x438] sm:$0xff]
      %v3355 = vld [vmem:[%s4 + $0x440] sm:$0xff]
      %v3356 = vld [vmem:[%s4 + $0x448] sm:$0xff]
      %v3357 = vld [vmem:[%s4 + $0x450] sm:$0xff]
      %v3358 = vld [vmem:[%s4 + $0x458] sm:$0xff]
      %v3359 = vld [vmem:[%s4 + $0x460] sm:$0xff]
      %v3360 = vld [vmem:[%s4 + $0x468] sm:$0xff]
      %v3361 = vld [vmem:[%s4 + $0x470] sm:$0xff]
      %v3362 = vld [vmem:[%s4 + $0x478] sm:$0xff]
      %v3363 = vld [vmem:[%s4 + $0x480] sm:$0xff]
      %v3364 = vld [vmem:[%s4 + $0x488] sm:$0xff]
      %v3365 = vld [vmem:[%s4 + $0x490] sm:$0xff]
      %v3366 = vld [vmem:[%s4 + $0x498] sm:$0xff]
      %v3367 = vld [vmem:[%s4 + $0x4a0] sm:$0xff]
      %v3368 = vld [vmem:[%s4 + $0x4a8] sm:$0xff]
      %v3369 = vld [vmem:[%s4 + $0x4b0] sm:$0xff]
      %v3370 = vld [vmem:[%s4 + $0x4b8] sm:$0xff]
      %v3371 = vld [vmem:[%s4 + $0x4c0] sm:$0xff]
      %v3372 = vld [vmem:[%s4 + $0x4c8] sm:$0xff]
      %v3373 = vld [vmem:[%s4 + $0x4d0] sm:$0xff]
      %v3374 = vld [vmem:[%s4 + $0x4d8] sm:$0xff]
      %v3375 = vld [vmem:[%s4 + $0x4e0] sm:$0xff]
      %v3376 = vld [vmem:[%s4 + $0x4e8] sm:$0xff]
      %v3377 = vld [vmem:[%s4 + $0x4f0] sm:$0xff]
      %v3378 = vld [vmem:[%s4 + $0x4f8] sm:$0xff]
      %v3379 = vld [vmem:[%s4 + $0x500] sm:$0xff]
      %v3380 = vld [vmem:[%s4 + $0x508] sm:$0xff]
      %v3381 = vld [vmem:[%s4 + $0x510] sm:$0xff]
      %v3382 = vld [vmem:[%s4 + $0x518] sm:$0xff]
      %v3383 = vld [vmem:[%s4 + $0x520] sm:$0xff]
      %v3384 = vld [vmem:[%s4 + $0x528] sm:$0xff]
      %v3385 = vld [vmem:[%s4 + $0x530] sm:$0xff]
      %v3386 = vld [vmem:[%s4 + $0x538] sm:$0xff]
      %v3387 = vld [vmem:[%s4 + $0x540] sm:$0xff]
      %v3388 = vld [vmem:[%s4 + $0x548] sm:$0xff]
      %v3389 = vld [vmem:[%s4 + $0x550] sm:$0xff]
      %v3390 = vld [vmem:[%s4 + $0x558] sm:$0xff]
      %v3391 = vld [vmem:[%s4 + $0x560] sm:$0xff]
      %v3392 = vld [vmem:[%s4 + $0x568] sm:$0xff]
      %v3393 = vld [vmem:[%s4 + $0x570] sm:$0xff]
      %v3394 = vld [vmem:[%s4 + $0x578] sm:$0xff]
      %v3395 = vld [vmem:[%s4 + $0x580] sm:$0xff]
      %v3396 = vld [vmem:[%s4 + $0x588] sm:$0xff]
      %v3397 = vld [vmem:[%s4 + $0x590] sm:$0xff]
      %v3398 = vld [vmem:[%s4 + $0x598] sm:$0xff]
      %v3399 = vld [vmem:[%s4 + $0x5a0] sm:$0xff]
      %v3400 = vld [vmem:[%s4 + $0x5a8] sm:$0xff]
      %v3401 = vld [vmem:[%s4 + $0x5b0] sm:$0xff]
      %v3402 = vld [vmem:[%s4 + $0x5b8] sm:$0xff]
      %v3403 = vld [vmem:[%s4 + $0x5c0] sm:$0xff]
      %v3404 = vld [vmem:[%s4 + $0x5c8] sm:$0xff]
      %v3405 = vld [vmem:[%s4 + $0x5d0] sm:$0xff]
      %v3406 = vld [vmem:[%s4 + $0x5d8] sm:$0xff]
      %v3407 = vld [vmem:[%s4 + $0x5e0] sm:$0xff]
      %v3408 = vld [vmem:[%s4 + $0x5e8] sm:$0xff]
      %v3409 = vld [vmem:[%s4 + $0x5f0] sm:$0xff]
      %v3410 = vld [vmem:[%s4 + $0x5f8] sm:$0xff]
      %v3411 = vld [vmem:[%s4 + $0x600] sm:$0xff]
      %v3412 = vld [vmem:[%s4 + $0x608] sm:$0xff]
      %v3413 = vld [vmem:[%s4 + $0x610] sm:$0xff]
      %v3414 = vld [vmem:[%s4 + $0x618] sm:$0xff]
      %v3415 = vld [vmem:[%s4 + $0x620] sm:$0xff]
      %v3416 = vld [vmem:[%s4 + $0x628] sm:$0xff]
      %v3417 = vld [vmem:[%s4 + $0x630] sm:$0xff]
      %v3418 = vld [vmem:[%s4 + $0x638] sm:$0xff]
      %v3419 = vld [vmem:[%s4 + $0x640] sm:$0xff]
      %v3420 = vld [vmem:[%s4 + $0x648] sm:$0xff]
      %v3421 = vld [vmem:[%s4 + $0x650] sm:$0xff]
      %v3422 = vld [vmem:[%s4 + $0x658] sm:$0xff]
      %v3423 = vld [vmem:[%s4 + $0x660] sm:$0xff]
      %v3424 = vld [vmem:[%s4 + $0x668] sm:$0xff]
      %v3425 = vld [vmem:[%s4 + $0x670] sm:$0xff]
      %v3426 = vld [vmem:[%s4 + $0x678] sm:$0xff]
      %v3427 = vld [vmem:[%s4 + $0x680] sm:$0xff]
      %v3428 = vld [vmem:[%s4 + $0x688] sm:$0xff]
      %v3429 = vld [vmem:[%s4 + $0x690] sm:$0xff]
      %v3430 = vld [vmem:[%s4 + $0x698] sm:$0xff]
      %v3431 = vld [vmem:[%s4 + $0x6a0] sm:$0xff]
      %v3432 = vld [vmem:[%s4 + $0x6a8] sm:$0xff]
      %v3433 = vld [vmem:[%s4 + $0x6b0] sm:$0xff]
      %v3434 = vld [vmem:[%s4 + $0x6b8] sm:$0xff]
      %v3435 = vld [vmem:[%s4 + $0x6c0] sm:$0xff]
      %v3436 = vld [vmem:[%s4 + $0x6c8] sm:$0xff]
      %v3437 = vld [vmem:[%s4 + $0x6d0] sm:$0xff]
      %v3438 = vld [vmem:[%s4 + $0x6d8] sm:$0xff]
      %v3439 = vld [vmem:[%s4 + $0x6e0] sm:$0xff]
      %v3440 = vld [vmem:[%s4 + $0x6e8] sm:$0xff]
      %v3441 = vld [vmem:[%s4 + $0x6f0] sm:$0xff]
      %v3442 = vld [vmem:[%s4 + $0x6f8] sm:$0xff]
      %v3443 = vld [vmem:[%s4 + $0x700] sm:$0xff]
      %v3444 = vld [vmem:[%s4 + $0x708] sm:$0xff]
      %v3445 = vld [vmem:[%s4 + $0x710] sm:$0xff]
      %v3446 = vld [vmem:[%s4 + $0x718] sm:$0xff]
      %v3447 = vld [vmem:[%s4 + $0x720] sm:$0xff]
      %v3448 = vld [vmem:[%s4 + $0x728] sm:$0xff]
      %v3449 = vld [vmem:[%s4 + $0x730] sm:$0xff]
      %v3450 = vld [vmem:[%s4 + $0x738] sm:$0xff]
      %v3451 = vld [vmem:[%s4 + $0x740] sm:$0xff]
      %v3452 = vld [vmem:[%s4 + $0x748] sm:$0xff]
      %v3453 = vld [vmem:[%s4 + $0x750] sm:$0xff]
      %v3454 = vld [vmem:[%s4 + $0x758] sm:$0xff]
      %v3455 = vld [vmem:[%s4 + $0x760] sm:$0xff]
      %v3456 = vld [vmem:[%s4 + $0x768] sm:$0xff]
      %v3457 = vld [vmem:[%s4 + $0x770] sm:$0xff]
      %v3458 = vld [vmem:[%s4 + $0x778] sm:$0xff]
      %v3459 = vld [vmem:[%s4 + $0x780] sm:$0xff]
      %v3460 = vld [vmem:[%s4 + $0x788] sm:$0xff]
      %v3461 = vld [vmem:[%s4 + $0x790] sm:$0xff]
      %v3462 = vld [vmem:[%s4 + $0x798] sm:$0xff]
      %v3463 = vld [vmem:[%s4 + $0x7a0] sm:$0xff]
      %v3464 = vld [vmem:[%s4 + $0x7a8] sm:$0xff]
      %v3465 = vld [vmem:[%s4 + $0x7b0] sm:$0xff]
      %v3466 = vld [vmem:[%s4 + $0x7b8] sm:$0xff]
      %v3467 = vld [vmem:[%s4 + $0x7c0] sm:$0xff]
      %v3468 = vld [vmem:[%s4 + $0x7c8] sm:$0xff]
      %v3469 = vld [vmem:[%s4 + $0x7d0] sm:$0xff]
      %v3470 = vld [vmem:[%s4 + $0x7d8] sm:$0xff]
      %v3471 = vld [vmem:[%s4 + $0x7e0] sm:$0xff]
      %v3472 = vld [vmem:[%s4 + $0x7e8] sm:$0xff]
      %v3473 = vld [vmem:[%s4 + $0x7f0] sm:$0xff]
      %v3474 = vld [vmem:[%s4 + $0x7f8] sm:$0xff]
      %v3475 = vld [vmem:[%s4 + $0x800] sm:$0xff]
      %v3476 = vld [vmem:[%s4 + $0x808] sm:$0xff]
      %v3477 = vld [vmem:[%s4 + $0x810] sm:$0xff]
      %v3478 = vld [vmem:[%s4 + $0x818] sm:$0xff]
      %v3479 = vld [vmem:[%s4 + $0x820] sm:$0xff]
      %v3480 = vld [vmem:[%s4 + $0x828] sm:$0xff]
      %v3481 = vld [vmem:[%s4 + $0x830] sm:$0xff]
      %v3482 = vld [vmem:[%s4 + $0x838] sm:$0xff]
      %v3483 = vld [vmem:[%s4 + $0x840] sm:$0xff]
      %v3484 = vld [vmem:[%s4 + $0x848] sm:$0xff]
      %v3485 = vld [vmem:[%s4 + $0x850] sm:$0xff]
      %v3486 = vld [vmem:[%s4 + $0x858] sm:$0xff]
      %v3487 = vld [vmem:[%s4 + $0x860] sm:$0xff]
      %v3488 = vld [vmem:[%s4 + $0x868] sm:$0xff]
      %v3489 = vld [vmem:[%s4 + $0x870] sm:$0xff]
      %v3490 = vld [vmem:[%s4 + $0x878] sm:$0xff]
      %v3491 = vld [vmem:[%s4 + $0x880] sm:$0xff]
      %v3492 = vld [vmem:[%s4 + $0x888] sm:$0xff]
      %v3493 = vld [vmem:[%s4 + $0x890] sm:$0xff]
      %v3494 = vld [vmem:[%s4 + $0x898] sm:$0xff]
      %v3495 = vld [vmem:[%s4 + $0x8a0] sm:$0xff]
      %v3496 = vld [vmem:[%s4 + $0x8a8] sm:$0xff]
      %v3497 = vld [vmem:[%s4 + $0x8b0] sm:$0xff]
      %v3498 = vld [vmem:[%s4 + $0x8b8] sm:$0xff]
      %v3499 = vld [vmem:[%s4 + $0x8c0] sm:$0xff]
      %v3500 = vld [vmem:[%s4 + $0x8c8] sm:$0xff]
      %v3501 = vld [vmem:[%s4 + $0x8d0] sm:$0xff]
      %v3502 = vld [vmem:[%s4 + $0x8d8] sm:$0xff]
      %v3503 = vld [vmem:[%s4 + $0x8e0] sm:$0xff]
      %v3504 = vld [vmem:[%s4 + $0x8e8] sm:$0xff]
      %v3505 = vld [vmem:[%s4 + $0x8f0] sm:$0xff]
      %v3506 = vld [vmem:[%s4 + $0x8f8] sm:$0xff]
      %v3507 = vld [vmem:[%s4 + $0x900] sm:$0xff]
      %v3508 = vld [vmem:[%s4 + $0x908] sm:$0xff]
      %v3509 = vld [vmem:[%s4 + $0x910] sm:$0xff]
      %v3510 = vld [vmem:[%s4 + $0x918] sm:$0xff]
      %v3511 = vld [vmem:[%s4 + $0x920] sm:$0xff]
      %v3512 = vld [vmem:[%s4 + $0x928] sm:$0xff]
      %v3513 = vld [vmem:[%s4 + $0x930] sm:$0xff]
      %v3514 = vld [vmem:[%s4 + $0x938] sm:$0xff]
      %v3515 = vld [vmem:[%s4 + $0x940] sm:$0xff]
      %v3516 = vld [vmem:[%s4 + $0x948] sm:$0xff]
      %v3517 = vld [vmem:[%s4 + $0x950] sm:$0xff]
      %v3518 = vld [vmem:[%s4 + $0x958] sm:$0xff]
      %v3519 = vld [vmem:[%s4 + $0x960] sm:$0xff]
      %v3520 = vld [vmem:[%s4 + $0x968] sm:$0xff]
      %v3521 = vld [vmem:[%s4 + $0x970] sm:$0xff]
      %v3522 = vld [vmem:[%s4 + $0x978] sm:$0xff]
      %v3523 = vld [vmem:[%s4 + $0x980] sm:$0xff]
      %v3524 = vld [vmem:[%s4 + $0x988] sm:$0xff]
      %v3525 = vld [vmem:[%s4 + $0x990] sm:$0xff]
      %v3526 = vld [vmem:[%s4 + $0x998] sm:$0xff]
      %v3527 = vld [vmem:[%s4 + $0x9a0] sm:$0xff]
      %v3528 = vld [vmem:[%s4 + $0x9a8] sm:$0xff]
      %v3529 = vld [vmem:[%s4 + $0x9b0] sm:$0xff]
      %v3530 = vld [vmem:[%s4 + $0x9b8] sm:$0xff]
      %v3531 = vld [vmem:[%s4 + $0x9c0] sm:$0xff]
      %v3532 = vld [vmem:[%s4 + $0x9c8] sm:$0xff]
      %v3533 = vld [vmem:[%s4 + $0x9d0] sm:$0xff]
      %v3534 = vld [vmem:[%s4 + $0x9d8] sm:$0xff]
      %v3535 = vld [vmem:[%s4 + $0x9e0] sm:$0xff]
      %v3536 = vld [vmem:[%s4 + $0x9e8] sm:$0xff]
      %v3537 = vld [vmem:[%s4 + $0x9f0] sm:$0xff]
      %v3538 = vld [vmem:[%s4 + $0x9f8] sm:$0xff]
      %v3539 = vld [vmem:[%s4 + $0xa00] sm:$0xff]
      %v3540 = vld [vmem:[%s4 + $0xa08] sm:$0xff]
      %v3541 = vld [vmem:[%s4 + $0xa10] sm:$0xff]
      %v3542 = vld [vmem:[%s4 + $0xa18] sm:$0xff]
      %v3543 = vld [vmem:[%s4 + $0xa20] sm:$0xff]
      %v3544 = vld [vmem:[%s4 + $0xa28] sm:$0xff]
      %v3545 = vld [vmem:[%s4 + $0xa30] sm:$0xff]
      %v3546 = vld [vmem:[%s4 + $0xa38] sm:$0xff]
      %v3547 = vld [vmem:[%s4 + $0xa40] sm:$0xff]
      %v3548 = vld [vmem:[%s4 + $0xa48] sm:$0xff]
      %v3549 = vld [vmem:[%s4 + $0xa50] sm:$0xff]
      %v3550 = vld [vmem:[%s4 + $0xa58] sm:$0xff]
      %v3551 = vld [vmem:[%s4 + $0xa60] sm:$0xff]
      %v3552 = vld [vmem:[%s4 + $0xa68] sm:$0xff]
      %v3553 = vld [vmem:[%s4 + $0xa70] sm:$0xff]
      %v3554 = vld [vmem:[%s4 + $0xa78] sm:$0xff]
      %v3555 = vld [vmem:[%s4 + $0xa80] sm:$0xff]
      %v3556 = vld [vmem:[%s4 + $0xa88] sm:$0xff]
      %v3557 = vld [vmem:[%s4 + $0xa90] sm:$0xff]
      %v3558 = vld [vmem:[%s4 + $0xa98] sm:$0xff]
      %v3559 = vld [vmem:[%s4 + $0xaa0] sm:$0xff]
      %v3560 = vld [vmem:[%s4 + $0xaa8] sm:$0xff]
      %v3561 = vld [vmem:[%s4 + $0xab0] sm:$0xff]
      %v3562 = vld [vmem:[%s4 + $0xab8] sm:$0xff]
      %v3563 = vld [vmem:[%s4 + $0xac0] sm:$0xff]
      %v3564 = vld [vmem:[%s4 + $0xac8] sm:$0xff]
      %v3565 = vld [vmem:[%s4 + $0xad0] sm:$0xff]
      %v3566 = vld [vmem:[%s4 + $0xad8] sm:$0xff]
      %v3567 = vld [vmem:[%s4 + $0xae0] sm:$0xff]
      %v3568 = vld [vmem:[%s4 + $0xae8] sm:$0xff]
      %v3569 = vld [vmem:[%s4 + $0xaf0] sm:$0xff]
      %v3570 = vld [vmem:[%s4 + $0xaf8] sm:$0xff]
      %v3571 = vld [vmem:[%s4 + $0xb00] sm:$0xff]
      %v3572 = vld [vmem:[%s4 + $0xb08] sm:$0xff]
      %v3573 = vld [vmem:[%s4 + $0xb10] sm:$0xff]
      %v3574 = vld [vmem:[%s4 + $0xb18] sm:$0xff]
      %v3575 = vld [vmem:[%s4 + $0xb20] sm:$0xff]
      %v3576 = vld [vmem:[%s4 + $0xb28] sm:$0xff]
      %v3577 = vld [vmem:[%s4 + $0xb30] sm:$0xff]
      %v3578 = vld [vmem:[%s4 + $0xb38] sm:$0xff]
      %v3579 = vld [vmem:[%s4 + $0xb40] sm:$0xff]
      %v3580 = vld [vmem:[%s4 + $0xb48] sm:$0xff]
      %v3581 = vld [vmem:[%s4 + $0xb50] sm:$0xff]
      %v3582 = vld [vmem:[%s4 + $0xb58] sm:$0xff]
      %v3583 = vld [vmem:[%s4 + $0xb60] sm:$0xff]
      %v3584 = vld [vmem:[%s4 + $0xb68] sm:$0xff]
      %v3585 = vld [vmem:[%s4 + $0xb70] sm:$0xff]
      %v3586 = vld [vmem:[%s4 + $0xb78] sm:$0xff]
      %v3587 = vld [vmem:[%s4 + $0xb80] sm:$0xff]
      %v3588 = vld [vmem:[%s4 + $0xb88] sm:$0xff]
      %v3589 = vld [vmem:[%s4 + $0xb90] sm:$0xff]
      %v3590 = vld [vmem:[%s4 + $0xb98] sm:$0xff]
      %v3591 = vld [vmem:[%s4 + $0xba0] sm:$0xff]
      %v3592 = vld [vmem:[%s4 + $0xba8] sm:$0xff]
      %v3593 = vld [vmem:[%s4 + $0xbb0] sm:$0xff]
      %v3594 = vld [vmem:[%s4 + $0xbb8] sm:$0xff]
      %v3595 = vld [vmem:[%s4 + $0xbc0] sm:$0xff]
      %v3596 = vld [vmem:[%s4 + $0xbc8] sm:$0xff]
      %v3597 = vld [vmem:[%s4 + $0xbd0] sm:$0xff]
      %v3598 = vld [vmem:[%s4 + $0xbd8] sm:$0xff]
      %v3599 = vld [vmem:[%s4 + $0xbe0] sm:$0xff]
      %v3600 = vld [vmem:[%s4 + $0xbe8] sm:$0xff]
      %v3601 = vld [vmem:[%s4 + $0xbf0] sm:$0xff]
      %v3602 = vld [vmem:[%s4 + $0xbf8] sm:$0xff]
      %v3603 = vunpack.c.l.s8.bf16 %v3219
      %v3604 = vunpack.c.l.s8.bf16 %v3220
      %v3605 = vunpack.c.l.s8.bf16 %v3221
      %v3606 = vunpack.c.l.s8.bf16 %v3222
      %v3607 = vunpack.c.l.s8.bf16 %v3223
      %v3608 = vunpack.c.l.s8.bf16 %v3224
      %v3609 = vunpack.c.l.s8.bf16 %v3225
      %v3610 = vunpack.c.l.s8.bf16 %v3226
      %v3611 = vunpack.c.h.s8.bf16 %v3219
      %v3612 = vunpack.c.h.s8.bf16 %v3220
      %v3613 = vunpack.c.h.s8.bf16 %v3221
      %v3614 = vunpack.c.h.s8.bf16 %v3222
      %v3615 = vunpack.c.h.s8.bf16 %v3223
      %v3616 = vunpack.c.h.s8.bf16 %v3224
      %v3617 = vunpack.c.h.s8.bf16 %v3225
      %v3618 = vunpack.c.h.s8.bf16 %v3226
      %v3619 = vunpack.c.l.s8.bf16 %v3227
      %v3620 = vunpack.c.l.s8.bf16 %v3228
      %v3621 = vunpack.c.l.s8.bf16 %v3229
      %v3622 = vunpack.c.l.s8.bf16 %v3230
      %v3623 = vunpack.c.l.s8.bf16 %v3231
      %v3624 = vunpack.c.l.s8.bf16 %v3232
      %v3625 = vunpack.c.l.s8.bf16 %v3233
      %v3626 = vunpack.c.l.s8.bf16 %v3234
      %v3627 = vunpack.c.h.s8.bf16 %v3227
      %v3628 = vunpack.c.h.s8.bf16 %v3228
      %v3629 = vunpack.c.h.s8.bf16 %v3229
      %v3630 = vunpack.c.h.s8.bf16 %v3230
      %v3631 = vunpack.c.h.s8.bf16 %v3231
      %v3632 = vunpack.c.h.s8.bf16 %v3232
      %v3633 = vunpack.c.h.s8.bf16 %v3233
      %v3634 = vunpack.c.h.s8.bf16 %v3234
      %v3635 = vunpack.c.l.s8.bf16 %v3235
      %v3636 = vunpack.c.l.s8.bf16 %v3236
      %v3637 = vunpack.c.l.s8.bf16 %v3237
      %v3638 = vunpack.c.l.s8.bf16 %v3238
      %v3639 = vunpack.c.l.s8.bf16 %v3239
      %v3640 = vunpack.c.l.s8.bf16 %v3240
      %v3641 = vunpack.c.l.s8.bf16 %v3241
      %v3642 = vunpack.c.l.s8.bf16 %v3242
      %v3643 = vunpack.c.h.s8.bf16 %v3235
      %v3644 = vunpack.c.h.s8.bf16 %v3236
      %v3645 = vunpack.c.h.s8.bf16 %v3237
      %v3646 = vunpack.c.h.s8.bf16 %v3238
      %v3647 = vunpack.c.h.s8.bf16 %v3239
      %v3648 = vunpack.c.h.s8.bf16 %v3240
      %v3649 = vunpack.c.h.s8.bf16 %v3241
      %v3650 = vunpack.c.h.s8.bf16 %v3242
      %v3651 = vunpack.c.l.s8.bf16 %v3243
      %v3652 = vunpack.c.l.s8.bf16 %v3244
      %v3653 = vunpack.c.l.s8.bf16 %v3245
      %v3654 = vunpack.c.l.s8.bf16 %v3246
      %v3655 = vunpack.c.l.s8.bf16 %v3247
      %v3656 = vunpack.c.l.s8.bf16 %v3248
      %v3657 = vunpack.c.l.s8.bf16 %v3249
      %v3658 = vunpack.c.l.s8.bf16 %v3250
      %v3659 = vunpack.c.h.s8.bf16 %v3243
      %v3660 = vunpack.c.h.s8.bf16 %v3244
      %v3661 = vunpack.c.h.s8.bf16 %v3245
      %v3662 = vunpack.c.h.s8.bf16 %v3246
      %v3663 = vunpack.c.h.s8.bf16 %v3247
      %v3664 = vunpack.c.h.s8.bf16 %v3248
      %v3665 = vunpack.c.h.s8.bf16 %v3249
      %v3666 = vunpack.c.h.s8.bf16 %v3250
      %v3667 = vunpack.c.l.s8.bf16 %v3251
      %v3668 = vunpack.c.l.s8.bf16 %v3252
      %v3669 = vunpack.c.l.s8.bf16 %v3253
      %v3670 = vunpack.c.l.s8.bf16 %v3254
      %v3671 = vunpack.c.l.s8.bf16 %v3255
      %v3672 = vunpack.c.l.s8.bf16 %v3256
      %v3673 = vunpack.c.l.s8.bf16 %v3257
      %v3674 = vunpack.c.l.s8.bf16 %v3258
      %v3675 = vunpack.c.h.s8.bf16 %v3251
      %v3676 = vunpack.c.h.s8.bf16 %v3252
      %v3677 = vunpack.c.h.s8.bf16 %v3253
      %v3678 = vunpack.c.h.s8.bf16 %v3254
      %v3679 = vunpack.c.h.s8.bf16 %v3255
      %v3680 = vunpack.c.h.s8.bf16 %v3256
      %v3681 = vunpack.c.h.s8.bf16 %v3257
      %v3682 = vunpack.c.h.s8.bf16 %v3258
      %v3683 = vunpack.c.l.s8.bf16 %v3259
      %v3684 = vunpack.c.l.s8.bf16 %v3260
      %v3685 = vunpack.c.l.s8.bf16 %v3261
      %v3686 = vunpack.c.l.s8.bf16 %v3262
      %v3687 = vunpack.c.l.s8.bf16 %v3263
      %v3688 = vunpack.c.l.s8.bf16 %v3264
      %v3689 = vunpack.c.l.s8.bf16 %v3265
      %v3690 = vunpack.c.l.s8.bf16 %v3266
      %v3691 = vunpack.c.h.s8.bf16 %v3259
      %v3692 = vunpack.c.h.s8.bf16 %v3260
      %v3693 = vunpack.c.h.s8.bf16 %v3261
      %v3694 = vunpack.c.h.s8.bf16 %v3262
      %v3695 = vunpack.c.h.s8.bf16 %v3263
      %v3696 = vunpack.c.h.s8.bf16 %v3264
      %v3697 = vunpack.c.h.s8.bf16 %v3265
      %v3698 = vunpack.c.h.s8.bf16 %v3266
      %v3699 = vunpack.c.l.s8.bf16 %v3267
      %v3700 = vunpack.c.l.s8.bf16 %v3268
      %v3701 = vunpack.c.l.s8.bf16 %v3269
      %v3702 = vunpack.c.l.s8.bf16 %v3270
      %v3703 = vunpack.c.l.s8.bf16 %v3271
      %v3704 = vunpack.c.l.s8.bf16 %v3272
      %v3705 = vunpack.c.l.s8.bf16 %v3273
      %v3706 = vunpack.c.l.s8.bf16 %v3274
      %v3707 = vunpack.c.h.s8.bf16 %v3267
      %v3708 = vunpack.c.h.s8.bf16 %v3268
      %v3709 = vunpack.c.h.s8.bf16 %v3269
      %v3710 = vunpack.c.h.s8.bf16 %v3270
      %v3711 = vunpack.c.h.s8.bf16 %v3271
      %v3712 = vunpack.c.h.s8.bf16 %v3272
      %v3713 = vunpack.c.h.s8.bf16 %v3273
      %v3714 = vunpack.c.h.s8.bf16 %v3274
      %v3715 = vunpack.c.l.s8.bf16 %v3275
      %v3716 = vunpack.c.l.s8.bf16 %v3276
      %v3717 = vunpack.c.l.s8.bf16 %v3277
      %v3718 = vunpack.c.l.s8.bf16 %v3278
      %v3719 = vunpack.c.l.s8.bf16 %v3279
      %v3720 = vunpack.c.l.s8.bf16 %v3280
      %v3721 = vunpack.c.l.s8.bf16 %v3281
      %v3722 = vunpack.c.l.s8.bf16 %v3282
      %v3723 = vunpack.c.h.s8.bf16 %v3275
      %v3724 = vunpack.c.h.s8.bf16 %v3276
      %v3725 = vunpack.c.h.s8.bf16 %v3277
      %v3726 = vunpack.c.h.s8.bf16 %v3278
      %v3727 = vunpack.c.h.s8.bf16 %v3279
      %v3728 = vunpack.c.h.s8.bf16 %v3280
      %v3729 = vunpack.c.h.s8.bf16 %v3281
      %v3730 = vunpack.c.h.s8.bf16 %v3282
      %v3731 = vunpack.c.l.s8.bf16 %v3283
      %v3732 = vunpack.c.l.s8.bf16 %v3284
      %v3733 = vunpack.c.l.s8.bf16 %v3285
      %v3734 = vunpack.c.l.s8.bf16 %v3286
      %v3735 = vunpack.c.l.s8.bf16 %v3287
      %v3736 = vunpack.c.l.s8.bf16 %v3288
      %v3737 = vunpack.c.l.s8.bf16 %v3289
      %v3738 = vunpack.c.l.s8.bf16 %v3290
      %v3739 = vunpack.c.h.s8.bf16 %v3283
      %v3740 = vunpack.c.h.s8.bf16 %v3284
      %v3741 = vunpack.c.h.s8.bf16 %v3285
      %v3742 = vunpack.c.h.s8.bf16 %v3286
      %v3743 = vunpack.c.h.s8.bf16 %v3287
      %v3744 = vunpack.c.h.s8.bf16 %v3288
      %v3745 = vunpack.c.h.s8.bf16 %v3289
      %v3746 = vunpack.c.h.s8.bf16 %v3290
      %v3747 = vunpack.c.l.s8.bf16 %v3291
      %v3748 = vunpack.c.l.s8.bf16 %v3292
      %v3749 = vunpack.c.l.s8.bf16 %v3293
      %v3750 = vunpack.c.l.s8.bf16 %v3294
      %v3751 = vunpack.c.l.s8.bf16 %v3295
      %v3752 = vunpack.c.l.s8.bf16 %v3296
      %v3753 = vunpack.c.l.s8.bf16 %v3297
      %v3754 = vunpack.c.l.s8.bf16 %v3298
      %v3755 = vunpack.c.h.s8.bf16 %v3291
      %v3756 = vunpack.c.h.s8.bf16 %v3292
      %v3757 = vunpack.c.h.s8.bf16 %v3293
      %v3758 = vunpack.c.h.s8.bf16 %v3294
      %v3759 = vunpack.c.h.s8.bf16 %v3295
      %v3760 = vunpack.c.h.s8.bf16 %v3296
      %v3761 = vunpack.c.h.s8.bf16 %v3297
      %v3762 = vunpack.c.h.s8.bf16 %v3298
      %v3763 = vunpack.c.l.s8.bf16 %v3299
      %v3764 = vunpack.c.l.s8.bf16 %v3300
      %v3765 = vunpack.c.l.s8.bf16 %v3301
      %v3766 = vunpack.c.l.s8.bf16 %v3302
      %v3767 = vunpack.c.l.s8.bf16 %v3303
      %v3768 = vunpack.c.l.s8.bf16 %v3304
      %v3769 = vunpack.c.l.s8.bf16 %v3305
      %v3770 = vunpack.c.l.s8.bf16 %v3306
      %v3771 = vunpack.c.h.s8.bf16 %v3299
      %v3772 = vunpack.c.h.s8.bf16 %v3300
      %v3773 = vunpack.c.h.s8.bf16 %v3301
      %v3774 = vunpack.c.h.s8.bf16 %v3302
      %v3775 = vunpack.c.h.s8.bf16 %v3303
      %v3776 = vunpack.c.h.s8.bf16 %v3304
      %v3777 = vunpack.c.h.s8.bf16 %v3305
      %v3778 = vunpack.c.h.s8.bf16 %v3306
      %v3779 = vunpack.c.l.s8.bf16 %v3307
      %v3780 = vunpack.c.l.s8.bf16 %v3308
      %v3781 = vunpack.c.l.s8.bf16 %v3309
      %v3782 = vunpack.c.l.s8.bf16 %v3310
      %v3783 = vunpack.c.l.s8.bf16 %v3311
      %v3784 = vunpack.c.l.s8.bf16 %v3312
      %v3785 = vunpack.c.l.s8.bf16 %v3313
      %v3786 = vunpack.c.l.s8.bf16 %v3314
      %v3787 = vunpack.c.h.s8.bf16 %v3307
      %v3788 = vunpack.c.h.s8.bf16 %v3308
      %v3789 = vunpack.c.h.s8.bf16 %v3309
      %v3790 = vunpack.c.h.s8.bf16 %v3310
      %v3791 = vunpack.c.h.s8.bf16 %v3311
      %v3792 = vunpack.c.h.s8.bf16 %v3312
      %v3793 = vunpack.c.h.s8.bf16 %v3313
      %v3794 = vunpack.c.h.s8.bf16 %v3314
      %v3795 = vunpack.c.l.s8.bf16 %v3315
      %v3796 = vunpack.c.l.s8.bf16 %v3316
      %v3797 = vunpack.c.l.s8.bf16 %v3317
      %v3798 = vunpack.c.l.s8.bf16 %v3318
      %v3799 = vunpack.c.l.s8.bf16 %v3319
      %v3800 = vunpack.c.l.s8.bf16 %v3320
      %v3801 = vunpack.c.l.s8.bf16 %v3321
      %v3802 = vunpack.c.l.s8.bf16 %v3322
      %v3803 = vunpack.c.h.s8.bf16 %v3315
      %v3804 = vunpack.c.h.s8.bf16 %v3316
      %v3805 = vunpack.c.h.s8.bf16 %v3317
      %v3806 = vunpack.c.h.s8.bf16 %v3318
      %v3807 = vunpack.c.h.s8.bf16 %v3319
      %v3808 = vunpack.c.h.s8.bf16 %v3320
      %v3809 = vunpack.c.h.s8.bf16 %v3321
      %v3810 = vunpack.c.h.s8.bf16 %v3322
      %v3811 = vunpack.c.l.s8.bf16 %v3323
      %v3812 = vunpack.c.l.s8.bf16 %v3324
      %v3813 = vunpack.c.l.s8.bf16 %v3325
      %v3814 = vunpack.c.l.s8.bf16 %v3326
      %v3815 = vunpack.c.l.s8.bf16 %v3327
      %v3816 = vunpack.c.l.s8.bf16 %v3328
      %v3817 = vunpack.c.l.s8.bf16 %v3329
      %v3818 = vunpack.c.l.s8.bf16 %v3330
      %v3819 = vunpack.c.h.s8.bf16 %v3323
      %v3820 = vunpack.c.h.s8.bf16 %v3324
      %v3821 = vunpack.c.h.s8.bf16 %v3325
      %v3822 = vunpack.c.h.s8.bf16 %v3326
      %v3823 = vunpack.c.h.s8.bf16 %v3327
      %v3824 = vunpack.c.h.s8.bf16 %v3328
      %v3825 = vunpack.c.h.s8.bf16 %v3329
      %v3826 = vunpack.c.h.s8.bf16 %v3330
      %v3827 = vunpack.c.l.s8.bf16 %v3331
      %v3828 = vunpack.c.l.s8.bf16 %v3332
      %v3829 = vunpack.c.l.s8.bf16 %v3333
      %v3830 = vunpack.c.l.s8.bf16 %v3334
      %v3831 = vunpack.c.l.s8.bf16 %v3335
      %v3832 = vunpack.c.l.s8.bf16 %v3336
      %v3833 = vunpack.c.l.s8.bf16 %v3337
      %v3834 = vunpack.c.l.s8.bf16 %v3338
      %v3835 = vunpack.c.h.s8.bf16 %v3331
      %v3836 = vunpack.c.h.s8.bf16 %v3332
      %v3837 = vunpack.c.h.s8.bf16 %v3333
      %v3838 = vunpack.c.h.s8.bf16 %v3334
      %v3839 = vunpack.c.h.s8.bf16 %v3335
      %v3840 = vunpack.c.h.s8.bf16 %v3336
      %v3841 = vunpack.c.h.s8.bf16 %v3337
      %v3842 = vunpack.c.h.s8.bf16 %v3338
      %v3843 = vunpack.c.l.s8.bf16 %v3339
      %v3844 = vunpack.c.l.s8.bf16 %v3340
      %v3845 = vunpack.c.l.s8.bf16 %v3341
      %v3846 = vunpack.c.l.s8.bf16 %v3342
      %v3847 = vunpack.c.l.s8.bf16 %v3343
      %v3848 = vunpack.c.l.s8.bf16 %v3344
      %v3849 = vunpack.c.l.s8.bf16 %v3345
      %v3850 = vunpack.c.l.s8.bf16 %v3346
      %v3851 = vunpack.c.h.s8.bf16 %v3339
      %v3852 = vunpack.c.h.s8.bf16 %v3340
      %v3853 = vunpack.c.h.s8.bf16 %v3341
      %v3854 = vunpack.c.h.s8.bf16 %v3342
      %v3855 = vunpack.c.h.s8.bf16 %v3343
      %v3856 = vunpack.c.h.s8.bf16 %v3344
      %v3857 = vunpack.c.h.s8.bf16 %v3345
      %v3858 = vunpack.c.h.s8.bf16 %v3346
      %v3859 = vunpack.c.l.s8.bf16 %v3347
      %v3860 = vunpack.c.l.s8.bf16 %v3348
      %v3861 = vunpack.c.l.s8.bf16 %v3349
      %v3862 = vunpack.c.l.s8.bf16 %v3350
      %v3863 = vunpack.c.l.s8.bf16 %v3351
      %v3864 = vunpack.c.l.s8.bf16 %v3352
      %v3865 = vunpack.c.l.s8.bf16 %v3353
      %v3866 = vunpack.c.l.s8.bf16 %v3354
      %v3867 = vunpack.c.h.s8.bf16 %v3347
      %v3868 = vunpack.c.h.s8.bf16 %v3348
      %v3869 = vunpack.c.h.s8.bf16 %v3349
      %v3870 = vunpack.c.h.s8.bf16 %v3350
      %v3871 = vunpack.c.h.s8.bf16 %v3351
      %v3872 = vunpack.c.h.s8.bf16 %v3352
      %v3873 = vunpack.c.h.s8.bf16 %v3353
      %v3874 = vunpack.c.h.s8.bf16 %v3354
      %v3875 = vunpack.c.l.s8.bf16 %v3355
      %v3876 = vunpack.c.l.s8.bf16 %v3356
      %v3877 = vunpack.c.l.s8.bf16 %v3357
      %v3878 = vunpack.c.l.s8.bf16 %v3358
      %v3879 = vunpack.c.l.s8.bf16 %v3359
      %v3880 = vunpack.c.l.s8.bf16 %v3360
      %v3881 = vunpack.c.l.s8.bf16 %v3361
      %v3882 = vunpack.c.l.s8.bf16 %v3362
      %v3883 = vunpack.c.h.s8.bf16 %v3355
      %v3884 = vunpack.c.h.s8.bf16 %v3356
      %v3885 = vunpack.c.h.s8.bf16 %v3357
      %v3886 = vunpack.c.h.s8.bf16 %v3358
      %v3887 = vunpack.c.h.s8.bf16 %v3359
      %v3888 = vunpack.c.h.s8.bf16 %v3360
      %v3889 = vunpack.c.h.s8.bf16 %v3361
      %v3890 = vunpack.c.h.s8.bf16 %v3362
      %v3891 = vunpack.c.l.s8.bf16 %v3363
      %v3892 = vunpack.c.l.s8.bf16 %v3364
      %v3893 = vunpack.c.l.s8.bf16 %v3365
      %v3894 = vunpack.c.l.s8.bf16 %v3366
      %v3895 = vunpack.c.l.s8.bf16 %v3367
      %v3896 = vunpack.c.l.s8.bf16 %v3368
      %v3897 = vunpack.c.l.s8.bf16 %v3369
      %v3898 = vunpack.c.l.s8.bf16 %v3370
      %v3899 = vunpack.c.h.s8.bf16 %v3363
      %v3900 = vunpack.c.h.s8.bf16 %v3364
      %v3901 = vunpack.c.h.s8.bf16 %v3365
      %v3902 = vunpack.c.h.s8.bf16 %v3366
      %v3903 = vunpack.c.h.s8.bf16 %v3367
      %v3904 = vunpack.c.h.s8.bf16 %v3368
      %v3905 = vunpack.c.h.s8.bf16 %v3369
      %v3906 = vunpack.c.h.s8.bf16 %v3370
      %v3907 = vunpack.c.l.s8.bf16 %v3371
      %v3908 = vunpack.c.l.s8.bf16 %v3372
      %v3909 = vunpack.c.l.s8.bf16 %v3373
      %v3910 = vunpack.c.l.s8.bf16 %v3374
      %v3911 = vunpack.c.l.s8.bf16 %v3375
      %v3912 = vunpack.c.l.s8.bf16 %v3376
      %v3913 = vunpack.c.l.s8.bf16 %v3377
      %v3914 = vunpack.c.l.s8.bf16 %v3378
      %v3915 = vunpack.c.h.s8.bf16 %v3371
      %v3916 = vunpack.c.h.s8.bf16 %v3372
      %v3917 = vunpack.c.h.s8.bf16 %v3373
      %v3918 = vunpack.c.h.s8.bf16 %v3374
      %v3919 = vunpack.c.h.s8.bf16 %v3375
      %v3920 = vunpack.c.h.s8.bf16 %v3376
      %v3921 = vunpack.c.h.s8.bf16 %v3377
      %v3922 = vunpack.c.h.s8.bf16 %v3378
      %v3923 = vunpack.c.l.s8.bf16 %v3379
      %v3924 = vunpack.c.l.s8.bf16 %v3380
      %v3925 = vunpack.c.l.s8.bf16 %v3381
      %v3926 = vunpack.c.l.s8.bf16 %v3382
      %v3927 = vunpack.c.l.s8.bf16 %v3383
      %v3928 = vunpack.c.l.s8.bf16 %v3384
      %v3929 = vunpack.c.l.s8.bf16 %v3385
      %v3930 = vunpack.c.l.s8.bf16 %v3386
      %v3931 = vunpack.c.h.s8.bf16 %v3379
      %v3932 = vunpack.c.h.s8.bf16 %v3380
      %v3933 = vunpack.c.h.s8.bf16 %v3381
      %v3934 = vunpack.c.h.s8.bf16 %v3382
      %v3935 = vunpack.c.h.s8.bf16 %v3383
      %v3936 = vunpack.c.h.s8.bf16 %v3384
      %v3937 = vunpack.c.h.s8.bf16 %v3385
      %v3938 = vunpack.c.h.s8.bf16 %v3386
      %v3939 = vunpack.c.l.s8.bf16 %v3387
      %v3940 = vunpack.c.l.s8.bf16 %v3388
      %v3941 = vunpack.c.l.s8.bf16 %v3389
      %v3942 = vunpack.c.l.s8.bf16 %v3390
      %v3943 = vunpack.c.l.s8.bf16 %v3391
      %v3944 = vunpack.c.l.s8.bf16 %v3392
      %v3945 = vunpack.c.l.s8.bf16 %v3393
      %v3946 = vunpack.c.l.s8.bf16 %v3394
      %v3947 = vunpack.c.h.s8.bf16 %v3387
      %v3948 = vunpack.c.h.s8.bf16 %v3388
      %v3949 = vunpack.c.h.s8.bf16 %v3389
      %v3950 = vunpack.c.h.s8.bf16 %v3390
      %v3951 = vunpack.c.h.s8.bf16 %v3391
      %v3952 = vunpack.c.h.s8.bf16 %v3392
      %v3953 = vunpack.c.h.s8.bf16 %v3393
      %v3954 = vunpack.c.h.s8.bf16 %v3394
      %v3955 = vunpack.c.l.s8.bf16 %v3395
      %v3956 = vunpack.c.l.s8.bf16 %v3396
      %v3957 = vunpack.c.l.s8.bf16 %v3397
      %v3958 = vunpack.c.l.s8.bf16 %v3398
      %v3959 = vunpack.c.l.s8.bf16 %v3399
      %v3960 = vunpack.c.l.s8.bf16 %v3400
      %v3961 = vunpack.c.l.s8.bf16 %v3401
      %v3962 = vunpack.c.l.s8.bf16 %v3402
      %v3963 = vunpack.c.h.s8.bf16 %v3395
      %v3964 = vunpack.c.h.s8.bf16 %v3396
      %v3965 = vunpack.c.h.s8.bf16 %v3397
      %v3966 = vunpack.c.h.s8.bf16 %v3398
      %v3967 = vunpack.c.h.s8.bf16 %v3399
      %v3968 = vunpack.c.h.s8.bf16 %v3400
      %v3969 = vunpack.c.h.s8.bf16 %v3401
      %v3970 = vunpack.c.h.s8.bf16 %v3402
      %v3971 = vunpack.c.l.s8.bf16 %v3403
      %v3972 = vunpack.c.l.s8.bf16 %v3404
      %v3973 = vunpack.c.l.s8.bf16 %v3405
      %v3974 = vunpack.c.l.s8.bf16 %v3406
      %v3975 = vunpack.c.l.s8.bf16 %v3407
      %v3976 = vunpack.c.l.s8.bf16 %v3408
      %v3977 = vunpack.c.l.s8.bf16 %v3409
      %v3978 = vunpack.c.l.s8.bf16 %v3410
      %v3979 = vunpack.c.h.s8.bf16 %v3403
      %v3980 = vunpack.c.h.s8.bf16 %v3404
      %v3981 = vunpack.c.h.s8.bf16 %v3405
      %v3982 = vunpack.c.h.s8.bf16 %v3406
      %v3983 = vunpack.c.h.s8.bf16 %v3407
      %v3984 = vunpack.c.h.s8.bf16 %v3408
      %v3985 = vunpack.c.h.s8.bf16 %v3409
      %v3986 = vunpack.c.h.s8.bf16 %v3410
      %v3987 = vunpack.c.l.s8.bf16 %v3411
      %v3988 = vunpack.c.l.s8.bf16 %v3412
      %v3989 = vunpack.c.l.s8.bf16 %v3413
      %v3990 = vunpack.c.l.s8.bf16 %v3414
      %v3991 = vunpack.c.l.s8.bf16 %v3415
      %v3992 = vunpack.c.l.s8.bf16 %v3416
      %v3993 = vunpack.c.l.s8.bf16 %v3417
      %v3994 = vunpack.c.l.s8.bf16 %v3418
      %v3995 = vunpack.c.h.s8.bf16 %v3411
      %v3996 = vunpack.c.h.s8.bf16 %v3412
      %v3997 = vunpack.c.h.s8.bf16 %v3413
      %v3998 = vunpack.c.h.s8.bf16 %v3414
      %v3999 = vunpack.c.h.s8.bf16 %v3415
      %v4000 = vunpack.c.h.s8.bf16 %v3416
      %v4001 = vunpack.c.h.s8.bf16 %v3417
      %v4002 = vunpack.c.h.s8.bf16 %v3418
      %v4003 = vunpack.c.l.s8.bf16 %v3419
      %v4004 = vunpack.c.l.s8.bf16 %v3420
      %v4005 = vunpack.c.l.s8.bf16 %v3421
      %v4006 = vunpack.c.l.s8.bf16 %v3422
      %v4007 = vunpack.c.l.s8.bf16 %v3423
      %v4008 = vunpack.c.l.s8.bf16 %v3424
      %v4009 = vunpack.c.l.s8.bf16 %v3425
      %v4010 = vunpack.c.l.s8.bf16 %v3426
      %v4011 = vunpack.c.h.s8.bf16 %v3419
      %v4012 = vunpack.c.h.s8.bf16 %v3420
      %v4013 = vunpack.c.h.s8.bf16 %v3421
      %v4014 = vunpack.c.h.s8.bf16 %v3422
      %v4015 = vunpack.c.h.s8.bf16 %v3423
      %v4016 = vunpack.c.h.s8.bf16 %v3424
      %v4017 = vunpack.c.h.s8.bf16 %v3425
      %v4018 = vunpack.c.h.s8.bf16 %v3426
      %v4019 = vunpack.c.l.s8.bf16 %v3427
      %v4020 = vunpack.c.l.s8.bf16 %v3428
      %v4021 = vunpack.c.l.s8.bf16 %v3429
      %v4022 = vunpack.c.l.s8.bf16 %v3430
      %v4023 = vunpack.c.l.s8.bf16 %v3431
      %v4024 = vunpack.c.l.s8.bf16 %v3432
      %v4025 = vunpack.c.l.s8.bf16 %v3433
      %v4026 = vunpack.c.l.s8.bf16 %v3434
      %v4027 = vunpack.c.h.s8.bf16 %v3427
      %v4028 = vunpack.c.h.s8.bf16 %v3428
      %v4029 = vunpack.c.h.s8.bf16 %v3429
      %v4030 = vunpack.c.h.s8.bf16 %v3430
      %v4031 = vunpack.c.h.s8.bf16 %v3431
      %v4032 = vunpack.c.h.s8.bf16 %v3432
      %v4033 = vunpack.c.h.s8.bf16 %v3433
      %v4034 = vunpack.c.h.s8.bf16 %v3434
      %v4035 = vunpack.c.l.s8.bf16 %v3435
      %v4036 = vunpack.c.l.s8.bf16 %v3436
      %v4037 = vunpack.c.l.s8.bf16 %v3437
      %v4038 = vunpack.c.l.s8.bf16 %v3438
      %v4039 = vunpack.c.l.s8.bf16 %v3439
      %v4040 = vunpack.c.l.s8.bf16 %v3440
      %v4041 = vunpack.c.l.s8.bf16 %v3441
      %v4042 = vunpack.c.l.s8.bf16 %v3442
      %v4043 = vunpack.c.h.s8.bf16 %v3435
      %v4044 = vunpack.c.h.s8.bf16 %v3436
      %v4045 = vunpack.c.h.s8.bf16 %v3437
      %v4046 = vunpack.c.h.s8.bf16 %v3438
      %v4047 = vunpack.c.h.s8.bf16 %v3439
      %v4048 = vunpack.c.h.s8.bf16 %v3440
      %v4049 = vunpack.c.h.s8.bf16 %v3441
      %v4050 = vunpack.c.h.s8.bf16 %v3442
      %v4051 = vunpack.c.l.s8.bf16 %v3443
      %v4052 = vunpack.c.l.s8.bf16 %v3444
      %v4053 = vunpack.c.l.s8.bf16 %v3445
      %v4054 = vunpack.c.l.s8.bf16 %v3446
      %v4055 = vunpack.c.l.s8.bf16 %v3447
      %v4056 = vunpack.c.l.s8.bf16 %v3448
      %v4057 = vunpack.c.l.s8.bf16 %v3449
      %v4058 = vunpack.c.l.s8.bf16 %v3450
      %v4059 = vunpack.c.h.s8.bf16 %v3443
      %v4060 = vunpack.c.h.s8.bf16 %v3444
      %v4061 = vunpack.c.h.s8.bf16 %v3445
      %v4062 = vunpack.c.h.s8.bf16 %v3446
      %v4063 = vunpack.c.h.s8.bf16 %v3447
      %v4064 = vunpack.c.h.s8.bf16 %v3448
      %v4065 = vunpack.c.h.s8.bf16 %v3449
      %v4066 = vunpack.c.h.s8.bf16 %v3450
      %v4067 = vunpack.c.l.s8.bf16 %v3451
      %v4068 = vunpack.c.l.s8.bf16 %v3452
      %v4069 = vunpack.c.l.s8.bf16 %v3453
      %v4070 = vunpack.c.l.s8.bf16 %v3454
      %v4071 = vunpack.c.l.s8.bf16 %v3455
      %v4072 = vunpack.c.l.s8.bf16 %v3456
      %v4073 = vunpack.c.l.s8.bf16 %v3457
      %v4074 = vunpack.c.l.s8.bf16 %v3458
      %v4075 = vunpack.c.h.s8.bf16 %v3451
      %v4076 = vunpack.c.h.s8.bf16 %v3452
      %v4077 = vunpack.c.h.s8.bf16 %v3453
      %v4078 = vunpack.c.h.s8.bf16 %v3454
      %v4079 = vunpack.c.h.s8.bf16 %v3455
      %v4080 = vunpack.c.h.s8.bf16 %v3456
      %v4081 = vunpack.c.h.s8.bf16 %v3457
      %v4082 = vunpack.c.h.s8.bf16 %v3458
      %v4083 = vunpack.c.l.s8.bf16 %v3459
      %v4084 = vunpack.c.l.s8.bf16 %v3460
      %v4085 = vunpack.c.l.s8.bf16 %v3461
      %v4086 = vunpack.c.l.s8.bf16 %v3462
      %v4087 = vunpack.c.l.s8.bf16 %v3463
      %v4088 = vunpack.c.l.s8.bf16 %v3464
      %v4089 = vunpack.c.l.s8.bf16 %v3465
      %v4090 = vunpack.c.l.s8.bf16 %v3466
      %v4091 = vunpack.c.h.s8.bf16 %v3459
      %v4092 = vunpack.c.h.s8.bf16 %v3460
      %v4093 = vunpack.c.h.s8.bf16 %v3461
      %v4094 = vunpack.c.h.s8.bf16 %v3462
      %v4095 = vunpack.c.h.s8.bf16 %v3463
      %v4096 = vunpack.c.h.s8.bf16 %v3464
      %v4097 = vunpack.c.h.s8.bf16 %v3465
      %v4098 = vunpack.c.h.s8.bf16 %v3466
      %v4099 = vunpack.c.l.s8.bf16 %v3467
      %v4100 = vunpack.c.l.s8.bf16 %v3468
      %v4101 = vunpack.c.l.s8.bf16 %v3469
      %v4102 = vunpack.c.l.s8.bf16 %v3470
      %v4103 = vunpack.c.l.s8.bf16 %v3471
      %v4104 = vunpack.c.l.s8.bf16 %v3472
      %v4105 = vunpack.c.l.s8.bf16 %v3473
      %v4106 = vunpack.c.l.s8.bf16 %v3474
      %v4107 = vunpack.c.h.s8.bf16 %v3467
      %v4108 = vunpack.c.h.s8.bf16 %v3468
      %v4109 = vunpack.c.h.s8.bf16 %v3469
      %v4110 = vunpack.c.h.s8.bf16 %v3470
      %v4111 = vunpack.c.h.s8.bf16 %v3471
      %v4112 = vunpack.c.h.s8.bf16 %v3472
      %v4113 = vunpack.c.h.s8.bf16 %v3473
      %v4114 = vunpack.c.h.s8.bf16 %v3474
      %v4115 = vunpack.c.l.s8.bf16 %v3475
      %v4116 = vunpack.c.l.s8.bf16 %v3476
      %v4117 = vunpack.c.l.s8.bf16 %v3477
      %v4118 = vunpack.c.l.s8.bf16 %v3478
      %v4119 = vunpack.c.l.s8.bf16 %v3479
      %v4120 = vunpack.c.l.s8.bf16 %v3480
      %v4121 = vunpack.c.l.s8.bf16 %v3481
      %v4122 = vunpack.c.l.s8.bf16 %v3482
      %v4123 = vunpack.c.h.s8.bf16 %v3475
      %v4124 = vunpack.c.h.s8.bf16 %v3476
      %v4125 = vunpack.c.h.s8.bf16 %v3477
      %v4126 = vunpack.c.h.s8.bf16 %v3478
      %v4127 = vunpack.c.h.s8.bf16 %v3479
      %v4128 = vunpack.c.h.s8.bf16 %v3480
      %v4129 = vunpack.c.h.s8.bf16 %v3481
      %v4130 = vunpack.c.h.s8.bf16 %v3482
      %v4131 = vunpack.c.l.s8.bf16 %v3483
      %v4132 = vunpack.c.l.s8.bf16 %v3484
      %v4133 = vunpack.c.l.s8.bf16 %v3485
      %v4134 = vunpack.c.l.s8.bf16 %v3486
      %v4135 = vunpack.c.l.s8.bf16 %v3487
      %v4136 = vunpack.c.l.s8.bf16 %v3488
      %v4137 = vunpack.c.l.s8.bf16 %v3489
      %v4138 = vunpack.c.l.s8.bf16 %v3490
      %v4139 = vunpack.c.h.s8.bf16 %v3483
      %v4140 = vunpack.c.h.s8.bf16 %v3484
      %v4141 = vunpack.c.h.s8.bf16 %v3485
      %v4142 = vunpack.c.h.s8.bf16 %v3486
      %v4143 = vunpack.c.h.s8.bf16 %v3487
      %v4144 = vunpack.c.h.s8.bf16 %v3488
      %v4145 = vunpack.c.h.s8.bf16 %v3489
      %v4146 = vunpack.c.h.s8.bf16 %v3490
      %v4147 = vunpack.c.l.s8.bf16 %v3491
      %v4148 = vunpack.c.l.s8.bf16 %v3492
      %v4149 = vunpack.c.l.s8.bf16 %v3493
      %v4150 = vunpack.c.l.s8.bf16 %v3494
      %v4151 = vunpack.c.l.s8.bf16 %v3495
      %v4152 = vunpack.c.l.s8.bf16 %v3496
      %v4153 = vunpack.c.l.s8.bf16 %v3497
      %v4154 = vunpack.c.l.s8.bf16 %v3498
      %v4155 = vunpack.c.h.s8.bf16 %v3491
      %v4156 = vunpack.c.h.s8.bf16 %v3492
      %v4157 = vunpack.c.h.s8.bf16 %v3493
      %v4158 = vunpack.c.h.s8.bf16 %v3494
      %v4159 = vunpack.c.h.s8.bf16 %v3495
      %v4160 = vunpack.c.h.s8.bf16 %v3496
      %v4161 = vunpack.c.h.s8.bf16 %v3497
      %v4162 = vunpack.c.h.s8.bf16 %v3498
      %v4163 = vunpack.c.l.s8.bf16 %v3499
      %v4164 = vunpack.c.l.s8.bf16 %v3500
      %v4165 = vunpack.c.l.s8.bf16 %v3501
      %v4166 = vunpack.c.l.s8.bf16 %v3502
      %v4167 = vunpack.c.l.s8.bf16 %v3503
      %v4168 = vunpack.c.l.s8.bf16 %v3504
      %v4169 = vunpack.c.l.s8.bf16 %v3505
      %v4170 = vunpack.c.l.s8.bf16 %v3506
      %v4171 = vunpack.c.h.s8.bf16 %v3499
      %v4172 = vunpack.c.h.s8.bf16 %v3500
      %v4173 = vunpack.c.h.s8.bf16 %v3501
      %v4174 = vunpack.c.h.s8.bf16 %v3502
      %v4175 = vunpack.c.h.s8.bf16 %v3503
      %v4176 = vunpack.c.h.s8.bf16 %v3504
      %v4177 = vunpack.c.h.s8.bf16 %v3505
      %v4178 = vunpack.c.h.s8.bf16 %v3506
      %v4179 = vunpack.c.l.s8.bf16 %v3507
      %v4180 = vunpack.c.l.s8.bf16 %v3508
      %v4181 = vunpack.c.l.s8.bf16 %v3509
      %v4182 = vunpack.c.l.s8.bf16 %v3510
      %v4183 = vunpack.c.l.s8.bf16 %v3511
      %v4184 = vunpack.c.l.s8.bf16 %v3512
      %v4185 = vunpack.c.l.s8.bf16 %v3513
      %v4186 = vunpack.c.l.s8.bf16 %v3514
      %v4187 = vunpack.c.h.s8.bf16 %v3507
      %v4188 = vunpack.c.h.s8.bf16 %v3508
      %v4189 = vunpack.c.h.s8.bf16 %v3509
      %v4190 = vunpack.c.h.s8.bf16 %v3510
      %v4191 = vunpack.c.h.s8.bf16 %v3511
      %v4192 = vunpack.c.h.s8.bf16 %v3512
      %v4193 = vunpack.c.h.s8.bf16 %v3513
      %v4194 = vunpack.c.h.s8.bf16 %v3514
      %v4195 = vunpack.c.l.s8.bf16 %v3515
      %v4196 = vunpack.c.l.s8.bf16 %v3516
      %v4197 = vunpack.c.l.s8.bf16 %v3517
      %v4198 = vunpack.c.l.s8.bf16 %v3518
      %v4199 = vunpack.c.l.s8.bf16 %v3519
      %v4200 = vunpack.c.l.s8.bf16 %v3520
      %v4201 = vunpack.c.l.s8.bf16 %v3521
      %v4202 = vunpack.c.l.s8.bf16 %v3522
      %v4203 = vunpack.c.h.s8.bf16 %v3515
      %v4204 = vunpack.c.h.s8.bf16 %v3516
      %v4205 = vunpack.c.h.s8.bf16 %v3517
      %v4206 = vunpack.c.h.s8.bf16 %v3518
      %v4207 = vunpack.c.h.s8.bf16 %v3519
      %v4208 = vunpack.c.h.s8.bf16 %v3520
      %v4209 = vunpack.c.h.s8.bf16 %v3521
      %v4210 = vunpack.c.h.s8.bf16 %v3522
      %v4211 = vunpack.c.l.s8.bf16 %v3523
      %v4212 = vunpack.c.l.s8.bf16 %v3524
      %v4213 = vunpack.c.l.s8.bf16 %v3525
      %v4214 = vunpack.c.l.s8.bf16 %v3526
      %v4215 = vunpack.c.l.s8.bf16 %v3527
      %v4216 = vunpack.c.l.s8.bf16 %v3528
      %v4217 = vunpack.c.l.s8.bf16 %v3529
      %v4218 = vunpack.c.l.s8.bf16 %v3530
      %v4219 = vunpack.c.h.s8.bf16 %v3523
      %v4220 = vunpack.c.h.s8.bf16 %v3524
      %v4221 = vunpack.c.h.s8.bf16 %v3525
      %v4222 = vunpack.c.h.s8.bf16 %v3526
      %v4223 = vunpack.c.h.s8.bf16 %v3527
      %v4224 = vunpack.c.h.s8.bf16 %v3528
      %v4225 = vunpack.c.h.s8.bf16 %v3529
      %v4226 = vunpack.c.h.s8.bf16 %v3530
      %v4227 = vunpack.c.l.s8.bf16 %v3531
      %v4228 = vunpack.c.l.s8.bf16 %v3532
      %v4229 = vunpack.c.l.s8.bf16 %v3533
      %v4230 = vunpack.c.l.s8.bf16 %v3534
      %v4231 = vunpack.c.l.s8.bf16 %v3535
      %v4232 = vunpack.c.l.s8.bf16 %v3536
      %v4233 = vunpack.c.l.s8.bf16 %v3537
      %v4234 = vunpack.c.l.s8.bf16 %v3538
      %v4235 = vunpack.c.h.s8.bf16 %v3531
      %v4236 = vunpack.c.h.s8.bf16 %v3532
      %v4237 = vunpack.c.h.s8.bf16 %v3533
      %v4238 = vunpack.c.h.s8.bf16 %v3534
      %v4239 = vunpack.c.h.s8.bf16 %v3535
      %v4240 = vunpack.c.h.s8.bf16 %v3536
      %v4241 = vunpack.c.h.s8.bf16 %v3537
      %v4242 = vunpack.c.h.s8.bf16 %v3538
      %v4243 = vunpack.c.l.s8.bf16 %v3539
      %v4244 = vunpack.c.l.s8.bf16 %v3540
      %v4245 = vunpack.c.l.s8.bf16 %v3541
      %v4246 = vunpack.c.l.s8.bf16 %v3542
      %v4247 = vunpack.c.l.s8.bf16 %v3543
      %v4248 = vunpack.c.l.s8.bf16 %v3544
      %v4249 = vunpack.c.l.s8.bf16 %v3545
      %v4250 = vunpack.c.l.s8.bf16 %v3546
      %v4251 = vunpack.c.h.s8.bf16 %v3539
      %v4252 = vunpack.c.h.s8.bf16 %v3540
      %v4253 = vunpack.c.h.s8.bf16 %v3541
      %v4254 = vunpack.c.h.s8.bf16 %v3542
      %v4255 = vunpack.c.h.s8.bf16 %v3543
      %v4256 = vunpack.c.h.s8.bf16 %v3544
      %v4257 = vunpack.c.h.s8.bf16 %v3545
      %v4258 = vunpack.c.h.s8.bf16 %v3546
      %v4259 = vunpack.c.l.s8.bf16 %v3547
      %v4260 = vunpack.c.l.s8.bf16 %v3548
      %v4261 = vunpack.c.l.s8.bf16 %v3549
      %v4262 = vunpack.c.l.s8.bf16 %v3550
      %v4263 = vunpack.c.l.s8.bf16 %v3551
      %v4264 = vunpack.c.l.s8.bf16 %v3552
      %v4265 = vunpack.c.l.s8.bf16 %v3553
      %v4266 = vunpack.c.l.s8.bf16 %v3554
      %v4267 = vunpack.c.h.s8.bf16 %v3547
      %v4268 = vunpack.c.h.s8.bf16 %v3548
      %v4269 = vunpack.c.h.s8.bf16 %v3549
      %v4270 = vunpack.c.h.s8.bf16 %v3550
      %v4271 = vunpack.c.h.s8.bf16 %v3551
      %v4272 = vunpack.c.h.s8.bf16 %v3552
      %v4273 = vunpack.c.h.s8.bf16 %v3553
      %v4274 = vunpack.c.h.s8.bf16 %v3554
      %v4275 = vunpack.c.l.s8.bf16 %v3555
      %v4276 = vunpack.c.l.s8.bf16 %v3556
      %v4277 = vunpack.c.l.s8.bf16 %v3557
      %v4278 = vunpack.c.l.s8.bf16 %v3558
      %v4279 = vunpack.c.l.s8.bf16 %v3559
      %v4280 = vunpack.c.l.s8.bf16 %v3560
      %v4281 = vunpack.c.l.s8.bf16 %v3561
      %v4282 = vunpack.c.l.s8.bf16 %v3562
      %v4283 = vunpack.c.h.s8.bf16 %v3555
      %v4284 = vunpack.c.h.s8.bf16 %v3556
      %v4285 = vunpack.c.h.s8.bf16 %v3557
      %v4286 = vunpack.c.h.s8.bf16 %v3558
      %v4287 = vunpack.c.h.s8.bf16 %v3559
      %v4288 = vunpack.c.h.s8.bf16 %v3560
      %v4289 = vunpack.c.h.s8.bf16 %v3561
      %v4290 = vunpack.c.h.s8.bf16 %v3562
      %v4291 = vunpack.c.l.s8.bf16 %v3563
      %v4292 = vunpack.c.l.s8.bf16 %v3564
      %v4293 = vunpack.c.l.s8.bf16 %v3565
      %v4294 = vunpack.c.l.s8.bf16 %v3566
      %v4295 = vunpack.c.l.s8.bf16 %v3567
      %v4296 = vunpack.c.l.s8.bf16 %v3568
      %v4297 = vunpack.c.l.s8.bf16 %v3569
      %v4298 = vunpack.c.l.s8.bf16 %v3570
      %v4299 = vunpack.c.h.s8.bf16 %v3563
      %v4300 = vunpack.c.h.s8.bf16 %v3564
      %v4301 = vunpack.c.h.s8.bf16 %v3565
      %v4302 = vunpack.c.h.s8.bf16 %v3566
      %v4303 = vunpack.c.h.s8.bf16 %v3567
      %v4304 = vunpack.c.h.s8.bf16 %v3568
      %v4305 = vunpack.c.h.s8.bf16 %v3569
      %v4306 = vunpack.c.h.s8.bf16 %v3570
      %v4307 = vunpack.c.l.s8.bf16 %v3571
      %v4308 = vunpack.c.l.s8.bf16 %v3572
      %v4309 = vunpack.c.l.s8.bf16 %v3573
      %v4310 = vunpack.c.l.s8.bf16 %v3574
      %v4311 = vunpack.c.l.s8.bf16 %v3575
      %v4312 = vunpack.c.l.s8.bf16 %v3576
      %v4313 = vunpack.c.l.s8.bf16 %v3577
      %v4314 = vunpack.c.l.s8.bf16 %v3578
      %v4315 = vunpack.c.h.s8.bf16 %v3571
      %v4316 = vunpack.c.h.s8.bf16 %v3572
      %v4317 = vunpack.c.h.s8.bf16 %v3573
      %v4318 = vunpack.c.h.s8.bf16 %v3574
      %v4319 = vunpack.c.h.s8.bf16 %v3575
      %v4320 = vunpack.c.h.s8.bf16 %v3576
      %v4321 = vunpack.c.h.s8.bf16 %v3577
      %v4322 = vunpack.c.h.s8.bf16 %v3578
      %v4323 = vunpack.c.l.s8.bf16 %v3579
      %v4324 = vunpack.c.l.s8.bf16 %v3580
      %v4325 = vunpack.c.l.s8.bf16 %v3581
      %v4326 = vunpack.c.l.s8.bf16 %v3582
      %v4327 = vunpack.c.l.s8.bf16 %v3583
      %v4328 = vunpack.c.l.s8.bf16 %v3584
      %v4329 = vunpack.c.l.s8.bf16 %v3585
      %v4330 = vunpack.c.l.s8.bf16 %v3586
      %v4331 = vunpack.c.h.s8.bf16 %v3579
      %v4332 = vunpack.c.h.s8.bf16 %v3580
      %v4333 = vunpack.c.h.s8.bf16 %v3581
      %v4334 = vunpack.c.h.s8.bf16 %v3582
      %v4335 = vunpack.c.h.s8.bf16 %v3583
      %v4336 = vunpack.c.h.s8.bf16 %v3584
      %v4337 = vunpack.c.h.s8.bf16 %v3585
      %v4338 = vunpack.c.h.s8.bf16 %v3586
      %v4339 = vunpack.c.l.s8.bf16 %v3587
      %v4340 = vunpack.c.l.s8.bf16 %v3588
      %v4341 = vunpack.c.l.s8.bf16 %v3589
      %v4342 = vunpack.c.l.s8.bf16 %v3590
      %v4343 = vunpack.c.l.s8.bf16 %v3591
      %v4344 = vunpack.c.l.s8.bf16 %v3592
      %v4345 = vunpack.c.l.s8.bf16 %v3593
      %v4346 = vunpack.c.l.s8.bf16 %v3594
      %v4347 = vunpack.c.h.s8.bf16 %v3587
      %v4348 = vunpack.c.h.s8.bf16 %v3588
      %v4349 = vunpack.c.h.s8.bf16 %v3589
      %v4350 = vunpack.c.h.s8.bf16 %v3590
      %v4351 = vunpack.c.h.s8.bf16 %v3591
      %v4352 = vunpack.c.h.s8.bf16 %v3592
      %v4353 = vunpack.c.h.s8.bf16 %v3593
      %v4354 = vunpack.c.h.s8.bf16 %v3594
      %v4355 = vunpack.c.l.s8.bf16 %v3595
      %v4356 = vunpack.c.l.s8.bf16 %v3596
      %v4357 = vunpack.c.l.s8.bf16 %v3597
      %v4358 = vunpack.c.l.s8.bf16 %v3598
      %v4359 = vunpack.c.l.s8.bf16 %v3599
      %v4360 = vunpack.c.l.s8.bf16 %v3600
      %v4361 = vunpack.c.l.s8.bf16 %v3601
      %v4362 = vunpack.c.l.s8.bf16 %v3602
      %v4363 = vunpack.c.h.s8.bf16 %v3595
      %v4364 = vunpack.c.h.s8.bf16 %v3596
      %v4365 = vunpack.c.h.s8.bf16 %v3597
      %v4366 = vunpack.c.h.s8.bf16 %v3598
      %v4367 = vunpack.c.h.s8.bf16 %v3599
      %v4368 = vunpack.c.h.s8.bf16 %v3600
      %v4369 = vunpack.c.h.s8.bf16 %v3601
      %v4370 = vunpack.c.h.s8.bf16 %v3602
      %4371 = vmatprep.subr.bf16.mxu0 %v3604
      %4372 = vmatpush1.bf16.msra.mxu0 %v3603
      %4373 = vmatprep.subr.bf16.mxu0 %v3612
      %4374 = vmatpush1.bf16.msra.mxu0 %v3611
      %4375 = vmatprep.subr.bf16.mxu0 %v3620
      %4376 = vmatpush1.bf16.msra.mxu0 %v3619
      %4377 = vmatprep.subr.bf16.mxu0 %v3628
      %4378 = vmatpush1.bf16.msra.mxu0 %v3627
      %4379 = vmatprep.subr.bf16.mxu0 %v3636
      %4380 = vmatpush1.bf16.msra.mxu0 %v3635
      %4381 = vmatprep.subr.bf16.mxu0 %v3644
      %4382 = vmatpush1.bf16.msra.mxu0 %v3643
      %4383 = vmatprep.subr.bf16.mxu0 %v3652
      %4384 = vmatpush1.bf16.msra.mxu0 %v3651
      %4385 = vmatprep.subr.bf16.mxu0 %v3660
      %4386 = vmatpush1.bf16.msra.mxu0 %v3659
      %4387 = vmatprep.subr.bf16.mxu0 %v3668
      %4388 = vmatpush1.bf16.msra.mxu0 %v3667
      %4389 = vmatprep.subr.bf16.mxu0 %v3676
      %4390 = vmatpush1.bf16.msra.mxu0 %v3675
      %4391 = vmatprep.subr.bf16.mxu0 %v3684
      %4392 = vmatpush1.bf16.msra.mxu0 %v3683
      %4393 = vmatprep.subr.bf16.mxu0 %v3692
      %4394 = vmatpush1.bf16.msra.mxu0 %v3691
      %4395 = vmatprep.subr.bf16.mxu0 %v3700
      %4396 = vmatpush1.bf16.msra.mxu0 %v3699
      %4397 = vmatprep.subr.bf16.mxu0 %v3708
      %4398 = vmatpush1.bf16.msra.mxu0 %v3707
      %4399 = vmatprep.subr.bf16.mxu0 %v3716
      %4400 = vmatpush1.bf16.msra.mxu0 %v3715
      %4401 = vmatprep.subr.bf16.mxu0 %v3724
      %4402 = vmatpush1.bf16.msra.mxu0 %v3723
      %4403 = vmatprep.mubr.bf16.mxu0 %v3208
      %4404 = vmatmul.mubr.bf16.gmra.mrb[0].mxu0 %v3207
      %v4405 = vpop.f32.mrb[0].mxu0
      %v4406 = vadd.f32 0.0, %v4405
      %v4407 = vpop.f32.mrb[0].mxu0
      %v4408 = vadd.f32 0.0, %v4407
      %v4409 = vpop.f32.mrb[0].mxu0
      %v4410 = vpop.f32.mrb[0].mxu0
      %4411 = vdwg.mxu0
      %4412 = vmatprep.subr.bf16.mxu0 %v3732
      %4413 = vmatpush1.bf16.msra.mxu0 %v3731
      %4414 = vmatprep.subr.bf16.mxu0 %v3740
      %4415 = vmatpush1.bf16.msra.mxu0 %v3739
      %4416 = vmatprep.subr.bf16.mxu0 %v3748
      %4417 = vmatpush1.bf16.msra.mxu0 %v3747
      %4418 = vmatprep.subr.bf16.mxu0 %v3756
      %4419 = vmatpush1.bf16.msra.mxu0 %v3755
      %4420 = vmatprep.subr.bf16.mxu0 %v3764
      %4421 = vmatpush1.bf16.msra.mxu0 %v3763
      %4422 = vmatprep.subr.bf16.mxu0 %v3772
      %4423 = vmatpush1.bf16.msra.mxu0 %v3771
      %4424 = vmatprep.subr.bf16.mxu0 %v3780
      %4425 = vmatpush1.bf16.msra.mxu0 %v3779
      %4426 = vmatprep.subr.bf16.mxu0 %v3788
      %4427 = vmatpush1.bf16.msra.mxu0 %v3787
      %4428 = vmatprep.subr.bf16.mxu0 %v3796
      %4429 = vmatpush1.bf16.msra.mxu0 %v3795
      %4430 = vmatprep.subr.bf16.mxu0 %v3804
      %4431 = vmatpush1.bf16.msra.mxu0 %v3803
      %4432 = vmatprep.subr.bf16.mxu0 %v3812
      %4433 = vmatpush1.bf16.msra.mxu0 %v3811
      %4434 = vmatprep.subr.bf16.mxu0 %v3820
      %4435 = vmatpush1.bf16.msra.mxu0 %v3819
      %4436 = vmatprep.subr.bf16.mxu0 %v3828
      %4437 = vmatpush1.bf16.msra.mxu0 %v3827
      %4438 = vmatprep.subr.bf16.mxu0 %v3836
      %4439 = vmatpush1.bf16.msra.mxu0 %v3835
      %4440 = vmatprep.subr.bf16.mxu0 %v3844
      %4441 = vmatpush1.bf16.msra.mxu0 %v3843
      %4442 = vmatprep.subr.bf16.mxu0 %v3852
      %4443 = vmatpush1.bf16.msra.mxu0 %v3851
      %4444 = vmatprep.mubr.bf16.mxu0 %v3210
      %4445 = vmatmul.mubr.bf16.gmra.mrb[0].mxu0 %v3209
      %v4446 = vpop.f32.mrb[0].mxu0
      %v4447 = vadd.f32 %v4406, %v4446
      %v4448 = vpop.f32.mrb[0].mxu0
      %v4449 = vadd.f32 %v4408, %v4448
      %v4450 = vpop.f32.mrb[0].mxu0
      %v4451 = vpop.f32.mrb[0].mxu0
      %4452 = vdwg.mxu0
      %4453 = vmatprep.subr.bf16.mxu0 %v3860
      %4454 = vmatpush1.bf16.msra.mxu0 %v3859
      %4455 = vmatprep.subr.bf16.mxu0 %v3868
      %4456 = vmatpush1.bf16.msra.mxu0 %v3867
      %4457 = vmatprep.subr.bf16.mxu0 %v3876
      %4458 = vmatpush1.bf16.msra.mxu0 %v3875
      %4459 = vmatprep.subr.bf16.mxu0 %v3884
      %4460 = vmatpush1.bf16.msra.mxu0 %v3883
      %4461 = vmatprep.subr.bf16.mxu0 %v3892
      %4462 = vmatpush1.bf16.msra.mxu0 %v3891
      %4463 = vmatprep.subr.bf16.mxu0 %v3900
      %4464 = vmatpush1.bf16.msra.mxu0 %v3899
      %4465 = vmatprep.subr.bf16.mxu0 %v3908
      %4466 = vmatpush1.bf16.msra.mxu0 %v3907
      %4467 = vmatprep.subr.bf16.mxu0 %v3916
      %4468 = vmatpush1.bf16.msra.mxu0 %v3915
      %4469 = vmatprep.subr.bf16.mxu0 %v3924
      %4470 = vmatpush1.bf16.msra.mxu0 %v3923
      %4471 = vmatprep.subr.bf16.mxu0 %v3932
      %4472 = vmatpush1.bf16.msra.mxu0 %v3931
      %4473 = vmatprep.subr.bf16.mxu0 %v3940
      %4474 = vmatpush1.bf16.msra.mxu0 %v3939
      %4475 = vmatprep.subr.bf16.mxu0 %v3948
      %4476 = vmatpush1.bf16.msra.mxu0 %v3947
      %4477 = vmatprep.subr.bf16.mxu0 %v3956
      %4478 = vmatpush1.bf16.msra.mxu0 %v3955
      %4479 = vmatprep.subr.bf16.mxu0 %v3964
      %4480 = vmatpush1.bf16.msra.mxu0 %v3963
      %4481 = vmatprep.subr.bf16.mxu0 %v3972
      %4482 = vmatpush1.bf16.msra.mxu0 %v3971
      %4483 = vmatprep.subr.bf16.mxu0 %v3980
      %4484 = vmatpush1.bf16.msra.mxu0 %v3979
      %4485 = vmatprep.mubr.bf16.mxu0 %v3212
      %4486 = vmatmul.mubr.bf16.gmra.mrb[0].mxu0 %v3211
      %v4487 = vpop.f32.mrb[0].mxu0
      %v4488 = vadd.f32 %v4447, %v4487
      %v4489 = vpop.f32.mrb[0].mxu0
      %v4490 = vadd.f32 %v4449, %v4489
      %v4491 = vpop.f32.mrb[0].mxu0
      %v4492 = vpop.f32.mrb[0].mxu0
      %4493 = vdwg.mxu0
      %4494 = vmatprep.subr.bf16.mxu0 %v3988
      %4495 = vmatpush1.bf16.msra.mxu0 %v3987
      %4496 = vmatprep.subr.bf16.mxu0 %v3996
      %4497 = vmatpush1.bf16.msra.mxu0 %v3995
      %4498 = vmatprep.subr.bf16.mxu0 %v4004
      %4499 = vmatpush1.bf16.msra.mxu0 %v4003
      %4500 = vmatprep.subr.bf16.mxu0 %v4012
      %4501 = vmatpush1.bf16.msra.mxu0 %v4011
      %4502 = vmatprep.subr.bf16.mxu0 %v4020
      %4503 = vmatpush1.bf16.msra.mxu0 %v4019
      %4504 = vmatprep.subr.bf16.mxu0 %v4028
      %4505 = vmatpush1.bf16.msra.mxu0 %v4027
      %4506 = vmatprep.subr.bf16.mxu0 %v4036
      %4507 = vmatpush1.bf16.msra.mxu0 %v4035
      %4508 = vmatprep.subr.bf16.mxu0 %v4044
      %4509 = vmatpush1.bf16.msra.mxu0 %v4043
      %4510 = vmatprep.subr.bf16.mxu0 %v4052
      %4511 = vmatpush1.bf16.msra.mxu0 %v4051
      %4512 = vmatprep.subr.bf16.mxu0 %v4060
      %4513 = vmatpush1.bf16.msra.mxu0 %v4059
      %4514 = vmatprep.subr.bf16.mxu0 %v4068
      %4515 = vmatpush1.bf16.msra.mxu0 %v4067
      %4516 = vmatprep.subr.bf16.mxu0 %v4076
      %4517 = vmatpush1.bf16.msra.mxu0 %v4075
      %4518 = vmatprep.subr.bf16.mxu0 %v4084
      %4519 = vmatpush1.bf16.msra.mxu0 %v4083
      %4520 = vmatprep.subr.bf16.mxu0 %v4092
      %4521 = vmatpush1.bf16.msra.mxu0 %v4091
      %4522 = vmatprep.subr.bf16.mxu0 %v4100
      %4523 = vmatpush1.bf16.msra.mxu0 %v4099
      %4524 = vmatprep.subr.bf16.mxu0 %v4108
      %4525 = vmatpush1.bf16.msra.mxu0 %v4107
      %4526 = vmatprep.mubr.bf16.mxu0 %v3214
      %4527 = vmatmul.mubr.bf16.gmra.mrb[0].mxu0 %v3213
      %v4528 = vpop.f32.mrb[0].mxu0
      %v4529 = vadd.f32 %v4488, %v4528
      %v4530 = vpop.f32.mrb[0].mxu0
      %v4531 = vadd.f32 %v4490, %v4530
      %v4532 = vpop.f32.mrb[0].mxu0
      %v4533 = vpop.f32.mrb[0].mxu0
      %4534 = vdwg.mxu0
      %4535 = vmatprep.subr.bf16.mxu0 %v4116
      %4536 = vmatpush1.bf16.msra.mxu0 %v4115
      %4537 = vmatprep.subr.bf16.mxu0 %v4124
      %4538 = vmatpush1.bf16.msra.mxu0 %v4123
      %4539 = vmatprep.subr.bf16.mxu0 %v4132
      %4540 = vmatpush1.bf16.msra.mxu0 %v4131
      %4541 = vmatprep.subr.bf16.mxu0 %v4140
      %4542 = vmatpush1.bf16.msra.mxu0 %v4139
      %4543 = vmatprep.subr.bf16.mxu0 %v4148
      %4544 = vmatpush1.bf16.msra.mxu0 %v4147
      %4545 = vmatprep.subr.bf16.mxu0 %v4156
      %4546 = vmatpush1.bf16.msra.mxu0 %v4155
      %4547 = vmatprep.subr.bf16.mxu0 %v4164
      %4548 = vmatpush1.bf16.msra.mxu0 %v4163
      %4549 = vmatprep.subr.bf16.mxu0 %v4172
      %4550 = vmatpush1.bf16.msra.mxu0 %v4171
      %4551 = vmatprep.subr.bf16.mxu0 %v4180
      %4552 = vmatpush1.bf16.msra.mxu0 %v4179
      %4553 = vmatprep.subr.bf16.mxu0 %v4188
      %4554 = vmatpush1.bf16.msra.mxu0 %v4187
      %4555 = vmatprep.subr.bf16.mxu0 %v4196
      %4556 = vmatpush1.bf16.msra.mxu0 %v4195
      %4557 = vmatprep.subr.bf16.mxu0 %v4204
      %4558 = vmatpush1.bf16.msra.mxu0 %v4203
      %4559 = vmatprep.subr.bf16.mxu0 %v4212
      %4560 = vmatpush1.bf16.msra.mxu0 %v4211
      %4561 = vmatprep.subr.bf16.mxu0 %v4220
      %4562 = vmatpush1.bf16.msra.mxu0 %v4219
      %4563 = vmatprep.subr.bf16.mxu0 %v4228
      %4564 = vmatpush1.bf16.msra.mxu0 %v4227
      %4565 = vmatprep.subr.bf16.mxu0 %v4236
      %4566 = vmatpush1.bf16.msra.mxu0 %v4235
      %4567 = vmatprep.mubr.bf16.mxu0 %v3216
      %4568 = vmatmul.mubr.bf16.gmra.mrb[0].mxu0 %v3215
      %v4569 = vpop.f32.mrb[0].mxu0
      %v4570 = vadd.f32 %v4529, %v4569
      %v4571 = vpop.f32.mrb[0].mxu0
      %v4572 = vadd.f32 %v4531, %v4571
      %v4573 = vpop.f32.mrb[0].mxu0
      %v4574 = vpop.f32.mrb[0].mxu0
      %4575 = vdwg.mxu0
      %4576 = vmatprep.subr.bf16.mxu0 %v4244
      %4577 = vmatpush1.bf16.msra.mxu0 %v4243
      %4578 = vmatprep.subr.bf16.mxu0 %v4252
      %4579 = vmatpush1.bf16.msra.mxu0 %v4251
      %4580 = vmatprep.subr.bf16.mxu0 %v4260
      %4581 = vmatpush1.bf16.msra.mxu0 %v4259
      %4582 = vmatprep.subr.bf16.mxu0 %v4268
      %4583 = vmatpush1.bf16.msra.mxu0 %v4267
      %4584 = vmatprep.subr.bf16.mxu0 %v4276
      %4585 = vmatpush1.bf16.msra.mxu0 %v4275
      %4586 = vmatprep.subr.bf16.mxu0 %v4284
      %4587 = vmatpush1.bf16.msra.mxu0 %v4283
      %4588 = vmatprep.subr.bf16.mxu0 %v4292
      %4589 = vmatpush1.bf16.msra.mxu0 %v4291
      %4590 = vmatprep.subr.bf16.mxu0 %v4300
      %4591 = vmatpush1.bf16.msra.mxu0 %v4299
      %4592 = vmatprep.subr.bf16.mxu0 %v4308
      %4593 = vmatpush1.bf16.msra.mxu0 %v4307
      %4594 = vmatprep.subr.bf16.mxu0 %v4316
      %4595 = vmatpush1.bf16.msra.mxu0 %v4315
      %4596 = vmatprep.subr.bf16.mxu0 %v4324
      %4597 = vmatpush1.bf16.msra.mxu0 %v4323
      %4598 = vmatprep.subr.bf16.mxu0 %v4332
      %4599 = vmatpush1.bf16.msra.mxu0 %v4331
      %4600 = vmatprep.subr.bf16.mxu0 %v4340
      %4601 = vmatpush1.bf16.msra.mxu0 %v4339
      %4602 = vmatprep.subr.bf16.mxu0 %v4348
      %4603 = vmatpush1.bf16.msra.mxu0 %v4347
      %4604 = vmatprep.subr.bf16.mxu0 %v4356
      %4605 = vmatpush1.bf16.msra.mxu0 %v4355
      %4606 = vmatprep.subr.bf16.mxu0 %v4364
      %4607 = vmatpush1.bf16.msra.mxu0 %v4363
      %4608 = vmatprep.mubr.bf16.mxu0 %v3218
      %4609 = vmatmul.mubr.bf16.gmra.mrb[0].mxu0 %v3217
      %v4610 = vpop.f32.mrb[0].mxu0
      %v4611 = vadd.f32 %v4570, %v4610
      %v4612 = vpop.f32.mrb[0].mxu0
      %v4613 = vadd.f32 %v4572, %v4612
      %v4614 = vpop.f32.mrb[0].mxu0
      %v4615 = vpop.f32.mrb[0].mxu0
      %4616 = vdwg.mxu0
      %4617 = vmatprep.subr.bf16.mxu0 %v3606
      %4618 = vmatpush1.bf16.msra.mxu0 %v3605
      %4619 = vmatprep.subr.bf16.mxu0 %v3614
      %4620 = vmatpush1.bf16.msra.mxu0 %v3613
      %4621 = vmatprep.subr.bf16.mxu0 %v3622
      %4622 = vmatpush1.bf16.msra.mxu0 %v3621
      %4623 = vmatprep.subr.bf16.mxu0 %v3630
      %4624 = vmatpush1.bf16.msra.mxu0 %v3629
      %4625 = vmatprep.subr.bf16.mxu0 %v3638
      %4626 = vmatpush1.bf16.msra.mxu0 %v3637
      %4627 = vmatprep.subr.bf16.mxu0 %v3646
      %4628 = vmatpush1.bf16.msra.mxu0 %v3645
      %4629 = vmatprep.subr.bf16.mxu0 %v3654
      %4630 = vmatpush1.bf16.msra.mxu0 %v3653
      %4631 = vmatprep.subr.bf16.mxu0 %v3662
      %4632 = vmatpush1.bf16.msra.mxu0 %v3661
      %4633 = vmatprep.subr.bf16.mxu0 %v3670
      %4634 = vmatpush1.bf16.msra.mxu0 %v3669
      %4635 = vmatprep.subr.bf16.mxu0 %v3678
      %4636 = vmatpush1.bf16.msra.mxu0 %v3677
      %4637 = vmatprep.subr.bf16.mxu0 %v3686
      %4638 = vmatpush1.bf16.msra.mxu0 %v3685
      %4639 = vmatprep.subr.bf16.mxu0 %v3694
      %4640 = vmatpush1.bf16.msra.mxu0 %v3693
      %4641 = vmatprep.subr.bf16.mxu0 %v3702
      %4642 = vmatpush1.bf16.msra.mxu0 %v3701
      %4643 = vmatprep.subr.bf16.mxu0 %v3710
      %4644 = vmatpush1.bf16.msra.mxu0 %v3709
      %4645 = vmatprep.subr.bf16.mxu0 %v3718
      %4646 = vmatpush1.bf16.msra.mxu0 %v3717
      %4647 = vmatprep.subr.bf16.mxu0 %v3726
      %4648 = vmatpush1.bf16.msra.mxu0 %v3725
      %4649 = vmatprep.mubr.bf16.mxu0 %v3208
      %4650 = vmatmul.mubr.bf16.gmra.mrb[0].mxu0 %v3207
      %v4651 = vpop.f32.mrb[0].mxu0
      %v4652 = vadd.f32 0.0, %v4651
      %v4653 = vpop.f32.mrb[0].mxu0
      %v4654 = vadd.f32 0.0, %v4653
      %v4655 = vpop.f32.mrb[0].mxu0
      %v4656 = vpop.f32.mrb[0].mxu0
      %4657 = vdwg.mxu0
      %4658 = vmatprep.subr.bf16.mxu0 %v3734
      %4659 = vmatpush1.bf16.msra.mxu0 %v3733
      %4660 = vmatprep.subr.bf16.mxu0 %v3742
      %4661 = vmatpush1.bf16.msra.mxu0 %v3741
      %4662 = vmatprep.subr.bf16.mxu0 %v3750
      %4663 = vmatpush1.bf16.msra.mxu0 %v3749
      %4664 = vmatprep.subr.bf16.mxu0 %v3758
      %4665 = vmatpush1.bf16.msra.mxu0 %v3757
      %4666 = vmatprep.subr.bf16.mxu0 %v3766
      %4667 = vmatpush1.bf16.msra.mxu0 %v3765
      %4668 = vmatprep.subr.bf16.mxu0 %v3774
      %4669 = vmatpush1.bf16.msra.mxu0 %v3773
      %4670 = vmatprep.subr.bf16.mxu0 %v3782
      %4671 = vmatpush1.bf16.msra.mxu0 %v3781
      %4672 = vmatprep.subr.bf16.mxu0 %v3790
      %4673 = vmatpush1.bf16.msra.mxu0 %v3789
      %4674 = vmatprep.subr.bf16.mxu0 %v3798
      %4675 = vmatpush1.bf16.msra.mxu0 %v3797
      %4676 = vmatprep.subr.bf16.mxu0 %v3806
      %4677 = vmatpush1.bf16.msra.mxu0 %v3805
      %4678 = vmatprep.subr.bf16.mxu0 %v3814
      %4679 = vmatpush1.bf16.msra.mxu0 %v3813
      %4680 = vmatprep.subr.bf16.mxu0 %v3822
      %4681 = vmatpush1.bf16.msra.mxu0 %v3821
      %4682 = vmatprep.subr.bf16.mxu0 %v3830
      %4683 = vmatpush1.bf16.msra.mxu0 %v3829
      %4684 = vmatprep.subr.bf16.mxu0 %v3838
      %4685 = vmatpush1.bf16.msra.mxu0 %v3837
      %4686 = vmatprep.subr.bf16.mxu0 %v3846
      %4687 = vmatpush1.bf16.msra.mxu0 %v3845
      %4688 = vmatprep.subr.bf16.mxu0 %v3854
      %4689 = vmatpush1.bf16.msra.mxu0 %v3853
      %4690 = vmatprep.mubr.bf16.mxu0 %v3210
      %4691 = vmatmul.mubr.bf16.gmra.mrb[0].mxu0 %v3209
      %v4692 = vpop.f32.mrb[0].mxu0
      %v4693 = vadd.f32 %v4652, %v4692
      %v4694 = vpop.f32.mrb[0].mxu0
      %v4695 = vadd.f32 %v4654, %v4694
      %v4696 = vpop.f32.mrb[0].mxu0
      %v4697 = vpop.f32.mrb[0].mxu0
      %4698 = vdwg.mxu0
      %4699 = vmatprep.subr.bf16.mxu0 %v3862
      %4700 = vmatpush1.bf16.msra.mxu0 %v3861
      %4701 = vmatprep.subr.bf16.mxu0 %v3870
      %4702 = vmatpush1.bf16.msra.mxu0 %v3869
      %4703 = vmatprep.subr.bf16.mxu0 %v3878
      %4704 = vmatpush1.bf16.msra.mxu0 %v3877
      %4705 = vmatprep.subr.bf16.mxu0 %v3886
      %4706 = vmatpush1.bf16.msra.mxu0 %v3885
      %4707 = vmatprep.subr.bf16.mxu0 %v3894
      %4708 = vmatpush1.bf16.msra.mxu0 %v3893
      %4709 = vmatprep.subr.bf16.mxu0 %v3902
      %4710 = vmatpush1.bf16.msra.mxu0 %v3901
      %4711 = vmatprep.subr.bf16.mxu0 %v3910
      %4712 = vmatpush1.bf16.msra.mxu0 %v3909
      %4713 = vmatprep.subr.bf16.mxu0 %v3918
      %4714 = vmatpush1.bf16.msra.mxu0 %v3917
      %4715 = vmatprep.subr.bf16.mxu0 %v3926
      %4716 = vmatpush1.bf16.msra.mxu0 %v3925
      %4717 = vmatprep.subr.bf16.mxu0 %v3934
      %4718 = vmatpush1.bf16.msra.mxu0 %v3933
      %4719 = vmatprep.subr.bf16.mxu0 %v3942
      %4720 = vmatpush1.bf16.msra.mxu0 %v3941
      %4721 = vmatprep.subr.bf16.mxu0 %v3950
      %4722 = vmatpush1.bf16.msra.mxu0 %v3949
      %4723 = vmatprep.subr.bf16.mxu0 %v3958
      %4724 = vmatpush1.bf16.msra.mxu0 %v3957
      %4725 = vmatprep.subr.bf16.mxu0 %v3966
      %4726 = vmatpush1.bf16.msra.mxu0 %v3965
      %4727 = vmatprep.subr.bf16.mxu0 %v3974
      %4728 = vmatpush1.bf16.msra.mxu0 %v3973
      %4729 = vmatprep.subr.bf16.mxu0 %v3982
      %4730 = vmatpush1.bf16.msra.mxu0 %v3981
      %4731 = vmatprep.mubr.bf16.mxu0 %v3212
      %4732 = vmatmul.mubr.bf16.gmra.mrb[0].mxu0 %v3211
      %v4733 = vpop.f32.mrb[0].mxu0
      %v4734 = vadd.f32 %v4693, %v4733
      %v4735 = vpop.f32.mrb[0].mxu0
      %v4736 = vadd.f32 %v4695, %v4735
      %v4737 = vpop.f32.mrb[0].mxu0
      %v4738 = vpop.f32.mrb[0].mxu0
      %4739 = vdwg.mxu0
      %4740 = vmatprep.subr.bf16.mxu0 %v3990
      %4741 = vmatpush1.bf16.msra.mxu0 %v3989
      %4742 = vmatprep.subr.bf16.mxu0 %v3998
      %4743 = vmatpush1.bf16.msra.mxu0 %v3997
      %4744 = vmatprep.subr.bf16.mxu0 %v4006
      %4745 = vmatpush1.bf16.msra.mxu0 %v4005
      %4746 = vmatprep.subr.bf16.mxu0 %v4014
      %4747 = vmatpush1.bf16.msra.mxu0 %v4013
      %4748 = vmatprep.subr.bf16.mxu0 %v4022
      %4749 = vmatpush1.bf16.msra.mxu0 %v4021
      %4750 = vmatprep.subr.bf16.mxu0 %v4030
      %4751 = vmatpush1.bf16.msra.mxu0 %v4029
      %4752 = vmatprep.subr.bf16.mxu0 %v4038
      %4753 = vmatpush1.bf16.msra.mxu0 %v4037
      %4754 = vmatprep.subr.bf16.mxu0 %v4046
      %4755 = vmatpush1.bf16.msra.mxu0 %v4045
      %4756 = vmatprep.subr.bf16.mxu0 %v4054
      %4757 = vmatpush1.bf16.msra.mxu0 %v4053
      %4758 = vmatprep.subr.bf16.mxu0 %v4062
      %4759 = vmatpush1.bf16.msra.mxu0 %v4061
      %4760 = vmatprep.subr.bf16.mxu0 %v4070
      %4761 = vmatpush1.bf16.msra.mxu0 %v4069
      %4762 = vmatprep.subr.bf16.mxu0 %v4078
      %4763 = vmatpush1.bf16.msra.mxu0 %v4077
      %4764 = vmatprep.subr.bf16.mxu0 %v4086
      %4765 = vmatpush1.bf16.msra.mxu0 %v4085
      %4766 = vmatprep.subr.bf16.mxu0 %v4094
      %4767 = vmatpush1.bf16.msra.mxu0 %v4093
      %4768 = vmatprep.subr.bf16.mxu0 %v4102
      %4769 = vmatpush1.bf16.msra.mxu0 %v4101
      %4770 = vmatprep.subr.bf16.mxu0 %v4110
      %4771 = vmatpush1.bf16.msra.mxu0 %v4109
      %4772 = vmatprep.mubr.bf16.mxu0 %v3214
      %4773 = vmatmul.mubr.bf16.gmra.mrb[0].mxu0 %v3213
      %v4774 = vpop.f32.mrb[0].mxu0
      %v4775 = vadd.f32 %v4734, %v4774
      %v4776 = vpop.f32.mrb[0].mxu0
      %v4777 = vadd.f32 %v4736, %v4776
      %v4778 = vpop.f32.mrb[0].mxu0
      %v4779 = vpop.f32.mrb[0].mxu0
      %4780 = vdwg.mxu0
      %4781 = vmatprep.subr.bf16.mxu0 %v4118
      %4782 = vmatpush1.bf16.msra.mxu0 %v4117
      %4783 = vmatprep.subr.bf16.mxu0 %v4126
      %4784 = vmatpush1.bf16.msra.mxu0 %v4125
      %4785 = vmatprep.subr.bf16.mxu0 %v4134
      %4786 = vmatpush1.bf16.msra.mxu0 %v4133
      %4787 = vmatprep.subr.bf16.mxu0 %v4142
      %4788 = vmatpush1.bf16.msra.mxu0 %v4141
      %4789 = vmatprep.subr.bf16.mxu0 %v4150
      %4790 = vmatpush1.bf16.msra.mxu0 %v4149
      %4791 = vmatprep.subr.bf16.mxu0 %v4158
      %4792 = vmatpush1.bf16.msra.mxu0 %v4157
      %4793 = vmatprep.subr.bf16.mxu0 %v4166
      %4794 = vmatpush1.bf16.msra.mxu0 %v4165
      %4795 = vmatprep.subr.bf16.mxu0 %v4174
      %4796 = vmatpush1.bf16.msra.mxu0 %v4173
      %4797 = vmatprep.subr.bf16.mxu0 %v4182
      %4798 = vmatpush1.bf16.msra.mxu0 %v4181
      %4799 = vmatprep.subr.bf16.mxu0 %v4190
      %4800 = vmatpush1.bf16.msra.mxu0 %v4189
      %4801 = vmatprep.subr.bf16.mxu0 %v4198
      %4802 = vmatpush1.bf16.msra.mxu0 %v4197
      %4803 = vmatprep.subr.bf16.mxu0 %v4206
      %4804 = vmatpush1.bf16.msra.mxu0 %v4205
      %4805 = vmatprep.subr.bf16.mxu0 %v4214
      %4806 = vmatpush1.bf16.msra.mxu0 %v4213
      %4807 = vmatprep.subr.bf16.mxu0 %v4222
      %4808 = vmatpush1.bf16.msra.mxu0 %v4221
      %4809 = vmatprep.subr.bf16.mxu0 %v4230
      %4810 = vmatpush1.bf16.msra.mxu0 %v4229
      %4811 = vmatprep.subr.bf16.mxu0 %v4238
      %4812 = vmatpush1.bf16.msra.mxu0 %v4237
      %4813 = vmatprep.mubr.bf16.mxu0 %v3216
      %4814 = vmatmul.mubr.bf16.gmra.mrb[0].mxu0 %v3215
      %v4815 = vpop.f32.mrb[0].mxu0
      %v4816 = vadd.f32 %v4775, %v4815
      %v4817 = vpop.f32.mrb[0].mxu0
      %v4818 = vadd.f32 %v4777, %v4817
      %v4819 = vpop.f32.mrb[0].mxu0
      %v4820 = vpop.f32.mrb[0].mxu0
      %4821 = vdwg.mxu0
      %4822 = vmatprep.subr.bf16.mxu0 %v4246
      %4823 = vmatpush1.bf16.msra.mxu0 %v4245
      %4824 = vmatprep.subr.bf16.mxu0 %v4254
      %4825 = vmatpush1.bf16.msra.mxu0 %v4253
      %4826 = vmatprep.subr.bf16.mxu0 %v4262
      %4827 = vmatpush1.bf16.msra.mxu0 %v4261
      %4828 = vmatprep.subr.bf16.mxu0 %v4270
      %4829 = vmatpush1.bf16.msra.mxu0 %v4269
      %4830 = vmatprep.subr.bf16.mxu0 %v4278
      %4831 = vmatpush1.bf16.msra.mxu0 %v4277
      %4832 = vmatprep.subr.bf16.mxu0 %v4286
      %4833 = vmatpush1.bf16.msra.mxu0 %v4285
      %4834 = vmatprep.subr.bf16.mxu0 %v4294
      %4835 = vmatpush1.bf16.msra.mxu0 %v4293
      %4836 = vmatprep.subr.bf16.mxu0 %v4302
      %4837 = vmatpush1.bf16.msra.mxu0 %v4301
      %4838 = vmatprep.subr.bf16.mxu0 %v4310
      %4839 = vmatpush1.bf16.msra.mxu0 %v4309
      %4840 = vmatprep.subr.bf16.mxu0 %v4318
      %4841 = vmatpush1.bf16.msra.mxu0 %v4317
      %4842 = vmatprep.subr.bf16.mxu0 %v4326
      %4843 = vmatpush1.bf16.msra.mxu0 %v4325
      %4844 = vmatprep.subr.bf16.mxu0 %v4334
      %4845 = vmatpush1.bf16.msra.mxu0 %v4333
      %4846 = vmatprep.subr.bf16.mxu0 %v4342
      %4847 = vmatpush1.bf16.msra.mxu0 %v4341
      %4848 = vmatprep.subr.bf16.mxu0 %v4350
      %4849 = vmatpush1.bf16.msra.mxu0 %v4349
      %4850 = vmatprep.subr.bf16.mxu0 %v4358
      %4851 = vmatpush1.bf16.msra.mxu0 %v4357
      %4852 = vmatprep.subr.bf16.mxu0 %v4366
      %4853 = vmatpush1.bf16.msra.mxu0 %v4365
      %4854 = vmatprep.mubr.bf16.mxu0 %v3218
      %4855 = vmatmul.mubr.bf16.gmra.mrb[0].mxu0 %v3217
      %v4856 = vpop.f32.mrb[0].mxu0
      %v4857 = vadd.f32 %v4816, %v4856
      %v4858 = vpop.f32.mrb[0].mxu0
      %v4859 = vadd.f32 %v4818, %v4858
      %v4860 = vpop.f32.mrb[0].mxu0
      %v4861 = vpop.f32.mrb[0].mxu0
      %4862 = vdwg.mxu0
      %4863 = vmatprep.subr.bf16.mxu0 %v3608
      %4864 = vmatpush1.bf16.msra.mxu0 %v3607
      %4865 = vmatprep.subr.bf16.mxu0 %v3616
      %4866 = vmatpush1.bf16.msra.mxu0 %v3615
      %4867 = vmatprep.subr.bf16.mxu0 %v3624
      %4868 = vmatpush1.bf16.msra.mxu0 %v3623
      %4869 = vmatprep.subr.bf16.mxu0 %v3632
      %4870 = vmatpush1.bf16.msra.mxu0 %v3631
      %4871 = vmatprep.subr.bf16.mxu0 %v3640
      %4872 = vmatpush1.bf16.msra.mxu0 %v3639
      %4873 = vmatprep.subr.bf16.mxu0 %v3648
      %4874 = vmatpush1.bf16.msra.mxu0 %v3647
      %4875 = vmatprep.subr.bf16.mxu0 %v3656
      %4876 = vmatpush1.bf16.msra.mxu0 %v3655
      %4877 = vmatprep.subr.bf16.mxu0 %v3664
      %4878 = vmatpush1.bf16.msra.mxu0 %v3663
      %4879 = vmatprep.subr.bf16.mxu0 %v3672
      %4880 = vmatpush1.bf16.msra.mxu0 %v3671
      %4881 = vmatprep.subr.bf16.mxu0 %v3680
      %4882 = vmatpush1.bf16.msra.mxu0 %v3679
      %4883 = vmatprep.subr.bf16.mxu0 %v3688
      %4884 = vmatpush1.bf16.msra.mxu0 %v3687
      %4885 = vmatprep.subr.bf16.mxu0 %v3696
      %4886 = vmatpush1.bf16.msra.mxu0 %v3695
      %4887 = vmatprep.subr.bf16.mxu0 %v3704
      %4888 = vmatpush1.bf16.msra.mxu0 %v3703
      %4889 = vmatprep.subr.bf16.mxu0 %v3712
      %4890 = vmatpush1.bf16.msra.mxu0 %v3711
      %4891 = vmatprep.subr.bf16.mxu0 %v3720
      %4892 = vmatpush1.bf16.msra.mxu0 %v3719
      %4893 = vmatprep.subr.bf16.mxu0 %v3728
      %4894 = vmatpush1.bf16.msra.mxu0 %v3727
      %4895 = vmatprep.mubr.bf16.mxu0 %v3208
      %4896 = vmatmul.mubr.bf16.gmra.mrb[0].mxu0 %v3207
      %v4897 = vpop.f32.mrb[0].mxu0
      %v4898 = vadd.f32 0.0, %v4897
      %v4899 = vpop.f32.mrb[0].mxu0
      %v4900 = vadd.f32 0.0, %v4899
      %v4901 = vpop.f32.mrb[0].mxu0
      %v4902 = vpop.f32.mrb[0].mxu0
      %4903 = vdwg.mxu0
      %4904 = vmatprep.subr.bf16.mxu0 %v3736
      %4905 = vmatpush1.bf16.msra.mxu0 %v3735
      %4906 = vmatprep.subr.bf16.mxu0 %v3744
      %4907 = vmatpush1.bf16.msra.mxu0 %v3743
      %4908 = vmatprep.subr.bf16.mxu0 %v3752
      %4909 = vmatpush1.bf16.msra.mxu0 %v3751
      %4910 = vmatprep.subr.bf16.mxu0 %v3760
      %4911 = vmatpush1.bf16.msra.mxu0 %v3759
      %4912 = vmatprep.subr.bf16.mxu0 %v3768
      %4913 = vmatpush1.bf16.msra.mxu0 %v3767
      %4914 = vmatprep.subr.bf16.mxu0 %v3776
      %4915 = vmatpush1.bf16.msra.mxu0 %v3775
      %4916 = vmatprep.subr.bf16.mxu0 %v3784
      %4917 = vmatpush1.bf16.msra.mxu0 %v3783
      %4918 = vmatprep.subr.bf16.mxu0 %v3792
      %4919 = vmatpush1.bf16.msra.mxu0 %v3791
      %4920 = vmatprep.subr.bf16.mxu0 %v3800
      %4921 = vmatpush1.bf16.msra.mxu0 %v3799
      %4922 = vmatprep.subr.bf16.mxu0 %v3808
      %4923 = vmatpush1.bf16.msra.mxu0 %v3807
      %4924 = vmatprep.subr.bf16.mxu0 %v3816
      %4925 = vmatpush1.bf16.msra.mxu0 %v3815
      %4926 = vmatprep.subr.bf16.mxu0 %v3824
      %4927 = vmatpush1.bf16.msra.mxu0 %v3823
      %4928 = vmatprep.subr.bf16.mxu0 %v3832
      %4929 = vmatpush1.bf16.msra.mxu0 %v3831
      %4930 = vmatprep.subr.bf16.mxu0 %v3840
      %4931 = vmatpush1.bf16.msra.mxu0 %v3839
      %4932 = vmatprep.subr.bf16.mxu0 %v3848
      %4933 = vmatpush1.bf16.msra.mxu0 %v3847
      %4934 = vmatprep.subr.bf16.mxu0 %v3856
      %4935 = vmatpush1.bf16.msra.mxu0 %v3855
      %4936 = vmatprep.mubr.bf16.mxu0 %v3210
      %4937 = vmatmul.mubr.bf16.gmra.mrb[0].mxu0 %v3209
      %v4938 = vpop.f32.mrb[0].mxu0
      %v4939 = vadd.f32 %v4898, %v4938
      %v4940 = vpop.f32.mrb[0].mxu0
      %v4941 = vadd.f32 %v4900, %v4940
      %v4942 = vpop.f32.mrb[0].mxu0
      %v4943 = vpop.f32.mrb[0].mxu0
      %4944 = vdwg.mxu0
      %4945 = vmatprep.subr.bf16.mxu0 %v3864
      %4946 = vmatpush1.bf16.msra.mxu0 %v3863
      %4947 = vmatprep.subr.bf16.mxu0 %v3872
      %4948 = vmatpush1.bf16.msra.mxu0 %v3871
      %4949 = vmatprep.subr.bf16.mxu0 %v3880
      %4950 = vmatpush1.bf16.msra.mxu0 %v3879
      %4951 = vmatprep.subr.bf16.mxu0 %v3888
      %4952 = vmatpush1.bf16.msra.mxu0 %v3887
      %4953 = vmatprep.subr.bf16.mxu0 %v3896
      %4954 = vmatpush1.bf16.msra.mxu0 %v3895
      %4955 = vmatprep.subr.bf16.mxu0 %v3904
      %4956 = vmatpush1.bf16.msra.mxu0 %v3903
      %4957 = vmatprep.subr.bf16.mxu0 %v3912
      %4958 = vmatpush1.bf16.msra.mxu0 %v3911
      %4959 = vmatprep.subr.bf16.mxu0 %v3920
      %4960 = vmatpush1.bf16.msra.mxu0 %v3919
      %4961 = vmatprep.subr.bf16.mxu0 %v3928
      %4962 = vmatpush1.bf16.msra.mxu0 %v3927
      %4963 = vmatprep.subr.bf16.mxu0 %v3936
      %4964 = vmatpush1.bf16.msra.mxu0 %v3935
      %4965 = vmatprep.subr.bf16.mxu0 %v3944
      %4966 = vmatpush1.bf16.msra.mxu0 %v3943
      %4967 = vmatprep.subr.bf16.mxu0 %v3952
      %4968 = vmatpush1.bf16.msra.mxu0 %v3951
      %4969 = vmatprep.subr.bf16.mxu0 %v3960
      %4970 = vmatpush1.bf16.msra.mxu0 %v3959
      %4971 = vmatprep.subr.bf16.mxu0 %v3968
      %4972 = vmatpush1.bf16.msra.mxu0 %v3967
      %4973 = vmatprep.subr.bf16.mxu0 %v3976
      %4974 = vmatpush1.bf16.msra.mxu0 %v3975
      %4975 = vmatprep.subr.bf16.mxu0 %v3984
      %4976 = vmatpush1.bf16.msra.mxu0 %v3983
      %4977 = vmatprep.mubr.bf16.mxu0 %v3212
      %4978 = vmatmul.mubr.bf16.gmra.mrb[0].mxu0 %v3211
      %v4979 = vpop.f32.mrb[0].mxu0
      %v4980 = vadd.f32 %v4939, %v4979
      %v4981 = vpop.f32.mrb[0].mxu0
      %v4982 = vadd.f32 %v4941, %v4981
      %v4983 = vpop.f32.mrb[0].mxu0
      %v4984 = vpop.f32.mrb[0].mxu0
      %4985 = vdwg.mxu0
      %4986 = vmatprep.subr.bf16.mxu0 %v3992
      %4987 = vmatpush1.bf16.msra.mxu0 %v3991
      %4988 = vmatprep.subr.bf16.mxu0 %v4000
      %4989 = vmatpush1.bf16.msra.mxu0 %v3999
      %4990 = vmatprep.subr.bf16.mxu0 %v4008
      %4991 = vmatpush1.bf16.msra.mxu0 %v4007
      %4992 = vmatprep.subr.bf16.mxu0 %v4016
      %4993 = vmatpush1.bf16.msra.mxu0 %v4015
      %4994 = vmatprep.subr.bf16.mxu0 %v4024
      %4995 = vmatpush1.bf16.msra.mxu0 %v4023
      %4996 = vmatprep.subr.bf16.mxu0 %v4032
      %4997 = vmatpush1.bf16.msra.mxu0 %v4031
      %4998 = vmatprep.subr.bf16.mxu0 %v4040
      %4999 = vmatpush1.bf16.msra.mxu0 %v4039
      %5000 = vmatprep.subr.bf16.mxu0 %v4048
      %5001 = vmatpush1.bf16.msra.mxu0 %v4047
      %5002 = vmatprep.subr.bf16.mxu0 %v4056
      %5003 = vmatpush1.bf16.msra.mxu0 %v4055
      %5004 = vmatprep.subr.bf16.mxu0 %v4064
      %5005 = vmatpush1.bf16.msra.mxu0 %v4063
      %5006 = vmatprep.subr.bf16.mxu0 %v4072
      %5007 = vmatpush1.bf16.msra.mxu0 %v4071
      %5008 = vmatprep.subr.bf16.mxu0 %v4080
      %5009 = vmatpush1.bf16.msra.mxu0 %v4079
      %5010 = vmatprep.subr.bf16.mxu0 %v4088
      %5011 = vmatpush1.bf16.msra.mxu0 %v4087
      %5012 = vmatprep.subr.bf16.mxu0 %v4096
      %5013 = vmatpush1.bf16.msra.mxu0 %v4095
      %5014 = vmatprep.subr.bf16.mxu0 %v4104
      %5015 = vmatpush1.bf16.msra.mxu0 %v4103
      %5016 = vmatprep.subr.bf16.mxu0 %v4112
      %5017 = vmatpush1.bf16.msra.mxu0 %v4111
      %5018 = vmatprep.mubr.bf16.mxu0 %v3214
      %5019 = vmatmul.mubr.bf16.gmra.mrb[0].mxu0 %v3213
      %v5020 = vpop.f32.mrb[0].mxu0
      %v5021 = vadd.f32 %v4980, %v5020
      %v5022 = vpop.f32.mrb[0].mxu0
      %v5023 = vadd.f32 %v4982, %v5022
      %v5024 = vpop.f32.mrb[0].mxu0
      %v5025 = vpop.f32.mrb[0].mxu0
      %5026 = vdwg.mxu0
      %5027 = vmatprep.subr.bf16.mxu0 %v4120
      %5028 = vmatpush1.bf16.msra.mxu0 %v4119
      %5029 = vmatprep.subr.bf16.mxu0 %v4128
      %5030 = vmatpush1.bf16.msra.mxu0 %v4127
      %5031 = vmatprep.subr.bf16.mxu0 %v4136
      %5032 = vmatpush1.bf16.msra.mxu0 %v4135
      %5033 = vmatprep.subr.bf16.mxu0 %v4144
      %5034 = vmatpush1.bf16.msra.mxu0 %v4143
      %5035 = vmatprep.subr.bf16.mxu0 %v4152
      %5036 = vmatpush1.bf16.msra.mxu0 %v4151
      %5037 = vmatprep.subr.bf16.mxu0 %v4160
      %5038 = vmatpush1.bf16.msra.mxu0 %v4159
      %5039 = vmatprep.subr.bf16.mxu0 %v4168
      %5040 = vmatpush1.bf16.msra.mxu0 %v4167
      %5041 = vmatprep.subr.bf16.mxu0 %v4176
      %5042 = vmatpush1.bf16.msra.mxu0 %v4175
      %5043 = vmatprep.subr.bf16.mxu0 %v4184
      %5044 = vmatpush1.bf16.msra.mxu0 %v4183
      %5045 = vmatprep.subr.bf16.mxu0 %v4192
      %5046 = vmatpush1.bf16.msra.mxu0 %v4191
      %5047 = vmatprep.subr.bf16.mxu0 %v4200
      %5048 = vmatpush1.bf16.msra.mxu0 %v4199
      %5049 = vmatprep.subr.bf16.mxu0 %v4208
      %5050 = vmatpush1.bf16.msra.mxu0 %v4207
      %5051 = vmatprep.subr.bf16.mxu0 %v4216
      %5052 = vmatpush1.bf16.msra.mxu0 %v4215
      %5053 = vmatprep.subr.bf16.mxu0 %v4224
      %5054 = vmatpush1.bf16.msra.mxu0 %v4223
      %5055 = vmatprep.subr.bf16.mxu0 %v4232
      %5056 = vmatpush1.bf16.msra.mxu0 %v4231
      %5057 = vmatprep.subr.bf16.mxu0 %v4240
      %5058 = vmatpush1.bf16.msra.mxu0 %v4239
      %5059 = vmatprep.mubr.bf16.mxu0 %v3216
      %5060 = vmatmul.mubr.bf16.gmra.mrb[0].mxu0 %v3215
      %v5061 = vpop.f32.mrb[0].mxu0
      %v5062 = vadd.f32 %v5021, %v5061
      %v5063 = vpop.f32.mrb[0].mxu0
      %v5064 = vadd.f32 %v5023, %v5063
      %v5065 = vpop.f32.mrb[0].mxu0
      %v5066 = vpop.f32.mrb[0].mxu0
      %5067 = vdwg.mxu0
      %5068 = vmatprep.subr.bf16.mxu0 %v4248
      %5069 = vmatpush1.bf16.msra.mxu0 %v4247
      %5070 = vmatprep.subr.bf16.mxu0 %v4256
      %5071 = vmatpush1.bf16.msra.mxu0 %v4255
      %5072 = vmatprep.subr.bf16.mxu0 %v4264
      %5073 = vmatpush1.bf16.msra.mxu0 %v4263
      %5074 = vmatprep.subr.bf16.mxu0 %v4272
      %5075 = vmatpush1.bf16.msra.mxu0 %v4271
      %5076 = vmatprep.subr.bf16.mxu0 %v4280
      %5077 = vmatpush1.bf16.msra.mxu0 %v4279
      %5078 = vmatprep.subr.bf16.mxu0 %v4288
      %5079 = vmatpush1.bf16.msra.mxu0 %v4287
      %5080 = vmatprep.subr.bf16.mxu0 %v4296
      %5081 = vmatpush1.bf16.msra.mxu0 %v4295
      %5082 = vmatprep.subr.bf16.mxu0 %v4304
      %5083 = vmatpush1.bf16.msra.mxu0 %v4303
      %5084 = vmatprep.subr.bf16.mxu0 %v4312
      %5085 = vmatpush1.bf16.msra.mxu0 %v4311
      %5086 = vmatprep.subr.bf16.mxu0 %v4320
      %5087 = vmatpush1.bf16.msra.mxu0 %v4319
      %5088 = vmatprep.subr.bf16.mxu0 %v4328
      %5089 = vmatpush1.bf16.msra.mxu0 %v4327
      %5090 = vmatprep.subr.bf16.mxu0 %v4336
      %5091 = vmatpush1.bf16.msra.mxu0 %v4335
      %5092 = vmatprep.subr.bf16.mxu0 %v4344
      %5093 = vmatpush1.bf16.msra.mxu0 %v4343
      %5094 = vmatprep.subr.bf16.mxu0 %v4352
      %5095 = vmatpush1.bf16.msra.mxu0 %v4351
      %5096 = vmatprep.subr.bf16.mxu0 %v4360
      %5097 = vmatpush1.bf16.msra.mxu0 %v4359
      %5098 = vmatprep.subr.bf16.mxu0 %v4368
      %5099 = vmatpush1.bf16.msra.mxu0 %v4367
      %5100 = vmatprep.mubr.bf16.mxu0 %v3218
      %5101 = vmatmul.mubr.bf16.gmra.mrb[0].mxu0 %v3217
      %v5102 = vpop.f32.mrb[0].mxu0
      %v5103 = vadd.f32 %v5062, %v5102
      %v5104 = vpop.f32.mrb[0].mxu0
      %v5105 = vadd.f32 %v5064, %v5104
      %v5106 = vpop.f32.mrb[0].mxu0
      %v5107 = vpop.f32.mrb[0].mxu0
      %5108 = vdwg.mxu0
      %5109 = vmatprep.subr.bf16.mxu0 %v3610
      %5110 = vmatpush1.bf16.msra.mxu0 %v3609
      %5111 = vmatprep.subr.bf16.mxu0 %v3618
      %5112 = vmatpush1.bf16.msra.mxu0 %v3617
      %5113 = vmatprep.subr.bf16.mxu0 %v3626
      %5114 = vmatpush1.bf16.msra.mxu0 %v3625
      %5115 = vmatprep.subr.bf16.mxu0 %v3634
      %5116 = vmatpush1.bf16.msra.mxu0 %v3633
      %5117 = vmatprep.subr.bf16.mxu0 %v3642
      %5118 = vmatpush1.bf16.msra.mxu0 %v3641
      %5119 = vmatprep.subr.bf16.mxu0 %v3650
      %5120 = vmatpush1.bf16.msra.mxu0 %v3649
      %5121 = vmatprep.subr.bf16.mxu0 %v3658
      %5122 = vmatpush1.bf16.msra.mxu0 %v3657
      %5123 = vmatprep.subr.bf16.mxu0 %v3666
      %5124 = vmatpush1.bf16.msra.mxu0 %v3665
      %5125 = vmatprep.subr.bf16.mxu0 %v3674
      %5126 = vmatpush1.bf16.msra.mxu0 %v3673
      %5127 = vmatprep.subr.bf16.mxu0 %v3682
      %5128 = vmatpush1.bf16.msra.mxu0 %v3681
      %5129 = vmatprep.subr.bf16.mxu0 %v3690
      %5130 = vmatpush1.bf16.msra.mxu0 %v3689
      %5131 = vmatprep.subr.bf16.mxu0 %v3698
      %5132 = vmatpush1.bf16.msra.mxu0 %v3697
      %5133 = vmatprep.subr.bf16.mxu0 %v3706
      %5134 = vmatpush1.bf16.msra.mxu0 %v3705
      %5135 = vmatprep.subr.bf16.mxu0 %v3714
      %5136 = vmatpush1.bf16.msra.mxu0 %v3713
      %5137 = vmatprep.subr.bf16.mxu0 %v3722
      %5138 = vmatpush1.bf16.msra.mxu0 %v3721
      %5139 = vmatprep.subr.bf16.mxu0 %v3730
      %5140 = vmatpush1.bf16.msra.mxu0 %v3729
      %5141 = vmatprep.mubr.bf16.mxu0 %v3208
      %5142 = vmatmul.mubr.bf16.gmra.mrb[0].mxu0 %v3207
      %v5143 = vpop.f32.mrb[0].mxu0
      %v5144 = vadd.f32 0.0, %v5143
      %v5145 = vpop.f32.mrb[0].mxu0
      %v5146 = vadd.f32 0.0, %v5145
      %v5147 = vpop.f32.mrb[0].mxu0
      %v5148 = vpop.f32.mrb[0].mxu0
      %5149 = vdwg.mxu0
      %5150 = vmatprep.subr.bf16.mxu0 %v3738
      %5151 = vmatpush1.bf16.msra.mxu0 %v3737
      %5152 = vmatprep.subr.bf16.mxu0 %v3746
      %5153 = vmatpush1.bf16.msra.mxu0 %v3745
      %5154 = vmatprep.subr.bf16.mxu0 %v3754
      %5155 = vmatpush1.bf16.msra.mxu0 %v3753
      %5156 = vmatprep.subr.bf16.mxu0 %v3762
      %5157 = vmatpush1.bf16.msra.mxu0 %v3761
      %5158 = vmatprep.subr.bf16.mxu0 %v3770
      %5159 = vmatpush1.bf16.msra.mxu0 %v3769
      %5160 = vmatprep.subr.bf16.mxu0 %v3778
      %5161 = vmatpush1.bf16.msra.mxu0 %v3777
      %5162 = vmatprep.subr.bf16.mxu0 %v3786
      %5163 = vmatpush1.bf16.msra.mxu0 %v3785
      %5164 = vmatprep.subr.bf16.mxu0 %v3794
      %5165 = vmatpush1.bf16.msra.mxu0 %v3793
      %5166 = vmatprep.subr.bf16.mxu0 %v3802
      %5167 = vmatpush1.bf16.msra.mxu0 %v3801
      %5168 = vmatprep.subr.bf16.mxu0 %v3810
      %5169 = vmatpush1.bf16.msra.mxu0 %v3809
      %5170 = vmatprep.subr.bf16.mxu0 %v3818
      %5171 = vmatpush1.bf16.msra.mxu0 %v3817
      %5172 = vmatprep.subr.bf16.mxu0 %v3826
      %5173 = vmatpush1.bf16.msra.mxu0 %v3825
      %5174 = vmatprep.subr.bf16.mxu0 %v3834
      %5175 = vmatpush1.bf16.msra.mxu0 %v3833
      %5176 = vmatprep.subr.bf16.mxu0 %v3842
      %5177 = vmatpush1.bf16.msra.mxu0 %v3841
      %5178 = vmatprep.subr.bf16.mxu0 %v3850
      %5179 = vmatpush1.bf16.msra.mxu0 %v3849
      %5180 = vmatprep.subr.bf16.mxu0 %v3858
      %5181 = vmatpush1.bf16.msra.mxu0 %v3857
      %5182 = vmatprep.mubr.bf16.mxu0 %v3210
      %5183 = vmatmul.mubr.bf16.gmra.mrb[0].mxu0 %v3209
      %v5184 = vpop.f32.mrb[0].mxu0
      %v5185 = vadd.f32 %v5144, %v5184
      %v5186 = vpop.f32.mrb[0].mxu0
      %v5187 = vadd.f32 %v5146, %v5186
      %v5188 = vpop.f32.mrb[0].mxu0
      %v5189 = vpop.f32.mrb[0].mxu0
      %5190 = vdwg.mxu0
      %5191 = vmatprep.subr.bf16.mxu0 %v3866
      %5192 = vmatpush1.bf16.msra.mxu0 %v3865
      %5193 = vmatprep.subr.bf16.mxu0 %v3874
      %5194 = vmatpush1.bf16.msra.mxu0 %v3873
      %5195 = vmatprep.subr.bf16.mxu0 %v3882
      %5196 = vmatpush1.bf16.msra.mxu0 %v3881
      %5197 = vmatprep.subr.bf16.mxu0 %v3890
      %5198 = vmatpush1.bf16.msra.mxu0 %v3889
      %5199 = vmatprep.subr.bf16.mxu0 %v3898
      %5200 = vmatpush1.bf16.msra.mxu0 %v3897
      %5201 = vmatprep.subr.bf16.mxu0 %v3906
      %5202 = vmatpush1.bf16.msra.mxu0 %v3905
      %5203 = vmatprep.subr.bf16.mxu0 %v3914
      %5204 = vmatpush1.bf16.msra.mxu0 %v3913
      %5205 = vmatprep.subr.bf16.mxu0 %v3922
      %5206 = vmatpush1.bf16.msra.mxu0 %v3921
      %5207 = vmatprep.subr.bf16.mxu0 %v3930
      %5208 = vmatpush1.bf16.msra.mxu0 %v3929
      %5209 = vmatprep.subr.bf16.mxu0 %v3938
      %5210 = vmatpush1.bf16.msra.mxu0 %v3937
      %5211 = vmatprep.subr.bf16.mxu0 %v3946
      %5212 = vmatpush1.bf16.msra.mxu0 %v3945
      %5213 = vmatprep.subr.bf16.mxu0 %v3954
      %5214 = vmatpush1.bf16.msra.mxu0 %v3953
      %5215 = vmatprep.subr.bf16.mxu0 %v3962
      %5216 = vmatpush1.bf16.msra.mxu0 %v3961
      %5217 = vmatprep.subr.bf16.mxu0 %v3970
      %5218 = vmatpush1.bf16.msra.mxu0 %v3969
      %5219 = vmatprep.subr.bf16.mxu0 %v3978
      %5220 = vmatpush1.bf16.msra.mxu0 %v3977
      %5221 = vmatprep.subr.bf16.mxu0 %v3986
      %5222 = vmatpush1.bf16.msra.mxu0 %v3985
      %5223 = vmatprep.mubr.bf16.mxu0 %v3212
      %5224 = vmatmul.mubr.bf16.gmra.mrb[0].mxu0 %v3211
      %v5225 = vpop.f32.mrb[0].mxu0
      %v5226 = vadd.f32 %v5185, %v5225
      %v5227 = vpop.f32.mrb[0].mxu0
      %v5228 = vadd.f32 %v5187, %v5227
      %v5229 = vpop.f32.mrb[0].mxu0
      %v5230 = vpop.f32.mrb[0].mxu0
      %5231 = vdwg.mxu0
      %5232 = vmatprep.subr.bf16.mxu0 %v3994
      %5233 = vmatpush1.bf16.msra.mxu0 %v3993
      %5234 = vmatprep.subr.bf16.mxu0 %v4002
      %5235 = vmatpush1.bf16.msra.mxu0 %v4001
      %5236 = vmatprep.subr.bf16.mxu0 %v4010
      %5237 = vmatpush1.bf16.msra.mxu0 %v4009
      %5238 = vmatprep.subr.bf16.mxu0 %v4018
      %5239 = vmatpush1.bf16.msra.mxu0 %v4017
      %5240 = vmatprep.subr.bf16.mxu0 %v4026
      %5241 = vmatpush1.bf16.msra.mxu0 %v4025
      %5242 = vmatprep.subr.bf16.mxu0 %v4034
      %5243 = vmatpush1.bf16.msra.mxu0 %v4033
      %5244 = vmatprep.subr.bf16.mxu0 %v4042
      %5245 = vmatpush1.bf16.msra.mxu0 %v4041
      %5246 = vmatprep.subr.bf16.mxu0 %v4050
      %5247 = vmatpush1.bf16.msra.mxu0 %v4049
      %5248 = vmatprep.subr.bf16.mxu0 %v4058
      %5249 = vmatpush1.bf16.msra.mxu0 %v4057
      %5250 = vmatprep.subr.bf16.mxu0 %v4066
      %5251 = vmatpush1.bf16.msra.mxu0 %v4065
      %5252 = vmatprep.subr.bf16.mxu0 %v4074
      %5253 = vmatpush1.bf16.msra.mxu0 %v4073
      %5254 = vmatprep.subr.bf16.mxu0 %v4082
      %5255 = vmatpush1.bf16.msra.mxu0 %v4081
      %5256 = vmatprep.subr.bf16.mxu0 %v4090
      %5257 = vmatpush1.bf16.msra.mxu0 %v4089
      %5258 = vmatprep.subr.bf16.mxu0 %v4098
      %5259 = vmatpush1.bf16.msra.mxu0 %v4097
      %5260 = vmatprep.subr.bf16.mxu0 %v4106
      %5261 = vmatpush1.bf16.msra.mxu0 %v4105
      %5262 = vmatprep.subr.bf16.mxu0 %v4114
      %5263 = vmatpush1.bf16.msra.mxu0 %v4113
      %5264 = vmatprep.mubr.bf16.mxu0 %v3214
      %5265 = vmatmul.mubr.bf16.gmra.mrb[0].mxu0 %v3213
      %v5266 = vpop.f32.mrb[0].mxu0
      %v5267 = vadd.f32 %v5226, %v5266
      %v5268 = vpop.f32.mrb[0].mxu0
      %v5269 = vadd.f32 %v5228, %v5268
      %v5270 = vpop.f32.mrb[0].mxu0
      %v5271 = vpop.f32.mrb[0].mxu0
      %5272 = vdwg.mxu0
      %5273 = vmatprep.subr.bf16.mxu0 %v4122
      %5274 = vmatpush1.bf16.msra.mxu0 %v4121
      %5275 = vmatprep.subr.bf16.mxu0 %v4130
      %5276 = vmatpush1.bf16.msra.mxu0 %v4129
      %5277 = vmatprep.subr.bf16.mxu0 %v4138
      %5278 = vmatpush1.bf16.msra.mxu0 %v4137
      %5279 = vmatprep.subr.bf16.mxu0 %v4146
      %5280 = vmatpush1.bf16.msra.mxu0 %v4145
      %5281 = vmatprep.subr.bf16.mxu0 %v4154
      %5282 = vmatpush1.bf16.msra.mxu0 %v4153
      %5283 = vmatprep.subr.bf16.mxu0 %v4162
      %5284 = vmatpush1.bf16.msra.mxu0 %v4161
      %5285 = vmatprep.subr.bf16.mxu0 %v4170
      %5286 = vmatpush1.bf16.msra.mxu0 %v4169
      %5287 = vmatprep.subr.bf16.mxu0 %v4178
      %5288 = vmatpush1.bf16.msra.mxu0 %v4177
      %5289 = vmatprep.subr.bf16.mxu0 %v4186
      %5290 = vmatpush1.bf16.msra.mxu0 %v4185
      %5291 = vmatprep.subr.bf16.mxu0 %v4194
      %5292 = vmatpush1.bf16.msra.mxu0 %v4193
      %5293 = vmatprep.subr.bf16.mxu0 %v4202
      %5294 = vmatpush1.bf16.msra.mxu0 %v4201
      %5295 = vmatprep.subr.bf16.mxu0 %v4210
      %5296 = vmatpush1.bf16.msra.mxu0 %v4209
      %5297 = vmatprep.subr.bf16.mxu0 %v4218
      %5298 = vmatpush1.bf16.msra.mxu0 %v4217
      %5299 = vmatprep.subr.bf16.mxu0 %v4226
      %5300 = vmatpush1.bf16.msra.mxu0 %v4225
      %5301 = vmatprep.subr.bf16.mxu0 %v4234
      %5302 = vmatpush1.bf16.msra.mxu0 %v4233
      %5303 = vmatprep.subr.bf16.mxu0 %v4242
      %5304 = vmatpush1.bf16.msra.mxu0 %v4241
      %5305 = vmatprep.mubr.bf16.mxu0 %v3216
      %5306 = vmatmul.mubr.bf16.gmra.mrb[0].mxu0 %v3215
      %v5307 = vpop.f32.mrb[0].mxu0
      %v5308 = vadd.f32 %v5267, %v5307
      %v5309 = vpop.f32.mrb[0].mxu0
      %v5310 = vadd.f32 %v5269, %v5309
      %v5311 = vpop.f32.mrb[0].mxu0
      %v5312 = vpop.f32.mrb[0].mxu0
      %5313 = vdwg.mxu0
      %5314 = vmatprep.subr.bf16.mxu0 %v4250
      %5315 = vmatpush1.bf16.msra.mxu0 %v4249
      %5316 = vmatprep.subr.bf16.mxu0 %v4258
      %5317 = vmatpush1.bf16.msra.mxu0 %v4257
      %5318 = vmatprep.subr.bf16.mxu0 %v4266
      %5319 = vmatpush1.bf16.msra.mxu0 %v4265
      %5320 = vmatprep.subr.bf16.mxu0 %v4274
      %5321 = vmatpush1.bf16.msra.mxu0 %v4273
      %5322 = vmatprep.subr.bf16.mxu0 %v4282
      %5323 = vmatpush1.bf16.msra.mxu0 %v4281
      %5324 = vmatprep.subr.bf16.mxu0 %v4290
      %5325 = vmatpush1.bf16.msra.mxu0 %v4289
      %5326 = vmatprep.subr.bf16.mxu0 %v4298
      %5327 = vmatpush1.bf16.msra.mxu0 %v4297
      %5328 = vmatprep.subr.bf16.mxu0 %v4306
      %5329 = vmatpush1.bf16.msra.mxu0 %v4305
      %5330 = vmatprep.subr.bf16.mxu0 %v4314
      %5331 = vmatpush1.bf16.msra.mxu0 %v4313
      %5332 = vmatprep.subr.bf16.mxu0 %v4322
      %5333 = vmatpush1.bf16.msra.mxu0 %v4321
      %5334 = vmatprep.subr.bf16.mxu0 %v4330
      %5335 = vmatpush1.bf16.msra.mxu0 %v4329
      %5336 = vmatprep.subr.bf16.mxu0 %v4338
      %5337 = vmatpush1.bf16.msra.mxu0 %v4337
      %5338 = vmatprep.subr.bf16.mxu0 %v4346
      %5339 = vmatpush1.bf16.msra.mxu0 %v4345
      %5340 = vmatprep.subr.bf16.mxu0 %v4354
      %5341 = vmatpush1.bf16.msra.mxu0 %v4353
      %5342 = vmatprep.subr.bf16.mxu0 %v4362
      %5343 = vmatpush1.bf16.msra.mxu0 %v4361
      %5344 = vmatprep.subr.bf16.mxu0 %v4370
      %5345 = vmatpush1.bf16.msra.mxu0 %v4369
      %5346 = vmatprep.mubr.bf16.mxu0 %v3218
      %5347 = vmatmul.mubr.bf16.gmra.mrb[0].mxu0 %v3217
      %v5348 = vpop.f32.mrb[0].mxu0
      %v5349 = vadd.f32 %v5308, %v5348
      %v5350 = vpop.f32.mrb[0].mxu0
      %v5351 = vadd.f32 %v5310, %v5350
      %v5352 = vpop.f32.mrb[0].mxu0
      %v5353 = vpop.f32.mrb[0].mxu0
      %5354 = vdwg.mxu0
      %v5355 = vld [vmem:[%s5] sm:$0xff]
      %v5357 = vlaneseq
      %v5358 = vshrl.u32 %v5357, 7
      %v5359 = vsub.s32 0, %v5358
      %v5360 = vrot.slane %v5355, %v5359
      %v5361 = vlaneseq
      %v5362 = vshrl.u32 %v5361, 7
      %v5363 = vsub.s32 1, %v5362
      %v5364 = vrot.slane %v5355, %v5363
      %v5365 = vlaneseq
      %v5366 = vshrl.u32 %v5365, 7
      %v5367 = vsub.s32 2, %v5366
      %v5368 = vrot.slane %v5355, %v5367
      %v5369 = vlaneseq
      %v5370 = vshrl.u32 %v5369, 7
      %v5371 = vsub.s32 3, %v5370
      %v5372 = vrot.slane %v5355, %v5371
      %v5373 = vlaneseq
      %v5374 = vshrl.u32 %v5373, 7
      %v5375 = vsub.s32 4, %v5374
      %v5376 = vrot.slane %v5355, %v5375
      %v5377 = vlaneseq
      %v5378 = vshrl.u32 %v5377, 7
      %v5379 = vsub.s32 5, %v5378
      %v5380 = vrot.slane %v5355, %v5379
      %v5381 = vlaneseq
      %v5382 = vshrl.u32 %v5381, 7
      %v5383 = vsub.s32 6, %v5382
      %v5384 = vrot.slane %v5355, %v5383
      %v5385 = vlaneseq
      %v5386 = vshrl.u32 %v5385, 7
      %v5387 = vsub.s32 7, %v5386
      %v5388 = vrot.slane %v5355, %v5387
      %v5397 = vmul.f32 %v4611, %v5360
      %v5398 = vmul.f32 %v4613, %v5364
      %v5399 = vmul.f32 %v4857, %v5368
      %v5400 = vmul.f32 %v4859, %v5372
      %v5401 = vmul.f32 %v5103, %v5376
      %v5402 = vmul.f32 %v5105, %v5380
      %v5403 = vmul.f32 %v5349, %v5384
      %v5404 = vmul.f32 %v5351, %v5388
      %v5406 = vlaneseq
      %v5407 = vshrl.u32 %v5406, 7
      %v5408 = vsub.s32 0, %v5407
      %v5409 = vrot.slane %v3136, %v5408
      %v5410 = vlaneseq
      %v5411 = vshrl.u32 %v5410, 7
      %v5412 = vsub.s32 1, %v5411
      %v5413 = vrot.slane %v3136, %v5412
      %v5414 = vlaneseq
      %v5415 = vshrl.u32 %v5414, 7
      %v5416 = vsub.s32 2, %v5415
      %v5417 = vrot.slane %v3136, %v5416
      %v5418 = vlaneseq
      %v5419 = vshrl.u32 %v5418, 7
      %v5420 = vsub.s32 3, %v5419
      %v5421 = vrot.slane %v3136, %v5420
      %v5422 = vlaneseq
      %v5423 = vshrl.u32 %v5422, 7
      %v5424 = vsub.s32 4, %v5423
      %v5425 = vrot.slane %v3136, %v5424
      %v5426 = vlaneseq
      %v5427 = vshrl.u32 %v5426, 7
      %v5428 = vsub.s32 5, %v5427
      %v5429 = vrot.slane %v3136, %v5428
      %v5430 = vlaneseq
      %v5431 = vshrl.u32 %v5430, 7
      %v5432 = vsub.s32 6, %v5431
      %v5433 = vrot.slane %v3136, %v5432
      %v5434 = vlaneseq
      %v5435 = vshrl.u32 %v5434, 7
      %v5436 = vsub.s32 7, %v5435
      %v5437 = vrot.slane %v3136, %v5436
      %v5446 = vadd.f32 %v5397, %v5409
      %v5447 = vadd.f32 %v5398, %v5413
      %v5448 = vadd.f32 %v5399, %v5417
      %v5449 = vadd.f32 %v5400, %v5421
      %v5450 = vadd.f32 %v5401, %v5425
      %v5451 = vadd.f32 %v5402, %v5429
      %v5452 = vadd.f32 %v5403, %v5433
      %v5453 = vadd.f32 %v5404, %v5437
      %v5454 = vxor.u32 %v5446, 2147483648
      %v5455 = vxor.u32 %v5447, 2147483648
      %v5456 = vxor.u32 %v5448, 2147483648
      %v5457 = vxor.u32 %v5449, 2147483648
      %v5458 = vxor.u32 %v5450, 2147483648
      %v5459 = vxor.u32 %v5451, 2147483648
      %v5460 = vxor.u32 %v5452, 2147483648
      %v5461 = vxor.u32 %v5453, 2147483648
      %v5462 = vmul.f32 %v5454, 1.442695
      %v5463 = vpow.pop %v5462
      %v5464 = vmul.f32 %v5455, 1.442695
      %v5465 = vpow.pop %v5464
      %v5466 = vmul.f32 %v5456, 1.442695
      %v5467 = vpow.pop %v5466
      %v5468 = vmul.f32 %v5457, 1.442695
      %v5469 = vpow.pop %v5468
      %v5470 = vmul.f32 %v5458, 1.442695
      %v5471 = vpow.pop %v5470
      %v5472 = vmul.f32 %v5459, 1.442695
      %v5473 = vpow.pop %v5472
      %v5474 = vmul.f32 %v5460, 1.442695
      %v5475 = vpow.pop %v5474
      %v5476 = vmul.f32 %v5461, 1.442695
      %v5477 = vpow.pop %v5476
      %v5478 = vadd.f32 %v5463, 1.0
      %v5479 = vadd.f32 %v5465, 1.0
      %v5480 = vadd.f32 %v5467, 1.0
      %v5481 = vadd.f32 %v5469, 1.0
      %v5482 = vadd.f32 %v5471, 1.0
      %v5483 = vadd.f32 %v5473, 1.0
      %v5484 = vadd.f32 %v5475, 1.0
      %v5485 = vadd.f32 %v5477, 1.0
      %v5486 = vrcp.pop %v5478
      %v5487 = vmul.f32 1.0, %v5486
      %v5488 = vrcp.pop %v5479
      %v5489 = vmul.f32 1.0, %v5488
      %v5490 = vrcp.pop %v5480
      %v5491 = vmul.f32 1.0, %v5490
      %v5492 = vrcp.pop %v5481
      %v5493 = vmul.f32 1.0, %v5492
      %v5494 = vrcp.pop %v5482
      %v5495 = vmul.f32 1.0, %v5494
      %v5496 = vrcp.pop %v5483
      %v5497 = vmul.f32 1.0, %v5496
      %v5498 = vrcp.pop %v5484
      %v5499 = vmul.f32 1.0, %v5498
      %v5500 = vrcp.pop %v5485
      %v5501 = vmul.f32 1.0, %v5500
      %v5502 = vmul.f32 %v5446, %v5487
      %v5503 = vmul.f32 %v5447, %v5489
      %v5504 = vmul.f32 %v5448, %v5491
      %v5505 = vmul.f32 %v5449, %v5493
      %v5506 = vmul.f32 %v5450, %v5495
      %v5507 = vmul.f32 %v5451, %v5497
      %v5508 = vmul.f32 %v5452, %v5499
      %v5509 = vmul.f32 %v5453, %v5501
      %v5510 = vpack.c.bf16 %v5502, %v5502
      %v5511 = vpack.c.bf16 %v5503, %v5503
      %v5512 = vpack.c.bf16 %v5504, %v5504
      %v5513 = vpack.c.bf16 %v5505, %v5505
      %v5514 = vpack.c.bf16 %v5506, %v5506
      %v5515 = vpack.c.bf16 %v5507, %v5507
      %v5516 = vpack.c.bf16 %v5508, %v5508
      %v5517 = vpack.c.bf16 %v5509, %v5509
      %v5518 = vld [vmem:[#allocation6] sm:$0xf]
      %v5519 = vld [vmem:[#allocation6 + $0x4] sm:$0xf]
      %v5520 = vld [vmem:[#allocation6 + $0x8] sm:$0xf]
      %v5521 = vld [vmem:[#allocation6 + $0xc] sm:$0xf]
      %v5522 = vld [vmem:[#allocation6 + $0x10] sm:$0xf]
      %v5523 = vld [vmem:[#allocation6 + $0x14] sm:$0xf]
      %v5524 = vld [vmem:[#allocation6 + $0x18] sm:$0xf]
      %v5525 = vld [vmem:[#allocation6 + $0x1c] sm:$0xf]
      %v5526 = vld [vmem:[#allocation6 + $0x20] sm:$0xf]
      %v5527 = vld [vmem:[#allocation6 + $0x24] sm:$0xf]
      %v5528 = vld [vmem:[#allocation6 + $0x28] sm:$0xf]
      %v5529 = vld [vmem:[#allocation6 + $0x2c] sm:$0xf]
      %v5530 = vld [vmem:[#allocation6 + $0x30] sm:$0xf]
      %v5531 = vld [vmem:[#allocation6 + $0x34] sm:$0xf]
      %v5532 = vld [vmem:[#allocation6 + $0x38] sm:$0xf]
      %v5533 = vld [vmem:[#allocation6 + $0x3c] sm:$0xf]
      %v5534 = vld [vmem:[#allocation6 + $0x40] sm:$0xf]
      %v5535 = vld [vmem:[#allocation6 + $0x44] sm:$0xf]
      %v5536 = vld [vmem:[#allocation6 + $0x48] sm:$0xf]
      %v5537 = vld [vmem:[#allocation6 + $0x4c] sm:$0xf]
      %v5538 = vld [vmem:[#allocation6 + $0x50] sm:$0xf]
      %v5539 = vld [vmem:[#allocation6 + $0x54] sm:$0xf]
      %v5540 = vld [vmem:[#allocation6 + $0x58] sm:$0xf]
      %v5541 = vld [vmem:[#allocation6 + $0x5c] sm:$0xf]
      %v5542 = vld [vmem:[#allocation6 + $0x60] sm:$0xf]
      %v5543 = vld [vmem:[#allocation6 + $0x64] sm:$0xf]
      %v5544 = vld [vmem:[#allocation6 + $0x68] sm:$0xf]
      %v5545 = vld [vmem:[#allocation6 + $0x6c] sm:$0xf]
      %v5546 = vld [vmem:[#allocation6 + $0x70] sm:$0xf]
      %v5547 = vld [vmem:[#allocation6 + $0x74] sm:$0xf]
      %v5548 = vld [vmem:[#allocation6 + $0x78] sm:$0xf]
      %v5549 = vld [vmem:[#allocation6 + $0x7c] sm:$0xf]
      %v5550 = vld [vmem:[#allocation6 + $0x80] sm:$0xf]
      %v5551 = vld [vmem:[#allocation6 + $0x84] sm:$0xf]
      %v5552 = vld [vmem:[#allocation6 + $0x88] sm:$0xf]
      %v5553 = vld [vmem:[#allocation6 + $0x8c] sm:$0xf]
      %v5554 = vld [vmem:[#allocation6 + $0x90] sm:$0xf]
      %v5555 = vld [vmem:[#allocation6 + $0x94] sm:$0xf]
      %v5556 = vld [vmem:[#allocation6 + $0x98] sm:$0xf]
      %v5557 = vld [vmem:[#allocation6 + $0x9c] sm:$0xf]
      %v5558 = vld [vmem:[#allocation6 + $0xa0] sm:$0xf]
      %v5559 = vld [vmem:[#allocation6 + $0xa4] sm:$0xf]
      %v5560 = vld [vmem:[#allocation6 + $0xa8] sm:$0xf]
      %v5561 = vld [vmem:[#allocation6 + $0xac] sm:$0xf]
      %v5562 = vld [vmem:[#allocation6 + $0xb0] sm:$0xf]
      %v5563 = vld [vmem:[#allocation6 + $0xb4] sm:$0xf]
      %v5564 = vld [vmem:[#allocation6 + $0xb8] sm:$0xf]
      %v5565 = vld [vmem:[#allocation6 + $0xbc] sm:$0xf]
      %v5566 = vld [vmem:[#allocation6 + $0xc0] sm:$0xf]
      %v5567 = vld [vmem:[#allocation6 + $0xc4] sm:$0xf]
      %v5568 = vld [vmem:[#allocation6 + $0xc8] sm:$0xf]
      %v5569 = vld [vmem:[#allocation6 + $0xcc] sm:$0xf]
      %v5570 = vld [vmem:[#allocation6 + $0xd0] sm:$0xf]
      %v5571 = vld [vmem:[#allocation6 + $0xd4] sm:$0xf]
      %v5572 = vld [vmem:[#allocation6 + $0xd8] sm:$0xf]
      %v5573 = vld [vmem:[#allocation6 + $0xdc] sm:$0xf]
      %v5574 = vld [vmem:[#allocation6 + $0xe0] sm:$0xf]
      %v5575 = vld [vmem:[#allocation6 + $0xe4] sm:$0xf]
      %v5576 = vld [vmem:[#allocation6 + $0xe8] sm:$0xf]
      %v5577 = vld [vmem:[#allocation6 + $0xec] sm:$0xf]
      %v5578 = vld [vmem:[#allocation6 + $0xf0] sm:$0xf]
      %v5579 = vld [vmem:[#allocation6 + $0xf4] sm:$0xf]
      %v5580 = vld [vmem:[#allocation6 + $0xf8] sm:$0xf]
      %v5581 = vld [vmem:[#allocation6 + $0xfc] sm:$0xf]
      %v5582 = vld [vmem:[#allocation6 + $0x100] sm:$0xf]
      %v5583 = vld [vmem:[#allocation6 + $0x104] sm:$0xf]
      %v5584 = vld [vmem:[#allocation6 + $0x108] sm:$0xf]
      %v5585 = vld [vmem:[#allocation6 + $0x10c] sm:$0xf]
      %v5586 = vld [vmem:[#allocation6 + $0x110] sm:$0xf]
      %v5587 = vld [vmem:[#allocation6 + $0x114] sm:$0xf]
      %v5588 = vld [vmem:[#allocation6 + $0x118] sm:$0xf]
      %v5589 = vld [vmem:[#allocation6 + $0x11c] sm:$0xf]
      %v5590 = vld [vmem:[#allocation6 + $0x120] sm:$0xf]
      %v5591 = vld [vmem:[#allocation6 + $0x124] sm:$0xf]
      %v5592 = vld [vmem:[#allocation6 + $0x128] sm:$0xf]
      %v5593 = vld [vmem:[#allocation6 + $0x12c] sm:$0xf]
      %v5594 = vld [vmem:[#allocation6 + $0x130] sm:$0xf]
      %v5595 = vld [vmem:[#allocation6 + $0x134] sm:$0xf]
      %v5596 = vld [vmem:[#allocation6 + $0x138] sm:$0xf]
      %v5597 = vld [vmem:[#allocation6 + $0x13c] sm:$0xf]
      %v5598 = vld [vmem:[#allocation6 + $0x140] sm:$0xf]
      %v5599 = vld [vmem:[#allocation6 + $0x144] sm:$0xf]
      %v5600 = vld [vmem:[#allocation6 + $0x148] sm:$0xf]
      %v5601 = vld [vmem:[#allocation6 + $0x14c] sm:$0xf]
      %v5602 = vld [vmem:[#allocation6 + $0x150] sm:$0xf]
      %v5603 = vld [vmem:[#allocation6 + $0x154] sm:$0xf]
      %v5604 = vld [vmem:[#allocation6 + $0x158] sm:$0xf]
      %v5605 = vld [vmem:[#allocation6 + $0x15c] sm:$0xf]
      %v5606 = vld [vmem:[#allocation6 + $0x160] sm:$0xf]
      %v5607 = vld [vmem:[#allocation6 + $0x164] sm:$0xf]
      %v5608 = vld [vmem:[#allocation6 + $0x168] sm:$0xf]
      %v5609 = vld [vmem:[#allocation6 + $0x16c] sm:$0xf]
      %v5610 = vld [vmem:[#allocation6 + $0x170] sm:$0xf]
      %v5611 = vld [vmem:[#allocation6 + $0x174] sm:$0xf]
      %v5612 = vld [vmem:[#allocation6 + $0x178] sm:$0xf]
      %v5613 = vld [vmem:[#allocation6 + $0x17c] sm:$0xf]
      %v5614 = vld [vmem:[#allocation6 + $0x180] sm:$0xf]
      %v5615 = vld [vmem:[#allocation6 + $0x184] sm:$0xf]
      %v5616 = vld [vmem:[#allocation6 + $0x188] sm:$0xf]
      %v5617 = vld [vmem:[#allocation6 + $0x18c] sm:$0xf]
      %v5618 = vld [vmem:[#allocation6 + $0x190] sm:$0xf]
      %v5619 = vld [vmem:[#allocation6 + $0x194] sm:$0xf]
      %v5620 = vld [vmem:[#allocation6 + $0x198] sm:$0xf]
      %v5621 = vld [vmem:[#allocation6 + $0x19c] sm:$0xf]
      %v5622 = vld [vmem:[#allocation6 + $0x1a0] sm:$0xf]
      %v5623 = vld [vmem:[#allocation6 + $0x1a4] sm:$0xf]
      %v5624 = vld [vmem:[#allocation6 + $0x1a8] sm:$0xf]
      %v5625 = vld [vmem:[#allocation6 + $0x1ac] sm:$0xf]
      %v5626 = vld [vmem:[#allocation6 + $0x1b0] sm:$0xf]
      %v5627 = vld [vmem:[#allocation6 + $0x1b4] sm:$0xf]
      %v5628 = vld [vmem:[#allocation6 + $0x1b8] sm:$0xf]
      %v5629 = vld [vmem:[#allocation6 + $0x1bc] sm:$0xf]
      %v5630 = vld [vmem:[#allocation6 + $0x1c0] sm:$0xf]
      %v5631 = vld [vmem:[#allocation6 + $0x1c4] sm:$0xf]
      %v5632 = vld [vmem:[#allocation6 + $0x1c8] sm:$0xf]
      %v5633 = vld [vmem:[#allocation6 + $0x1cc] sm:$0xf]
      %v5634 = vld [vmem:[#allocation6 + $0x1d0] sm:$0xf]
      %v5635 = vld [vmem:[#allocation6 + $0x1d4] sm:$0xf]
      %v5636 = vld [vmem:[#allocation6 + $0x1d8] sm:$0xf]
      %v5637 = vld [vmem:[#allocation6 + $0x1dc] sm:$0xf]
      %v5638 = vld [vmem:[#allocation6 + $0x1e0] sm:$0xf]
      %v5639 = vld [vmem:[#allocation6 + $0x1e4] sm:$0xf]
      %v5640 = vld [vmem:[#allocation6 + $0x1e8] sm:$0xf]
      %v5641 = vld [vmem:[#allocation6 + $0x1ec] sm:$0xf]
      %v5642 = vld [vmem:[#allocation6 + $0x1f0] sm:$0xf]
      %v5643 = vld [vmem:[#allocation6 + $0x1f4] sm:$0xf]
      %v5644 = vld [vmem:[#allocation6 + $0x1f8] sm:$0xf]
      %v5645 = vld [vmem:[#allocation6 + $0x1fc] sm:$0xf]
      %v5647 = vlaneseq
      %v5648 = vshrl.u32 %v5647, 7
      %v5649 = vsub.s32 0, %v5648
      %v5650 = vrot.slane %v3137, %v5649
      %v5780 = vunpack.c.l.b16 %v5518
      %v5781 = vunpack.c.l.b16 %v5519
      %v5782 = vunpack.c.l.b16 %v5520
      %v5783 = vunpack.c.l.b16 %v5521
      %v5784 = vunpack.c.l.b16 %v5522
      %v5785 = vunpack.c.l.b16 %v5523
      %v5786 = vunpack.c.l.b16 %v5524
      %v5787 = vunpack.c.l.b16 %v5525
      %v5788 = vunpack.c.l.b16 %v5526
      %v5789 = vunpack.c.l.b16 %v5527
      %v5790 = vunpack.c.l.b16 %v5528
      %v5791 = vunpack.c.l.b16 %v5529
      %v5792 = vunpack.c.l.b16 %v5530
      %v5793 = vunpack.c.l.b16 %v5531
      %v5794 = vunpack.c.l.b16 %v5532
      %v5795 = vunpack.c.l.b16 %v5533
      %v5796 = vunpack.c.l.b16 %v5534
      %v5797 = vunpack.c.l.b16 %v5535
      %v5798 = vunpack.c.l.b16 %v5536
      %v5799 = vunpack.c.l.b16 %v5537
      %v5800 = vunpack.c.l.b16 %v5538
      %v5801 = vunpack.c.l.b16 %v5539
      %v5802 = vunpack.c.l.b16 %v5540
      %v5803 = vunpack.c.l.b16 %v5541
      %v5804 = vunpack.c.l.b16 %v5542
      %v5805 = vunpack.c.l.b16 %v5543
      %v5806 = vunpack.c.l.b16 %v5544
      %v5807 = vunpack.c.l.b16 %v5545
      %v5808 = vunpack.c.l.b16 %v5546
      %v5809 = vunpack.c.l.b16 %v5547
      %v5810 = vunpack.c.l.b16 %v5548
      %v5811 = vunpack.c.l.b16 %v5549
      %v5812 = vunpack.c.l.b16 %v5550
      %v5813 = vunpack.c.l.b16 %v5551
      %v5814 = vunpack.c.l.b16 %v5552
      %v5815 = vunpack.c.l.b16 %v5553
      %v5816 = vunpack.c.l.b16 %v5554
      %v5817 = vunpack.c.l.b16 %v5555
      %v5818 = vunpack.c.l.b16 %v5556
      %v5819 = vunpack.c.l.b16 %v5557
      %v5820 = vunpack.c.l.b16 %v5558
      %v5821 = vunpack.c.l.b16 %v5559
      %v5822 = vunpack.c.l.b16 %v5560
      %v5823 = vunpack.c.l.b16 %v5561
      %v5824 = vunpack.c.l.b16 %v5562
      %v5825 = vunpack.c.l.b16 %v5563
      %v5826 = vunpack.c.l.b16 %v5564
      %v5827 = vunpack.c.l.b16 %v5565
      %v5828 = vunpack.c.l.b16 %v5566
      %v5829 = vunpack.c.l.b16 %v5567
      %v5830 = vunpack.c.l.b16 %v5568
      %v5831 = vunpack.c.l.b16 %v5569
      %v5832 = vunpack.c.l.b16 %v5570
      %v5833 = vunpack.c.l.b16 %v5571
      %v5834 = vunpack.c.l.b16 %v5572
      %v5835 = vunpack.c.l.b16 %v5573
      %v5836 = vunpack.c.l.b16 %v5574
      %v5837 = vunpack.c.l.b16 %v5575
      %v5838 = vunpack.c.l.b16 %v5576
      %v5839 = vunpack.c.l.b16 %v5577
      %v5840 = vunpack.c.l.b16 %v5578
      %v5841 = vunpack.c.l.b16 %v5579
      %v5842 = vunpack.c.l.b16 %v5580
      %v5843 = vunpack.c.l.b16 %v5581
      %v5844 = vunpack.c.l.b16 %v5582
      %v5845 = vunpack.c.l.b16 %v5583
      %v5846 = vunpack.c.l.b16 %v5584
      %v5847 = vunpack.c.l.b16 %v5585
      %v5848 = vunpack.c.l.b16 %v5586
      %v5849 = vunpack.c.l.b16 %v5587
      %v5850 = vunpack.c.l.b16 %v5588
      %v5851 = vunpack.c.l.b16 %v5589
      %v5852 = vunpack.c.l.b16 %v5590
      %v5853 = vunpack.c.l.b16 %v5591
      %v5854 = vunpack.c.l.b16 %v5592
      %v5855 = vunpack.c.l.b16 %v5593
      %v5856 = vunpack.c.l.b16 %v5594
      %v5857 = vunpack.c.l.b16 %v5595
      %v5858 = vunpack.c.l.b16 %v5596
      %v5859 = vunpack.c.l.b16 %v5597
      %v5860 = vunpack.c.l.b16 %v5598
      %v5861 = vunpack.c.l.b16 %v5599
      %v5862 = vunpack.c.l.b16 %v5600
      %v5863 = vunpack.c.l.b16 %v5601
      %v5864 = vunpack.c.l.b16 %v5602
      %v5865 = vunpack.c.l.b16 %v5603
      %v5866 = vunpack.c.l.b16 %v5604
      %v5867 = vunpack.c.l.b16 %v5605
      %v5868 = vunpack.c.l.b16 %v5606
      %v5869 = vunpack.c.l.b16 %v5607
      %v5870 = vunpack.c.l.b16 %v5608
      %v5871 = vunpack.c.l.b16 %v5609
      %v5872 = vunpack.c.l.b16 %v5610
      %v5873 = vunpack.c.l.b16 %v5611
      %v5874 = vunpack.c.l.b16 %v5612
      %v5875 = vunpack.c.l.b16 %v5613
      %v5876 = vunpack.c.l.b16 %v5614
      %v5877 = vunpack.c.l.b16 %v5615
      %v5878 = vunpack.c.l.b16 %v5616
      %v5879 = vunpack.c.l.b16 %v5617
      %v5880 = vunpack.c.l.b16 %v5618
      %v5881 = vunpack.c.l.b16 %v5619
      %v5882 = vunpack.c.l.b16 %v5620
      %v5883 = vunpack.c.l.b16 %v5621
      %v5884 = vunpack.c.l.b16 %v5622
      %v5885 = vunpack.c.l.b16 %v5623
      %v5886 = vunpack.c.l.b16 %v5624
      %v5887 = vunpack.c.l.b16 %v5625
      %v5888 = vunpack.c.l.b16 %v5626
      %v5889 = vunpack.c.l.b16 %v5627
      %v5890 = vunpack.c.l.b16 %v5628
      %v5891 = vunpack.c.l.b16 %v5629
      %v5892 = vunpack.c.l.b16 %v5630
      %v5893 = vunpack.c.l.b16 %v5631
      %v5894 = vunpack.c.l.b16 %v5632
      %v5895 = vunpack.c.l.b16 %v5633
      %v5896 = vunpack.c.l.b16 %v5634
      %v5897 = vunpack.c.l.b16 %v5635
      %v5898 = vunpack.c.l.b16 %v5636
      %v5899 = vunpack.c.l.b16 %v5637
      %v5900 = vunpack.c.l.b16 %v5638
      %v5901 = vunpack.c.l.b16 %v5639
      %v5902 = vunpack.c.l.b16 %v5640
      %v5903 = vunpack.c.l.b16 %v5641
      %v5904 = vunpack.c.l.b16 %v5642
      %v5905 = vunpack.c.l.b16 %v5643
      %v5906 = vunpack.c.l.b16 %v5644
      %v5907 = vunpack.c.l.b16 %v5645
      %v5908 = vpack.c.b16 %v5781, %v5780
      %v5909 = vpack.c.b16 %v5783, %v5782
      %v5910 = vpack.c.b16 %v5785, %v5784
      %v5911 = vpack.c.b16 %v5787, %v5786
      %v5912 = vpack.c.b16 %v5789, %v5788
      %v5913 = vpack.c.b16 %v5791, %v5790
      %v5914 = vpack.c.b16 %v5793, %v5792
      %v5915 = vpack.c.b16 %v5795, %v5794
      %v5916 = vpack.c.b16 %v5797, %v5796
      %v5917 = vpack.c.b16 %v5799, %v5798
      %v5918 = vpack.c.b16 %v5801, %v5800
      %v5919 = vpack.c.b16 %v5803, %v5802
      %v5920 = vpack.c.b16 %v5805, %v5804
      %v5921 = vpack.c.b16 %v5807, %v5806
      %v5922 = vpack.c.b16 %v5809, %v5808
      %v5923 = vpack.c.b16 %v5811, %v5810
      %v5924 = vpack.c.b16 %v5813, %v5812
      %v5925 = vpack.c.b16 %v5815, %v5814
      %v5926 = vpack.c.b16 %v5817, %v5816
      %v5927 = vpack.c.b16 %v5819, %v5818
      %v5928 = vpack.c.b16 %v5821, %v5820
      %v5929 = vpack.c.b16 %v5823, %v5822
      %v5930 = vpack.c.b16 %v5825, %v5824
      %v5931 = vpack.c.b16 %v5827, %v5826
      %v5932 = vpack.c.b16 %v5829, %v5828
      %v5933 = vpack.c.b16 %v5831, %v5830
      %v5934 = vpack.c.b16 %v5833, %v5832
      %v5935 = vpack.c.b16 %v5835, %v5834
      %v5936 = vpack.c.b16 %v5837, %v5836
      %v5937 = vpack.c.b16 %v5839, %v5838
      %v5938 = vpack.c.b16 %v5841, %v5840
      %v5939 = vpack.c.b16 %v5843, %v5842
      %v5940 = vpack.c.b16 %v5845, %v5844
      %v5941 = vpack.c.b16 %v5847, %v5846
      %v5942 = vpack.c.b16 %v5849, %v5848
      %v5943 = vpack.c.b16 %v5851, %v5850
      %v5944 = vpack.c.b16 %v5853, %v5852
      %v5945 = vpack.c.b16 %v5855, %v5854
      %v5946 = vpack.c.b16 %v5857, %v5856
      %v5947 = vpack.c.b16 %v5859, %v5858
      %v5948 = vpack.c.b16 %v5861, %v5860
      %v5949 = vpack.c.b16 %v5863, %v5862
      %v5950 = vpack.c.b16 %v5865, %v5864
      %v5951 = vpack.c.b16 %v5867, %v5866
      %v5952 = vpack.c.b16 %v5869, %v5868
      %v5953 = vpack.c.b16 %v5871, %v5870
      %v5954 = vpack.c.b16 %v5873, %v5872
      %v5955 = vpack.c.b16 %v5875, %v5874
      %v5956 = vpack.c.b16 %v5877, %v5876
      %v5957 = vpack.c.b16 %v5879, %v5878
      %v5958 = vpack.c.b16 %v5881, %v5880
      %v5959 = vpack.c.b16 %v5883, %v5882
      %v5960 = vpack.c.b16 %v5885, %v5884
      %v5961 = vpack.c.b16 %v5887, %v5886
      %v5962 = vpack.c.b16 %v5889, %v5888
      %v5963 = vpack.c.b16 %v5891, %v5890
      %v5964 = vpack.c.b16 %v5893, %v5892
      %v5965 = vpack.c.b16 %v5895, %v5894
      %v5966 = vpack.c.b16 %v5897, %v5896
      %v5967 = vpack.c.b16 %v5899, %v5898
      %v5968 = vpack.c.b16 %v5901, %v5900
      %v5969 = vpack.c.b16 %v5903, %v5902
      %v5970 = vpack.c.b16 %v5905, %v5904
      %v5971 = vpack.c.b16 %v5907, %v5906
      %6036 = vmatprep.subr.bf16.mxu0 0
      %6037 = vmatpush1.bf16.msra.mxu0 %v5908
      %6038 = vmatprep.subr.bf16.mxu0 0
      %6039 = vmatpush1.bf16.msra.mxu0 %v5909
      %6040 = vmatprep.subr.bf16.mxu0 0
      %6041 = vmatpush1.bf16.msra.mxu0 %v5910
      %6042 = vmatprep.subr.bf16.mxu0 0
      %6043 = vmatpush1.bf16.msra.mxu0 %v5911
      %6044 = vmatprep.subr.bf16.mxu0 0
      %6045 = vmatpush1.bf16.msra.mxu0 %v5912
      %6046 = vmatprep.subr.bf16.mxu0 0
      %6047 = vmatpush1.bf16.msra.mxu0 %v5913
      %6048 = vmatprep.subr.bf16.mxu0 0
      %6049 = vmatpush1.bf16.msra.mxu0 %v5914
      %6050 = vmatprep.subr.bf16.mxu0 0
      %6051 = vmatpush1.bf16.msra.mxu0 %v5915
      %6052 = vmatprep.subr.bf16.mxu0 0
      %6053 = vmatpush1.bf16.msra.mxu0 %v5916
      %6054 = vmatprep.subr.bf16.mxu0 0
      %6055 = vmatpush1.bf16.msra.mxu0 %v5917
      %6056 = vmatprep.subr.bf16.mxu0 0
      %6057 = vmatpush1.bf16.msra.mxu0 %v5918
      %6058 = vmatprep.subr.bf16.mxu0 0
      %6059 = vmatpush1.bf16.msra.mxu0 %v5919
      %6060 = vmatprep.subr.bf16.mxu0 0
      %6061 = vmatpush1.bf16.msra.mxu0 %v5920
      %6062 = vmatprep.subr.bf16.mxu0 0
      %6063 = vmatpush1.bf16.msra.mxu0 %v5921
      %6064 = vmatprep.subr.bf16.mxu0 0
      %6065 = vmatpush1.bf16.msra.mxu0 %v5922
      %6066 = vmatprep.subr.bf16.mxu0 0
      %6067 = vmatpush1.bf16.msra.mxu0 %v5923
      %6068 = vmatprep.mubr.bf16.mxu0 %v5511
      %6069 = vmatmul.mubr.bf16.gmra.mrb[0].mxu0 %v5510
      %v6070 = vpop.f32.mrb[0].mxu0
      %v6071 = vadd.f32 %v5650, %v6070
      %v6072 = vpop.f32.mrb[0].mxu0
      %v6073 = vpop.f32.mrb[0].mxu0
      %v6074 = vpop.f32.mrb[0].mxu0
      %6075 = vdwg.mxu0
      %6076 = vmatprep.subr.bf16.mxu0 0
      %6077 = vmatpush1.bf16.msra.mxu0 %v5924
      %6078 = vmatprep.subr.bf16.mxu0 0
      %6079 = vmatpush1.bf16.msra.mxu0 %v5925
      %6080 = vmatprep.subr.bf16.mxu0 0
      %6081 = vmatpush1.bf16.msra.mxu0 %v5926
      %6082 = vmatprep.subr.bf16.mxu0 0
      %6083 = vmatpush1.bf16.msra.mxu0 %v5927
      %6084 = vmatprep.subr.bf16.mxu0 0
      %6085 = vmatpush1.bf16.msra.mxu0 %v5928
      %6086 = vmatprep.subr.bf16.mxu0 0
      %6087 = vmatpush1.bf16.msra.mxu0 %v5929
      %6088 = vmatprep.subr.bf16.mxu0 0
      %6089 = vmatpush1.bf16.msra.mxu0 %v5930
      %6090 = vmatprep.subr.bf16.mxu0 0
      %6091 = vmatpush1.bf16.msra.mxu0 %v5931
      %6092 = vmatprep.subr.bf16.mxu0 0
      %6093 = vmatpush1.bf16.msra.mxu0 %v5932
      %6094 = vmatprep.subr.bf16.mxu0 0
      %6095 = vmatpush1.bf16.msra.mxu0 %v5933
      %6096 = vmatprep.subr.bf16.mxu0 0
      %6097 = vmatpush1.bf16.msra.mxu0 %v5934
      %6098 = vmatprep.subr.bf16.mxu0 0
      %6099 = vmatpush1.bf16.msra.mxu0 %v5935
      %6100 = vmatprep.subr.bf16.mxu0 0
      %6101 = vmatpush1.bf16.msra.mxu0 %v5936
      %6102 = vmatprep.subr.bf16.mxu0 0
      %6103 = vmatpush1.bf16.msra.mxu0 %v5937
      %6104 = vmatprep.subr.bf16.mxu0 0
      %6105 = vmatpush1.bf16.msra.mxu0 %v5938
      %6106 = vmatprep.subr.bf16.mxu0 0
      %6107 = vmatpush1.bf16.msra.mxu0 %v5939
      %6108 = vmatprep.mubr.bf16.mxu0 %v5513
      %6109 = vmatmul.mubr.bf16.gmra.mrb[0].mxu0 %v5512
      %v6110 = vpop.f32.mrb[0].mxu0
      %v6111 = vadd.f32 %v6071, %v6110
      %v6112 = vpop.f32.mrb[0].mxu0
      %v6113 = vpop.f32.mrb[0].mxu0
      %v6114 = vpop.f32.mrb[0].mxu0
      %6115 = vdwg.mxu0
      %6116 = vmatprep.subr.bf16.mxu0 0
      %6117 = vmatpush1.bf16.msra.mxu0 %v5940
      %6118 = vmatprep.subr.bf16.mxu0 0
      %6119 = vmatpush1.bf16.msra.mxu0 %v5941
      %6120 = vmatprep.subr.bf16.mxu0 0
      %6121 = vmatpush1.bf16.msra.mxu0 %v5942
      %6122 = vmatprep.subr.bf16.mxu0 0
      %6123 = vmatpush1.bf16.msra.mxu0 %v5943
      %6124 = vmatprep.subr.bf16.mxu0 0
      %6125 = vmatpush1.bf16.msra.mxu0 %v5944
      %6126 = vmatprep.subr.bf16.mxu0 0
      %6127 = vmatpush1.bf16.msra.mxu0 %v5945
      %6128 = vmatprep.subr.bf16.mxu0 0
      %6129 = vmatpush1.bf16.msra.mxu0 %v5946
      %6130 = vmatprep.subr.bf16.mxu0 0
      %6131 = vmatpush1.bf16.msra.mxu0 %v5947
      %6132 = vmatprep.subr.bf16.mxu0 0
      %6133 = vmatpush1.bf16.msra.mxu0 %v5948
      %6134 = vmatprep.subr.bf16.mxu0 0
      %6135 = vmatpush1.bf16.msra.mxu0 %v5949
      %6136 = vmatprep.subr.bf16.mxu0 0
      %6137 = vmatpush1.bf16.msra.mxu0 %v5950
      %6138 = vmatprep.subr.bf16.mxu0 0
      %6139 = vmatpush1.bf16.msra.mxu0 %v5951
      %6140 = vmatprep.subr.bf16.mxu0 0
      %6141 = vmatpush1.bf16.msra.mxu0 %v5952
      %6142 = vmatprep.subr.bf16.mxu0 0
      %6143 = vmatpush1.bf16.msra.mxu0 %v5953
      %6144 = vmatprep.subr.bf16.mxu0 0
      %6145 = vmatpush1.bf16.msra.mxu0 %v5954
      %6146 = vmatprep.subr.bf16.mxu0 0
      %6147 = vmatpush1.bf16.msra.mxu0 %v5955
      %6148 = vmatprep.mubr.bf16.mxu0 %v5515
      %6149 = vmatmul.mubr.bf16.gmra.mrb[0].mxu0 %v5514
      %v6150 = vpop.f32.mrb[0].mxu0
      %v6151 = vadd.f32 %v6111, %v6150
      %v6152 = vpop.f32.mrb[0].mxu0
      %v6153 = vpop.f32.mrb[0].mxu0
      %v6154 = vpop.f32.mrb[0].mxu0
      %6155 = vdwg.mxu0
      %6156 = vmatprep.subr.bf16.mxu0 0
      %6157 = vmatpush1.bf16.msra.mxu0 %v5956
      %6158 = vmatprep.subr.bf16.mxu0 0
      %6159 = vmatpush1.bf16.msra.mxu0 %v5957
      %6160 = vmatprep.subr.bf16.mxu0 0
      %6161 = vmatpush1.bf16.msra.mxu0 %v5958
      %6162 = vmatprep.subr.bf16.mxu0 0
      %6163 = vmatpush1.bf16.msra.mxu0 %v5959
      %6164 = vmatprep.subr.bf16.mxu0 0
      %6165 = vmatpush1.bf16.msra.mxu0 %v5960
      %6166 = vmatprep.subr.bf16.mxu0 0
      %6167 = vmatpush1.bf16.msra.mxu0 %v5961
      %6168 = vmatprep.subr.bf16.mxu0 0
      %6169 = vmatpush1.bf16.msra.mxu0 %v5962
      %6170 = vmatprep.subr.bf16.mxu0 0
      %6171 = vmatpush1.bf16.msra.mxu0 %v5963
      %6172 = vmatprep.subr.bf16.mxu0 0
      %6173 = vmatpush1.bf16.msra.mxu0 %v5964
      %6174 = vmatprep.subr.bf16.mxu0 0
      %6175 = vmatpush1.bf16.msra.mxu0 %v5965
      %6176 = vmatprep.subr.bf16.mxu0 0
      %6177 = vmatpush1.bf16.msra.mxu0 %v5966
      %6178 = vmatprep.subr.bf16.mxu0 0
      %6179 = vmatpush1.bf16.msra.mxu0 %v5967
      %6180 = vmatprep.subr.bf16.mxu0 0
      %6181 = vmatpush1.bf16.msra.mxu0 %v5968
      %6182 = vmatprep.subr.bf16.mxu0 0
      %6183 = vmatpush1.bf16.msra.mxu0 %v5969
      %6184 = vmatprep.subr.bf16.mxu0 0
      %6185 = vmatpush1.bf16.msra.mxu0 %v5970
      %6186 = vmatprep.subr.bf16.mxu0 0
      %6187 = vmatpush1.bf16.msra.mxu0 %v5971
      %6188 = vmatprep.mubr.bf16.mxu0 %v5517
      %6189 = vmatmul.mubr.bf16.gmra.mrb[0].mxu0 %v5516
      %v6190 = vpop.f32.mrb[0].mxu0
      %v6191 = vadd.f32 %v6151, %v6190
      %v6192 = vpop.f32.mrb[0].mxu0
      %v6193 = vpop.f32.mrb[0].mxu0
      %v6194 = vpop.f32.mrb[0].mxu0
      %6195 = vdwg.mxu0
      %6196 = vst [vmem:[#allocation8] sm:$0x3] %v6191
    $region49: #{image_guard_forward.1} parent=1 // pred_fallthru
      _
    // Predicated region
    $region50: #{image_guard_forward.1} parent=1 // pred_check
      _
    $region51: #{image_guard_forward.1} parent=1 // pred_check_branch
      %6198 = sbr.rel (0) target = $region53
    $region52: #{image_guard_forward.1} parent=1 // pred_region
      %s6200 = ssub.s32 32, 32
      %6201 = vsyncadd [#allocation5], %s6200
      %s6203 = sshll.u32 [#allocation8], 4
      %s6204 = int_to_ptr.vmem [resolvable:$true] %s6203
      %6206 = dma.vmem_to_hbm [thread:$0]  %s6204, 32, %s8, [#allocation5]
    $region53: #{image_guard_forward.1} parent=1 // pred_fallthru
      _
    // Predicated region
    $region54: #{image_guard_forward.1} parent=1 // pred_check
      _
    $region55: #{image_guard_forward.1} parent=1 // pred_check_branch
      %6208 = sbr.rel (0) target = $region57
    $region56: #{image_guard_forward.1} parent=1 // pred_region
      %6209 = dma.done [#allocation5], 32
    $region57: #{image_guard_forward.1} parent=1 // pred_fallthru
      _
    %6210 = vsyncpa [#allocation4], 1
    %6211 = vsyncpa [#allocation7], 1
    %6212 = vsyncpa [#allocation5], 1

</llo_original>
